<compile_context>
chip_gen: v7x
topology: tpu7x:2x2x1
jax: 0.10.0
libtpu: 0.0.40
codegen_flags: <defaults>
</compile_context>

<pallas_src>
import functools
import math

import jax
import jax.numpy as jnp
import numpy as np
from jax import lax
from jax.experimental import pallas as pl
from jax.experimental.pallas import tpu as pltpu


def _mmca_kernel(v_ref, t_ref,
                 win_s_ref, bin_s_ref, wo_s_ref, bo_s_ref,
                 win_c_ref, bin_c_ref, wo_c_ref, bo_c_ref,
                 out_ref, *, n_batch, heads, head_dim):
    """Fused SimpleMMCA forward; whole problem resident in VMEM.

    v_ref   : (Lv*N, E)  visual tokens, row index = l*N + n (seq-major)
    t_ref   : (Lt*N, E)  text tokens, same row ordering
    win_*   : (3E, E)    packed q/k/v projection weights (PyTorch y = x @ W^T + b)
    bin_*   : (1, 3E)    packed q/k/v projection biases
    wo_*    : (E, E)     out_proj weight
    bo_*    : (1, E)     out_proj bias
    out_ref : (Lt*N, E)
    """
    emb = heads * head_dim
    scale = 1.0 / math.sqrt(head_dim)
    dn = (((1,), (1,)), ((), ()))          # contract last dims of both: x @ W^T

    v_tok = v_ref[...]                     # (Rv, E)
    t_tok = t_ref[...]                     # (Rt, E)
    rv = v_tok.shape[0]
    rt = t_tok.shape[0]

    win_s, bin_s = win_s_ref[...], bin_s_ref[...]
    wo_s, bo_s = wo_s_ref[...], bo_s_ref[...]
    win_c, bin_c = win_c_ref[...], bin_c_ref[...]
    wo_c, bo_c = wo_c_ref[...], bo_c_ref[...]

    def batch_mask(rows, cols):
        # row r belongs to batch r % N (seq-major, batch-minor flattening).
        ri = lax.broadcasted_iota(jnp.int32, (rows, cols), 0)
        ci = lax.broadcasted_iota(jnp.int32, (rows, cols), 1)
        return (ri % n_batch) == (ci % n_batch)

    def masked_softmax(s, mask):
        # Masked entries -> exp underflows to exactly 0, so this is identical
        # to per-batch softmax.
        s = jnp.where(mask, s, jnp.float32(-1e30))
        s = s - jnp.max(s, axis=-1, keepdims=True)
        p = jnp.exp(s)
        return p * pl.reciprocal(jnp.sum(p, axis=-1, keepdims=True), approx=True)

    # ---------------- stage 1: v = self_attn(v, v, v) ----------------
    # One fat QKV projection: (Rv, E) @ (E, 3E) -> (Rv, 3E).
    qkv_v = lax.dot_general(v_tok, win_s, dn,
                            preferred_element_type=jnp.float32) + bin_s
    qv = qkv_v[:, :emb] * scale            # scale folded into Q once
    kv = qkv_v[:, emb:2 * emb]
    vv = qkv_v[:, 2 * emb:]

    m_vv = batch_mask(rv, rv)
    v_acc = jnp.zeros((rv, emb), jnp.float32)
    for h in range(heads):                               # static, unrolled
        sl = slice(h * head_dim, (h + 1) * head_dim)
        s = lax.dot_general(qv[:, sl], kv[:, sl], dn,
                            preferred_element_type=jnp.float32)          # (Rv, Rv)
        p = masked_softmax(s, m_vv)
        o = jnp.dot(p, vv[:, sl], preferred_element_type=jnp.float32)    # (Rv, Dh)
        # out_proj(concat_h o_h) == sum_h o_h @ Wo[:, h*Dh:(h+1)*Dh]^T
        v_acc = v_acc + lax.dot_general(o, wo_s[:, sl], dn,
                                        preferred_element_type=jnp.float32)
    v_out = v_acc + bo_s                                 # (Rv, E), stays in VMEM

    # -------- stage 2: t = cross(t,t,t) + cross(t, v_out, v_out) --------
    # Shared cross_attn weights: project q_t once; out_proj applied once to
    # (o_tt + o_tv) with bias 2*bo (out_proj is linear).
    qkv_t = lax.dot_general(t_tok, win_c, dn,
                            preferred_element_type=jnp.float32) + bin_c   # (Rt, 3E)
    qt = qkv_t[:, :emb] * scale
    kt = qkv_t[:, emb:2 * emb]
    vt = qkv_t[:, 2 * emb:]
    # Re-project the (VMEM-resident) self-attn output with the K/V halves only:
    # (Rv, E) @ (E, 2E) -> (Rv, 2E).
    kvv2 = lax.dot_general(v_out, win_c[emb:, :], dn,
                           preferred_element_type=jnp.float32) + bin_c[:, emb:]
    kv2 = kvv2[:, :emb]
    vv2 = kvv2[:, emb:]

    k_cat = jnp.concatenate([kt, kv2], axis=0)           # (Rt+Rv, E)
    m_tt = batch_mask(rt, rt)
    m_tv = batch_mask(rt, rv)

    t_acc = jnp.zeros((rt, emb), jnp.float32)
    for h in range(heads):
        sl = slice(h * head_dim, (h + 1) * head_dim)
        s_cat = lax.dot_general(qt[:, sl], k_cat[:, sl], dn,
                                preferred_element_type=jnp.float32)  # (Rt, Rt+Rv)
        p_tt = masked_softmax(s_cat[:, :rt], m_tt)       # softmax per KV segment
        p_tv = masked_softmax(s_cat[:, rt:], m_tv)
        o = (jnp.dot(p_tt, vt[:, sl], preferred_element_type=jnp.float32)
             + jnp.dot(p_tv, vv2[:, sl], preferred_element_type=jnp.float32))
        t_acc = t_acc + lax.dot_general(o, wo_c[:, sl], dn,
                                        preferred_element_type=jnp.float32)

    out_ref[...] = (t_acc + 2.0 * bo_c).astype(out_ref.dtype)


def _cost_estimate(Lv, Lt, N, E, heads):
    rv, rt, dh = Lv * N, Lt * N, E // heads
    flops = 2 * E * E * (5 * rv + 3 * rt)                          # projections
    flops += heads * (4 * rv * rv * dh + 2 * rv * dh * E)          # self-attn
    flops += heads * (4 * rt * (rt + rv) * dh + 2 * rt * dh * E)   # cross-attn
    transcendentals = heads * (rv * rv + rt * (rt + rv))           # exp count
    bytes_accessed = 4 * (rv * E + 2 * rt * E
                          + 2 * (3 * E * E + 3 * E + E * E + E))
    return pl.CostEstimate(flops=flops, transcendentals=transcendentals,
                           bytes_accessed=bytes_accessed)


def simple_mmca_forward(v, t, self_params, cross_params, heads):
    """Pallas implementation of SimpleMMCA.forward, seq-first (L, N, E) layout."""
    Lv, N, E = v.shape
    Lt, Nt, Et = t.shape
    assert (N, E) == (Nt, Et)

    # Row-major reshapes only (free; no transposes / extra HBM passes).
    v2d = v.reshape(Lv * N, E)
    t2d = t.reshape(Lt * N, E)

    args = (
        v2d, t2d,
        self_params["in_proj_weight"], self_params["in_proj_bias"].reshape(1, 3 * E),
        self_params["out_proj_weight"], self_params["out_proj_bias"].reshape(1, E),
        cross_params["in_proj_weight"], cross_params["in_proj_bias"].reshape(1, 3 * E),
        cross_params["out_proj_weight"], cross_params["out_proj_bias"].reshape(1, E),
    )

    kernel = functools.partial(_mmca_kernel, n_batch=N, heads=heads,
                               head_dim=E // heads)

    out2d = pl.pallas_call(
        kernel,
        out_shape=jax.ShapeDtypeStruct((Lt * N, E), t.dtype),
        in_specs=[pl.BlockSpec(memory_space=pltpu.MemorySpace.VMEM) for _ in args],
        out_specs=pl.BlockSpec(memory_space=pltpu.MemorySpace.VMEM),
        cost_estimate=_cost_estimate(Lv, Lt, N, E, heads),
    )(*args)

    return out2d.reshape(Lt, N, E)


# ---------------------------------------------------------------------------
# Pure-JAX reference (for correctness check only)
# ---------------------------------------------------------------------------
def ref_mha(query, key_value, params, heads):
    Lq, N, E = query.shape
    Lk = key_value.shape[0]
    hd = E // heads
    w_in, b_in = params["in_proj_weight"], params["in_proj_bias"]
    wq, wk, wv = w_in[:E], w_in[E:2 * E], w_in[2 * E:]
    bq, bk, bv = b_in[:E], b_in[E:2 * E], b_in[2 * E:]
    q = jnp.einsum("lne,fe->lnf", query, wq) + bq
    k = jnp.einsum("lne,fe->lnf", key_value, wk) + bk
    v = jnp.einsum("lne,fe->lnf", key_value, wv) + bv
    q = q.reshape(Lq, N, heads, hd)
    k = k.reshape(Lk, N, heads, hd)
    v = v.reshape(Lk, N, heads, hd)
    s = jnp.einsum("qnhd,knhd->nhqk", q, k) / math.sqrt(hd)
    p = jax.nn.softmax(s, axis=-1)
    o = jnp.einsum("nhqk,knhd->qnhd", p, v).reshape(Lq, N, E)
    return jnp.einsum("qne,fe->qnf", o, params["out_proj_weight"]) + params["out_proj_bias"]


def ref_forward(v, t, self_params, cross_params, heads):
    v = ref_mha(v, v, self_params, heads)
    return ref_mha(t, t, cross_params, heads) + ref_mha(t, v, cross_params, heads)


def init_mha_params(key, dim):
    k1, k2, k3, k4 = jax.random.split(key, 4)
    bound = 1.0 / math.sqrt(dim)
    return {
        "in_proj_weight": jax.random.uniform(k1, (3 * dim, dim), jnp.float32, -bound, bound),
        "in_proj_bias": jax.random.uniform(k2, (3 * dim,), jnp.float32, -bound, bound),
        "out_proj_weight": jax.random.uniform(k3, (dim, dim), jnp.float32, -bound, bound),
        "out_proj_bias": jax.random.uniform(k4, (dim,), jnp.float32, -bound, bound),
    }


if __name__ == "__main__":
    dim, heads = 32, 4
    Lv, Lt, batch = 16, 8, 2   # visual tokens, text tokens, batch

    root = jax.random.PRNGKey(0)
    k_self, k_cross, k_v, k_t = jax.random.split(root, 4)

    self_params = init_mha_params(k_self, dim)
    cross_params = init_mha_params(k_cross, dim)

    # seq-first layout (L, N, E), matching nn.MultiheadAttention defaults
    v = jax.random.normal(k_v, (Lv, batch, dim), jnp.float32)
    t = jax.random.normal(k_t, (Lt, batch, dim), jnp.float32)

    fwd = jax.jit(functools.partial(simple_mmca_forward, heads=heads))
    out = jax.block_until_ready(fwd(v, t, self_params, cross_params))

    ref = jax.block_until_ready(ref_forward(v, t, self_params, cross_params, heads))
    # Tolerance loosened vs pure-f32 because the softmax denominator uses the
    # EUP approximate reciprocal (pl.reciprocal(approx=True)).
    np.testing.assert_allclose(np.asarray(out), np.asarray(ref), atol=5e-3, rtol=5e-3)

    assert out.shape == (Lt, batch, dim)
    print("KERNEL_OK")
</pallas_src>

<mosaic_0001>
module attributes {stable_mosaic.version = 11 : i64} {
  func.func @_mmca_kernel(%arg0: memref<32x32xf32, #tpu.memory_space<vmem>>, %arg1: memref<16x32xf32, #tpu.memory_space<vmem>>, %arg2: memref<96x32xf32, #tpu.memory_space<vmem>>, %arg3: memref<1x96xf32, #tpu.memory_space<vmem>>, %arg4: memref<32x32xf32, #tpu.memory_space<vmem>>, %arg5: memref<1x32xf32, #tpu.memory_space<vmem>>, %arg6: memref<96x32xf32, #tpu.memory_space<vmem>>, %arg7: memref<1x96xf32, #tpu.memory_space<vmem>>, %arg8: memref<32x32xf32, #tpu.memory_space<vmem>>, %arg9: memref<1x32xf32, #tpu.memory_space<vmem>>, %arg10: memref<16x32xf32, #tpu.memory_space<vmem>>) attributes {dimension_semantics = [], scalar_prefetch = 0 : i64, scratch_operands = 0 : i64, tpu.core_type = #tpu.core_type<tc>} {
    %c0 = arith.constant 0 : index
    %c0_0 = arith.constant 0 : index
    %0 = vector.load %arg0[%c0, %c0_0] : memref<32x32xf32, #tpu.memory_space<vmem>>, vector<32x32xf32>
    %c0_1 = arith.constant 0 : index
    %c0_2 = arith.constant 0 : index
    %1 = vector.load %arg1[%c0_1, %c0_2] : memref<16x32xf32, #tpu.memory_space<vmem>>, vector<16x32xf32>
    %c0_3 = arith.constant 0 : index
    %c0_4 = arith.constant 0 : index
    %2 = vector.load %arg2[%c0_3, %c0_4] : memref<96x32xf32, #tpu.memory_space<vmem>>, vector<96x32xf32>
    %c0_5 = arith.constant 0 : index
    %c0_6 = arith.constant 0 : index
    %3 = vector.load %arg3[%c0_5, %c0_6] : memref<1x96xf32, #tpu.memory_space<vmem>>, vector<1x96xf32>
    %c0_7 = arith.constant 0 : index
    %c0_8 = arith.constant 0 : index
    %4 = vector.load %arg4[%c0_7, %c0_8] : memref<32x32xf32, #tpu.memory_space<vmem>>, vector<32x32xf32>
    %c0_9 = arith.constant 0 : index
    %c0_10 = arith.constant 0 : index
    %5 = vector.load %arg5[%c0_9, %c0_10] : memref<1x32xf32, #tpu.memory_space<vmem>>, vector<1x32xf32>
    %c0_11 = arith.constant 0 : index
    %c0_12 = arith.constant 0 : index
    %6 = vector.load %arg6[%c0_11, %c0_12] : memref<96x32xf32, #tpu.memory_space<vmem>>, vector<96x32xf32>
    %c0_13 = arith.constant 0 : index
    %c0_14 = arith.constant 0 : index
    %7 = vector.load %arg7[%c0_13, %c0_14] : memref<1x96xf32, #tpu.memory_space<vmem>>, vector<1x96xf32>
    %c0_15 = arith.constant 0 : index
    %c0_16 = arith.constant 0 : index
    %8 = vector.load %arg8[%c0_15, %c0_16] : memref<32x32xf32, #tpu.memory_space<vmem>>, vector<32x32xf32>
    %c0_17 = arith.constant 0 : index
    %c0_18 = arith.constant 0 : index
    %9 = vector.load %arg9[%c0_17, %c0_18] : memref<1x32xf32, #tpu.memory_space<vmem>>, vector<1x32xf32>
    %cst = arith.constant dense<0.000000e+00> : vector<32x96xf32>
    %10 = tpu.matmul %0, %2, %cst {dimension_numbers = #tpu.dot_dimension_numbers<[1], [1], [0], [0], [0, 0, 1, 0], [], []>} : vector<32x32xf32>, vector<96x32xf32>, vector<32x96xf32> -> vector<32x96xf32>
    %11 = vector.broadcast %3 : vector<1x96xf32> to vector<32x96xf32>
    %12 = arith.addf %10, %11 : vector<32x96xf32>
    %13 = vector.extract_strided_slice %12 {offsets = [0, 0], sizes = [32, 32], strides = [1, 1]} : vector<32x96xf32> to vector<32x32xf32>
    %cst_19 = arith.constant 0.353553385 : f32
    %14 = vector.broadcast %cst_19 : f32 to vector<32x32xf32>
    %15 = arith.mulf %13, %14 : vector<32x32xf32>
    %16 = vector.extract_strided_slice %12 {offsets = [0, 32], sizes = [32, 32], strides = [1, 1]} : vector<32x96xf32> to vector<32x32xf32>
    %17 = vector.extract_strided_slice %12 {offsets = [0, 64], sizes = [32, 32], strides = [1, 1]} : vector<32x96xf32> to vector<32x32xf32>
    %18 = tpu.iota {dimensions = array<i32: 0>} : vector<32x32xi32>
    %19 = tpu.iota {dimensions = array<i32: 1>} : vector<32x32xi32>
    %c2_i32 = arith.constant 2 : i32
    %c0_i32 = arith.constant 0 : i32
    %20 = arith.cmpi eq, %c2_i32, %c0_i32 : i32
    %c1_i32 = arith.constant 1 : i32
    %21 = arith.select %20, %c1_i32, %c2_i32 : i32
    %22 = vector.broadcast %21 : i32 to vector<32x32xi32>
    %23 = arith.remsi %18, %22 : vector<32x32xi32>
    %c0_i32_20 = arith.constant 0 : i32
    %24 = vector.broadcast %c0_i32_20 : i32 to vector<32x32xi32>
    %25 = arith.cmpi ne, %23, %24 : vector<32x32xi32>
    %c0_i32_21 = arith.constant 0 : i32
    %26 = vector.broadcast %c0_i32_21 : i32 to vector<32x32xi32>
    %27 = arith.cmpi slt, %23, %26 : vector<32x32xi32>
    %c0_i32_22 = arith.constant 0 : i32
    %28 = arith.cmpi slt, %21, %c0_i32_22 : i32
    %29 = vector.broadcast %28 : i1 to vector<32x32xi1>
    %30 = vector.broadcast %29 : vector<32x32xi1> to vector<32x32xi1>
    %31 = arith.xori %27, %30 : vector<32x32xi1>
    %32 = arith.andi %31, %25 : vector<32x32xi1>
    %33 = vector.broadcast %21 : i32 to vector<32x32xi32>
    %34 = arith.addi %23, %33 : vector<32x32xi32>
    %35 = arith.select %32, %34, %23 : vector<32x32xi1>, vector<32x32xi32>
    %c2_i32_23 = arith.constant 2 : i32
    %c0_i32_24 = arith.constant 0 : i32
    %36 = arith.cmpi eq, %c2_i32_23, %c0_i32_24 : i32
    %c1_i32_25 = arith.constant 1 : i32
    %37 = arith.select %36, %c1_i32_25, %c2_i32_23 : i32
    %38 = vector.broadcast %37 : i32 to vector<32x32xi32>
    %39 = arith.remsi %19, %38 : vector<32x32xi32>
    %c0_i32_26 = arith.constant 0 : i32
    %40 = vector.broadcast %c0_i32_26 : i32 to vector<32x32xi32>
    %41 = arith.cmpi ne, %39, %40 : vector<32x32xi32>
    %c0_i32_27 = arith.constant 0 : i32
    %42 = vector.broadcast %c0_i32_27 : i32 to vector<32x32xi32>
    %43 = arith.cmpi slt, %39, %42 : vector<32x32xi32>
    %c0_i32_28 = arith.constant 0 : i32
    %44 = arith.cmpi slt, %37, %c0_i32_28 : i32
    %45 = vector.broadcast %44 : i1 to vector<32x32xi1>
    %46 = vector.broadcast %45 : vector<32x32xi1> to vector<32x32xi1>
    %47 = arith.xori %43, %46 : vector<32x32xi1>
    %48 = arith.andi %47, %41 : vector<32x32xi1>
    %49 = vector.broadcast %37 : i32 to vector<32x32xi32>
    %50 = arith.addi %39, %49 : vector<32x32xi32>
    %51 = arith.select %48, %50, %39 : vector<32x32xi1>, vector<32x32xi32>
    %52 = arith.cmpi eq, %35, %51 : vector<32x32xi32>
    %cst_29 = arith.constant 0.000000e+00 : f32
    %53 = vector.broadcast %cst_29 : f32 to vector<32x32xf32>
    %54 = vector.extract_strided_slice %15 {offsets = [0, 0], sizes = [32, 8], strides = [1, 1]} : vector<32x32xf32> to vector<32x8xf32>
    %55 = vector.extract_strided_slice %16 {offsets = [0, 0], sizes = [32, 8], strides = [1, 1]} : vector<32x32xf32> to vector<32x8xf32>
    %cst_30 = arith.constant dense<0.000000e+00> : vector<32x32xf32>
    %56 = tpu.matmul %54, %55, %cst_30 {dimension_numbers = #tpu.dot_dimension_numbers<[1], [1], [0], [0], [0, 0, 1, 0], [], []>} : vector<32x8xf32>, vector<32x8xf32>, vector<32x32xf32> -> vector<32x32xf32>
    %cst_31 = arith.constant -1.000000e+30 : f32
    %57 = vector.broadcast %cst_31 : f32 to vector<32x32xf32>
    %58 = arith.select %52, %56, %57 : vector<32x32xi1>, vector<32x32xf32>
    %cst_32 = arith.constant dense<0xFF800000> : vector<32xf32>
    %59 = vector.multi_reduction <maximumf>, %58, %cst_32 [1] : vector<32x32xf32> to vector<32xf32>
    %60 = vector.shape_cast %59 : vector<32xf32> to vector<32x1xf32>
    %61 = vector.broadcast %60 : vector<32x1xf32> to vector<32x32xf32>
    %62 = arith.subf %58, %61 : vector<32x32xf32>
    %63 = math.exp %62 : vector<32x32xf32>
    %cst_33 = arith.constant dense<0.000000e+00> : vector<32xf32>
    %64 = vector.multi_reduction <add>, %63, %cst_33 [1] : vector<32x32xf32> to vector<32xf32>
    %65 = vector.shape_cast %64 : vector<32xf32> to vector<32x1xf32>
    %66 = tpu.reciprocal %65 {approx = true} : vector<32x1xf32> -> vector<32x1xf32>
    %67 = vector.broadcast %66 : vector<32x1xf32> to vector<32x32xf32>
    %68 = arith.mulf %63, %67 : vector<32x32xf32>
    %69 = vector.extract_strided_slice %17 {offsets = [0, 0], sizes = [32, 8], strides = [1, 1]} : vector<32x32xf32> to vector<32x8xf32>
    %cst_34 = arith.constant dense<0.000000e+00> : vector<32x8xf32>
    %70 = tpu.matmul %68, %69, %cst_34 {dimension_numbers = #tpu.dot_dimension_numbers<[1], [0], [0], [1], [0, 0, 1, 1], [], []>} : vector<32x32xf32>, vector<32x8xf32>, vector<32x8xf32> -> vector<32x8xf32>
    %71 = vector.extract_strided_slice %4 {offsets = [0, 0], sizes = [32, 8], strides = [1, 1]} : vector<32x32xf32> to vector<32x8xf32>
    %cst_35 = arith.constant dense<0.000000e+00> : vector<32x32xf32>
    %72 = tpu.matmul %70, %71, %cst_35 {dimension_numbers = #tpu.dot_dimension_numbers<[1], [1], [0], [0], [0, 0, 1, 0], [], []>} : vector<32x8xf32>, vector<32x8xf32>, vector<32x32xf32> -> vector<32x32xf32>
    %73 = arith.addf %53, %72 : vector<32x32xf32>
    %74 = vector.extract_strided_slice %15 {offsets = [0, 8], sizes = [32, 8], strides = [1, 1]} : vector<32x32xf32> to vector<32x8xf32>
    %75 = vector.extract_strided_slice %16 {offsets = [0, 8], sizes = [32, 8], strides = [1, 1]} : vector<32x32xf32> to vector<32x8xf32>
    %cst_36 = arith.constant dense<0.000000e+00> : vector<32x32xf32>
    %76 = tpu.matmul %74, %75, %cst_36 {dimension_numbers = #tpu.dot_dimension_numbers<[1], [1], [0], [0], [0, 0, 1, 0], [], []>} : vector<32x8xf32>, vector<32x8xf32>, vector<32x32xf32> -> vector<32x32xf32>
    %cst_37 = arith.constant -1.000000e+30 : f32
    %77 = vector.broadcast %cst_37 : f32 to vector<32x32xf32>
    %78 = arith.select %52, %76, %77 : vector<32x32xi1>, vector<32x32xf32>
    %cst_38 = arith.constant dense<0xFF800000> : vector<32xf32>
    %79 = vector.multi_reduction <maximumf>, %78, %cst_38 [1] : vector<32x32xf32> to vector<32xf32>
    %80 = vector.shape_cast %79 : vector<32xf32> to vector<32x1xf32>
    %81 = vector.broadcast %80 : vector<32x1xf32> to vector<32x32xf32>
    %82 = arith.subf %78, %81 : vector<32x32xf32>
    %83 = math.exp %82 : vector<32x32xf32>
    %cst_39 = arith.constant dense<0.000000e+00> : vector<32xf32>
    %84 = vector.multi_reduction <add>, %83, %cst_39 [1] : vector<32x32xf32> to vector<32xf32>
    %85 = vector.shape_cast %84 : vector<32xf32> to vector<32x1xf32>
    %86 = tpu.reciprocal %85 {approx = true} : vector<32x1xf32> -> vector<32x1xf32>
    %87 = vector.broadcast %86 : vector<32x1xf32> to vector<32x32xf32>
    %88 = arith.mulf %83, %87 : vector<32x32xf32>
    %89 = vector.extract_strided_slice %17 {offsets = [0, 8], sizes = [32, 8], strides = [1, 1]} : vector<32x32xf32> to vector<32x8xf32>
    %cst_40 = arith.constant dense<0.000000e+00> : vector<32x8xf32>
    %90 = tpu.matmul %88, %89, %cst_40 {dimension_numbers = #tpu.dot_dimension_numbers<[1], [0], [0], [1], [0, 0, 1, 1], [], []>} : vector<32x32xf32>, vector<32x8xf32>, vector<32x8xf32> -> vector<32x8xf32>
    %91 = vector.extract_strided_slice %4 {offsets = [0, 8], sizes = [32, 8], strides = [1, 1]} : vector<32x32xf32> to vector<32x8xf32>
    %cst_41 = arith.constant dense<0.000000e+00> : vector<32x32xf32>
    %92 = tpu.matmul %90, %91, %cst_41 {dimension_numbers = #tpu.dot_dimension_numbers<[1], [1], [0], [0], [0, 0, 1, 0], [], []>} : vector<32x8xf32>, vector<32x8xf32>, vector<32x32xf32> -> vector<32x32xf32>
    %93 = arith.addf %73, %92 : vector<32x32xf32>
    %94 = vector.extract_strided_slice %15 {offsets = [0, 16], sizes = [32, 8], strides = [1, 1]} : vector<32x32xf32> to vector<32x8xf32>
    %95 = vector.extract_strided_slice %16 {offsets = [0, 16], sizes = [32, 8], strides = [1, 1]} : vector<32x32xf32> to vector<32x8xf32>
    %cst_42 = arith.constant dense<0.000000e+00> : vector<32x32xf32>
    %96 = tpu.matmul %94, %95, %cst_42 {dimension_numbers = #tpu.dot_dimension_numbers<[1], [1], [0], [0], [0, 0, 1, 0], [], []>} : vector<32x8xf32>, vector<32x8xf32>, vector<32x32xf32> -> vector<32x32xf32>
    %cst_43 = arith.constant -1.000000e+30 : f32
    %97 = vector.broadcast %cst_43 : f32 to vector<32x32xf32>
    %98 = arith.select %52, %96, %97 : vector<32x32xi1>, vector<32x32xf32>
    %cst_44 = arith.constant dense<0xFF800000> : vector<32xf32>
    %99 = vector.multi_reduction <maximumf>, %98, %cst_44 [1] : vector<32x32xf32> to vector<32xf32>
    %100 = vector.shape_cast %99 : vector<32xf32> to vector<32x1xf32>
    %101 = vector.broadcast %100 : vector<32x1xf32> to vector<32x32xf32>
    %102 = arith.subf %98, %101 : vector<32x32xf32>
    %103 = math.exp %102 : vector<32x32xf32>
    %cst_45 = arith.constant dense<0.000000e+00> : vector<32xf32>
    %104 = vector.multi_reduction <add>, %103, %cst_45 [1] : vector<32x32xf32> to vector<32xf32>
    %105 = vector.shape_cast %104 : vector<32xf32> to vector<32x1xf32>
    %106 = tpu.reciprocal %105 {approx = true} : vector<32x1xf32> -> vector<32x1xf32>
    %107 = vector.broadcast %106 : vector<32x1xf32> to vector<32x32xf32>
    %108 = arith.mulf %103, %107 : vector<32x32xf32>
    %109 = vector.extract_strided_slice %17 {offsets = [0, 16], sizes = [32, 8], strides = [1, 1]} : vector<32x32xf32> to vector<32x8xf32>
    %cst_46 = arith.constant dense<0.000000e+00> : vector<32x8xf32>
    %110 = tpu.matmul %108, %109, %cst_46 {dimension_numbers = #tpu.dot_dimension_numbers<[1], [0], [0], [1], [0, 0, 1, 1], [], []>} : vector<32x32xf32>, vector<32x8xf32>, vector<32x8xf32> -> vector<32x8xf32>
    %111 = vector.extract_strided_slice %4 {offsets = [0, 16], sizes = [32, 8], strides = [1, 1]} : vector<32x32xf32> to vector<32x8xf32>
    %cst_47 = arith.constant dense<0.000000e+00> : vector<32x32xf32>
    %112 = tpu.matmul %110, %111, %cst_47 {dimension_numbers = #tpu.dot_dimension_numbers<[1], [1], [0], [0], [0, 0, 1, 0], [], []>} : vector<32x8xf32>, vector<32x8xf32>, vector<32x32xf32> -> vector<32x32xf32>
    %113 = arith.addf %93, %112 : vector<32x32xf32>
    %114 = vector.extract_strided_slice %15 {offsets = [0, 24], sizes = [32, 8], strides = [1, 1]} : vector<32x32xf32> to vector<32x8xf32>
    %115 = vector.extract_strided_slice %16 {offsets = [0, 24], sizes = [32, 8], strides = [1, 1]} : vector<32x32xf32> to vector<32x8xf32>
    %cst_48 = arith.constant dense<0.000000e+00> : vector<32x32xf32>
    %116 = tpu.matmul %114, %115, %cst_48 {dimension_numbers = #tpu.dot_dimension_numbers<[1], [1], [0], [0], [0, 0, 1, 0], [], []>} : vector<32x8xf32>, vector<32x8xf32>, vector<32x32xf32> -> vector<32x32xf32>
    %cst_49 = arith.constant -1.000000e+30 : f32
    %117 = vector.broadcast %cst_49 : f32 to vector<32x32xf32>
    %118 = arith.select %52, %116, %117 : vector<32x32xi1>, vector<32x32xf32>
    %cst_50 = arith.constant dense<0xFF800000> : vector<32xf32>
    %119 = vector.multi_reduction <maximumf>, %118, %cst_50 [1] : vector<32x32xf32> to vector<32xf32>
    %120 = vector.shape_cast %119 : vector<32xf32> to vector<32x1xf32>
    %121 = vector.broadcast %120 : vector<32x1xf32> to vector<32x32xf32>
    %122 = arith.subf %118, %121 : vector<32x32xf32>
    %123 = math.exp %122 : vector<32x32xf32>
    %cst_51 = arith.constant dense<0.000000e+00> : vector<32xf32>
    %124 = vector.multi_reduction <add>, %123, %cst_51 [1] : vector<32x32xf32> to vector<32xf32>
    %125 = vector.shape_cast %124 : vector<32xf32> to vector<32x1xf32>
    %126 = tpu.reciprocal %125 {approx = true} : vector<32x1xf32> -> vector<32x1xf32>
    %127 = vector.broadcast %126 : vector<32x1xf32> to vector<32x32xf32>
    %128 = arith.mulf %123, %127 : vector<32x32xf32>
    %129 = vector.extract_strided_slice %17 {offsets = [0, 24], sizes = [32, 8], strides = [1, 1]} : vector<32x32xf32> to vector<32x8xf32>
    %cst_52 = arith.constant dense<0.000000e+00> : vector<32x8xf32>
    %130 = tpu.matmul %128, %129, %cst_52 {dimension_numbers = #tpu.dot_dimension_numbers<[1], [0], [0], [1], [0, 0, 1, 1], [], []>} : vector<32x32xf32>, vector<32x8xf32>, vector<32x8xf32> -> vector<32x8xf32>
    %131 = vector.extract_strided_slice %4 {offsets = [0, 24], sizes = [32, 8], strides = [1, 1]} : vector<32x32xf32> to vector<32x8xf32>
    %cst_53 = arith.constant dense<0.000000e+00> : vector<32x32xf32>
    %132 = tpu.matmul %130, %131, %cst_53 {dimension_numbers = #tpu.dot_dimension_numbers<[1], [1], [0], [0], [0, 0, 1, 0], [], []>} : vector<32x8xf32>, vector<32x8xf32>, vector<32x32xf32> -> vector<32x32xf32>
    %133 = arith.addf %113, %132 : vector<32x32xf32>
    %134 = vector.broadcast %5 : vector<1x32xf32> to vector<32x32xf32>
    %135 = arith.addf %133, %134 : vector<32x32xf32>
    %cst_54 = arith.constant dense<0.000000e+00> : vector<16x96xf32>
    %136 = tpu.matmul %1, %6, %cst_54 {dimension_numbers = #tpu.dot_dimension_numbers<[1], [1], [0], [0], [0, 0, 1, 0], [], []>} : vector<16x32xf32>, vector<96x32xf32>, vector<16x96xf32> -> vector<16x96xf32>
    %137 = vector.broadcast %7 : vector<1x96xf32> to vector<16x96xf32>
    %138 = arith.addf %136, %137 : vector<16x96xf32>
    %139 = vector.extract_strided_slice %138 {offsets = [0, 0], sizes = [16, 32], strides = [1, 1]} : vector<16x96xf32> to vector<16x32xf32>
    %cst_55 = arith.constant 0.353553385 : f32
    %140 = vector.broadcast %cst_55 : f32 to vector<16x32xf32>
    %141 = arith.mulf %139, %140 : vector<16x32xf32>
    %142 = vector.extract_strided_slice %138 {offsets = [0, 32], sizes = [16, 32], strides = [1, 1]} : vector<16x96xf32> to vector<16x32xf32>
    %143 = vector.extract_strided_slice %138 {offsets = [0, 64], sizes = [16, 32], strides = [1, 1]} : vector<16x96xf32> to vector<16x32xf32>
    %144 = vector.extract_strided_slice %6 {offsets = [32, 0], sizes = [64, 32], strides = [1, 1]} : vector<96x32xf32> to vector<64x32xf32>
    %cst_56 = arith.constant dense<0.000000e+00> : vector<32x64xf32>
    %145 = tpu.matmul %135, %144, %cst_56 {dimension_numbers = #tpu.dot_dimension_numbers<[1], [1], [0], [0], [0, 0, 1, 0], [], []>} : vector<32x32xf32>, vector<64x32xf32>, vector<32x64xf32> -> vector<32x64xf32>
    %146 = vector.extract_strided_slice %7 {offsets = [0, 32], sizes = [1, 64], strides = [1, 1]} : vector<1x96xf32> to vector<1x64xf32>
    %147 = vector.broadcast %146 : vector<1x64xf32> to vector<32x64xf32>
    %148 = arith.addf %145, %147 : vector<32x64xf32>
    %149 = vector.extract_strided_slice %148 {offsets = [0, 0], sizes = [32, 32], strides = [1, 1]} : vector<32x64xf32> to vector<32x32xf32>
    %150 = vector.extract_strided_slice %148 {offsets = [0, 32], sizes = [32, 32], strides = [1, 1]} : vector<32x64xf32> to vector<32x32xf32>
    %151 = tpu.concatenate %142, %149 in 0 : vector<16x32xf32>, vector<32x32xf32> -> vector<48x32xf32>
    %152 = tpu.iota {dimensions = array<i32: 0>} : vector<16x16xi32>
    %153 = tpu.iota {dimensions = array<i32: 1>} : vector<16x16xi32>
    %c2_i32_57 = arith.constant 2 : i32
    %c0_i32_58 = arith.constant 0 : i32
    %154 = arith.cmpi eq, %c2_i32_57, %c0_i32_58 : i32
    %c1_i32_59 = arith.constant 1 : i32
    %155 = arith.select %154, %c1_i32_59, %c2_i32_57 : i32
    %156 = vector.broadcast %155 : i32 to vector<16x16xi32>
    %157 = arith.remsi %152, %156 : vector<16x16xi32>
    %c0_i32_60 = arith.constant 0 : i32
    %158 = vector.broadcast %c0_i32_60 : i32 to vector<16x16xi32>
    %159 = arith.cmpi ne, %157, %158 : vector<16x16xi32>
    %c0_i32_61 = arith.constant 0 : i32
    %160 = vector.broadcast %c0_i32_61 : i32 to vector<16x16xi32>
    %161 = arith.cmpi slt, %157, %160 : vector<16x16xi32>
    %c0_i32_62 = arith.constant 0 : i32
    %162 = arith.cmpi slt, %155, %c0_i32_62 : i32
    %163 = vector.broadcast %162 : i1 to vector<16x16xi1>
    %164 = vector.broadcast %163 : vector<16x16xi1> to vector<16x16xi1>
    %165 = arith.xori %161, %164 : vector<16x16xi1>
    %166 = arith.andi %165, %159 : vector<16x16xi1>
    %167 = vector.broadcast %155 : i32 to vector<16x16xi32>
    %168 = arith.addi %157, %167 : vector<16x16xi32>
    %169 = arith.select %166, %168, %157 : vector<16x16xi1>, vector<16x16xi32>
    %c2_i32_63 = arith.constant 2 : i32
    %c0_i32_64 = arith.constant 0 : i32
    %170 = arith.cmpi eq, %c2_i32_63, %c0_i32_64 : i32
    %c1_i32_65 = arith.constant 1 : i32
    %171 = arith.select %170, %c1_i32_65, %c2_i32_63 : i32
    %172 = vector.broadcast %171 : i32 to vector<16x16xi32>
    %173 = arith.remsi %153, %172 : vector<16x16xi32>
    %c0_i32_66 = arith.constant 0 : i32
    %174 = vector.broadcast %c0_i32_66 : i32 to vector<16x16xi32>
    %175 = arith.cmpi ne, %173, %174 : vector<16x16xi32>
    %c0_i32_67 = arith.constant 0 : i32
    %176 = vector.broadcast %c0_i32_67 : i32 to vector<16x16xi32>
    %177 = arith.cmpi slt, %173, %176 : vector<16x16xi32>
    %c0_i32_68 = arith.constant 0 : i32
    %178 = arith.cmpi slt, %171, %c0_i32_68 : i32
    %179 = vector.broadcast %178 : i1 to vector<16x16xi1>
    %180 = vector.broadcast %179 : vector<16x16xi1> to vector<16x16xi1>
    %181 = arith.xori %177, %180 : vector<16x16xi1>
    %182 = arith.andi %181, %175 : vector<16x16xi1>
    %183 = vector.broadcast %171 : i32 to vector<16x16xi32>
    %184 = arith.addi %173, %183 : vector<16x16xi32>
    %185 = arith.select %182, %184, %173 : vector<16x16xi1>, vector<16x16xi32>
    %186 = arith.cmpi eq, %169, %185 : vector<16x16xi32>
    %187 = tpu.iota {dimensions = array<i32: 0>} : vector<16x32xi32>
    %188 = tpu.iota {dimensions = array<i32: 1>} : vector<16x32xi32>
    %c2_i32_69 = arith.constant 2 : i32
    %c0_i32_70 = arith.constant 0 : i32
    %189 = arith.cmpi eq, %c2_i32_69, %c0_i32_70 : i32
    %c1_i32_71 = arith.constant 1 : i32
    %190 = arith.select %189, %c1_i32_71, %c2_i32_69 : i32
    %191 = vector.broadcast %190 : i32 to vector<16x32xi32>
    %192 = arith.remsi %187, %191 : vector<16x32xi32>
    %c0_i32_72 = arith.constant 0 : i32
    %193 = vector.broadcast %c0_i32_72 : i32 to vector<16x32xi32>
    %194 = arith.cmpi ne, %192, %193 : vector<16x32xi32>
    %c0_i32_73 = arith.constant 0 : i32
    %195 = vector.broadcast %c0_i32_73 : i32 to vector<16x32xi32>
    %196 = arith.cmpi slt, %192, %195 : vector<16x32xi32>
    %c0_i32_74 = arith.constant 0 : i32
    %197 = arith.cmpi slt, %190, %c0_i32_74 : i32
    %198 = vector.broadcast %197 : i1 to vector<16x32xi1>
    %199 = vector.broadcast %198 : vector<16x32xi1> to vector<16x32xi1>
    %200 = arith.xori %196, %199 : vector<16x32xi1>
    %201 = arith.andi %200, %194 : vector<16x32xi1>
    %202 = vector.broadcast %190 : i32 to vector<16x32xi32>
    %203 = arith.addi %192, %202 : vector<16x32xi32>
    %204 = arith.select %201, %203, %192 : vector<16x32xi1>, vector<16x32xi32>
    %c2_i32_75 = arith.constant 2 : i32
    %c0_i32_76 = arith.constant 0 : i32
    %205 = arith.cmpi eq, %c2_i32_75, %c0_i32_76 : i32
    %c1_i32_77 = arith.constant 1 : i32
    %206 = arith.select %205, %c1_i32_77, %c2_i32_75 : i32
    %207 = vector.broadcast %206 : i32 to vector<16x32xi32>
    %208 = arith.remsi %188, %207 : vector<16x32xi32>
    %c0_i32_78 = arith.constant 0 : i32
    %209 = vector.broadcast %c0_i32_78 : i32 to vector<16x32xi32>
    %210 = arith.cmpi ne, %208, %209 : vector<16x32xi32>
    %c0_i32_79 = arith.constant 0 : i32
    %211 = vector.broadcast %c0_i32_79 : i32 to vector<16x32xi32>
    %212 = arith.cmpi slt, %208, %211 : vector<16x32xi32>
    %c0_i32_80 = arith.constant 0 : i32
    %213 = arith.cmpi slt, %206, %c0_i32_80 : i32
    %214 = vector.broadcast %213 : i1 to vector<16x32xi1>
    %215 = vector.broadcast %214 : vector<16x32xi1> to vector<16x32xi1>
    %216 = arith.xori %212, %215 : vector<16x32xi1>
    %217 = arith.andi %216, %210 : vector<16x32xi1>
    %218 = vector.broadcast %206 : i32 to vector<16x32xi32>
    %219 = arith.addi %208, %218 : vector<16x32xi32>
    %220 = arith.select %217, %219, %208 : vector<16x32xi1>, vector<16x32xi32>
    %221 = arith.cmpi eq, %204, %220 : vector<16x32xi32>
    %cst_81 = arith.constant 0.000000e+00 : f32
    %222 = vector.broadcast %cst_81 : f32 to vector<16x32xf32>
    %223 = vector.extract_strided_slice %141 {offsets = [0, 0], sizes = [16, 8], strides = [1, 1]} : vector<16x32xf32> to vector<16x8xf32>
    %224 = vector.extract_strided_slice %151 {offsets = [0, 0], sizes = [48, 8], strides = [1, 1]} : vector<48x32xf32> to vector<48x8xf32>
    %cst_82 = arith.constant dense<0.000000e+00> : vector<16x48xf32>
    %225 = tpu.matmul %223, %224, %cst_82 {dimension_numbers = #tpu.dot_dimension_numbers<[1], [1], [0], [0], [0, 0, 1, 0], [], []>} : vector<16x8xf32>, vector<48x8xf32>, vector<16x48xf32> -> vector<16x48xf32>
    %226 = vector.extract_strided_slice %225 {offsets = [0, 0], sizes = [16, 16], strides = [1, 1]} : vector<16x48xf32> to vector<16x16xf32>
    %cst_83 = arith.constant -1.000000e+30 : f32
    %227 = vector.broadcast %cst_83 : f32 to vector<16x16xf32>
    %228 = arith.select %186, %226, %227 : vector<16x16xi1>, vector<16x16xf32>
    %cst_84 = arith.constant dense<0xFF800000> : vector<16xf32>
    %229 = vector.multi_reduction <maximumf>, %228, %cst_84 [1] : vector<16x16xf32> to vector<16xf32>
    %230 = vector.shape_cast %229 : vector<16xf32> to vector<16x1xf32>
    %231 = vector.broadcast %230 : vector<16x1xf32> to vector<16x16xf32>
    %232 = arith.subf %228, %231 : vector<16x16xf32>
    %233 = math.exp %232 : vector<16x16xf32>
    %cst_85 = arith.constant dense<0.000000e+00> : vector<16xf32>
    %234 = vector.multi_reduction <add>, %233, %cst_85 [1] : vector<16x16xf32> to vector<16xf32>
    %235 = vector.shape_cast %234 : vector<16xf32> to vector<16x1xf32>
    %236 = tpu.reciprocal %235 {approx = true} : vector<16x1xf32> -> vector<16x1xf32>
    %237 = vector.broadcast %236 : vector<16x1xf32> to vector<16x16xf32>
    %238 = arith.mulf %233, %237 : vector<16x16xf32>
    %239 = vector.extract_strided_slice %225 {offsets = [0, 16], sizes = [16, 32], strides = [1, 1]} : vector<16x48xf32> to vector<16x32xf32>
    %cst_86 = arith.constant -1.000000e+30 : f32
    %240 = vector.broadcast %cst_86 : f32 to vector<16x32xf32>
    %241 = arith.select %221, %239, %240 : vector<16x32xi1>, vector<16x32xf32>
    %cst_87 = arith.constant dense<0xFF800000> : vector<16xf32>
    %242 = vector.multi_reduction <maximumf>, %241, %cst_87 [1] : vector<16x32xf32> to vector<16xf32>
    %243 = vector.shape_cast %242 : vector<16xf32> to vector<16x1xf32>
    %244 = vector.broadcast %243 : vector<16x1xf32> to vector<16x32xf32>
    %245 = arith.subf %241, %244 : vector<16x32xf32>
    %246 = math.exp %245 : vector<16x32xf32>
    %cst_88 = arith.constant dense<0.000000e+00> : vector<16xf32>
    %247 = vector.multi_reduction <add>, %246, %cst_88 [1] : vector<16x32xf32> to vector<16xf32>
    %248 = vector.shape_cast %247 : vector<16xf32> to vector<16x1xf32>
    %249 = tpu.reciprocal %248 {approx = true} : vector<16x1xf32> -> vector<16x1xf32>
    %250 = vector.broadcast %249 : vector<16x1xf32> to vector<16x32xf32>
    %251 = arith.mulf %246, %250 : vector<16x32xf32>
    %252 = vector.extract_strided_slice %143 {offsets = [0, 0], sizes = [16, 8], strides = [1, 1]} : vector<16x32xf32> to vector<16x8xf32>
    %cst_89 = arith.constant dense<0.000000e+00> : vector<16x8xf32>
    %253 = tpu.matmul %238, %252, %cst_89 {dimension_numbers = #tpu.dot_dimension_numbers<[1], [0], [0], [1], [0, 0, 1, 1], [], []>} : vector<16x16xf32>, vector<16x8xf32>, vector<16x8xf32> -> vector<16x8xf32>
    %254 = vector.extract_strided_slice %150 {offsets = [0, 0], sizes = [32, 8], strides = [1, 1]} : vector<32x32xf32> to vector<32x8xf32>
    %cst_90 = arith.constant dense<0.000000e+00> : vector<16x8xf32>
    %255 = tpu.matmul %251, %254, %cst_90 {dimension_numbers = #tpu.dot_dimension_numbers<[1], [0], [0], [1], [0, 0, 1, 1], [], []>} : vector<16x32xf32>, vector<32x8xf32>, vector<16x8xf32> -> vector<16x8xf32>
    %256 = arith.addf %253, %255 : vector<16x8xf32>
    %257 = vector.extract_strided_slice %8 {offsets = [0, 0], sizes = [32, 8], strides = [1, 1]} : vector<32x32xf32> to vector<32x8xf32>
    %cst_91 = arith.constant dense<0.000000e+00> : vector<16x32xf32>
    %258 = tpu.matmul %256, %257, %cst_91 {dimension_numbers = #tpu.dot_dimension_numbers<[1], [1], [0], [0], [0, 0, 1, 0], [], []>} : vector<16x8xf32>, vector<32x8xf32>, vector<16x32xf32> -> vector<16x32xf32>
    %259 = arith.addf %222, %258 : vector<16x32xf32>
    %260 = vector.extract_strided_slice %141 {offsets = [0, 8], sizes = [16, 8], strides = [1, 1]} : vector<16x32xf32> to vector<16x8xf32>
    %261 = vector.extract_strided_slice %151 {offsets = [0, 8], sizes = [48, 8], strides = [1, 1]} : vector<48x32xf32> to vector<48x8xf32>
    %cst_92 = arith.constant dense<0.000000e+00> : vector<16x48xf32>
    %262 = tpu.matmul %260, %261, %cst_92 {dimension_numbers = #tpu.dot_dimension_numbers<[1], [1], [0], [0], [0, 0, 1, 0], [], []>} : vector<16x8xf32>, vector<48x8xf32>, vector<16x48xf32> -> vector<16x48xf32>
    %263 = vector.extract_strided_slice %262 {offsets = [0, 0], sizes = [16, 16], strides = [1, 1]} : vector<16x48xf32> to vector<16x16xf32>
    %cst_93 = arith.constant -1.000000e+30 : f32
    %264 = vector.broadcast %cst_93 : f32 to vector<16x16xf32>
    %265 = arith.select %186, %263, %264 : vector<16x16xi1>, vector<16x16xf32>
    %cst_94 = arith.constant dense<0xFF800000> : vector<16xf32>
    %266 = vector.multi_reduction <maximumf>, %265, %cst_94 [1] : vector<16x16xf32> to vector<16xf32>
    %267 = vector.shape_cast %266 : vector<16xf32> to vector<16x1xf32>
    %268 = vector.broadcast %267 : vector<16x1xf32> to vector<16x16xf32>
    %269 = arith.subf %265, %268 : vector<16x16xf32>
    %270 = math.exp %269 : vector<16x16xf32>
    %cst_95 = arith.constant dense<0.000000e+00> : vector<16xf32>
    %271 = vector.multi_reduction <add>, %270, %cst_95 [1] : vector<16x16xf32> to vector<16xf32>
    %272 = vector.shape_cast %271 : vector<16xf32> to vector<16x1xf32>
    %273 = tpu.reciprocal %272 {approx = true} : vector<16x1xf32> -> vector<16x1xf32>
    %274 = vector.broadcast %273 : vector<16x1xf32> to vector<16x16xf32>
    %275 = arith.mulf %270, %274 : vector<16x16xf32>
    %276 = vector.extract_strided_slice %262 {offsets = [0, 16], sizes = [16, 32], strides = [1, 1]} : vector<16x48xf32> to vector<16x32xf32>
    %cst_96 = arith.constant -1.000000e+30 : f32
    %277 = vector.broadcast %cst_96 : f32 to vector<16x32xf32>
    %278 = arith.select %221, %276, %277 : vector<16x32xi1>, vector<16x32xf32>
    %cst_97 = arith.constant dense<0xFF800000> : vector<16xf32>
    %279 = vector.multi_reduction <maximumf>, %278, %cst_97 [1] : vector<16x32xf32> to vector<16xf32>
    %280 = vector.shape_cast %279 : vector<16xf32> to vector<16x1xf32>
    %281 = vector.broadcast %280 : vector<16x1xf32> to vector<16x32xf32>
    %282 = arith.subf %278, %281 : vector<16x32xf32>
    %283 = math.exp %282 : vector<16x32xf32>
    %cst_98 = arith.constant dense<0.000000e+00> : vector<16xf32>
    %284 = vector.multi_reduction <add>, %283, %cst_98 [1] : vector<16x32xf32> to vector<16xf32>
    %285 = vector.shape_cast %284 : vector<16xf32> to vector<16x1xf32>
    %286 = tpu.reciprocal %285 {approx = true} : vector<16x1xf32> -> vector<16x1xf32>
    %287 = vector.broadcast %286 : vector<16x1xf32> to vector<16x32xf32>
    %288 = arith.mulf %283, %287 : vector<16x32xf32>
    %289 = vector.extract_strided_slice %143 {offsets = [0, 8], sizes = [16, 8], strides = [1, 1]} : vector<16x32xf32> to vector<16x8xf32>
    %cst_99 = arith.constant dense<0.000000e+00> : vector<16x8xf32>
    %290 = tpu.matmul %275, %289, %cst_99 {dimension_numbers = #tpu.dot_dimension_numbers<[1], [0], [0], [1], [0, 0, 1, 1], [], []>} : vector<16x16xf32>, vector<16x8xf32>, vector<16x8xf32> -> vector<16x8xf32>
    %291 = vector.extract_strided_slice %150 {offsets = [0, 8], sizes = [32, 8], strides = [1, 1]} : vector<32x32xf32> to vector<32x8xf32>
    %cst_100 = arith.constant dense<0.000000e+00> : vector<16x8xf32>
    %292 = tpu.matmul %288, %291, %cst_100 {dimension_numbers = #tpu.dot_dimension_numbers<[1], [0], [0], [1], [0, 0, 1, 1], [], []>} : vector<16x32xf32>, vector<32x8xf32>, vector<16x8xf32> -> vector<16x8xf32>
    %293 = arith.addf %290, %292 : vector<16x8xf32>
    %294 = vector.extract_strided_slice %8 {offsets = [0, 8], sizes = [32, 8], strides = [1, 1]} : vector<32x32xf32> to vector<32x8xf32>
    %cst_101 = arith.constant dense<0.000000e+00> : vector<16x32xf32>
    %295 = tpu.matmul %293, %294, %cst_101 {dimension_numbers = #tpu.dot_dimension_numbers<[1], [1], [0], [0], [0, 0, 1, 0], [], []>} : vector<16x8xf32>, vector<32x8xf32>, vector<16x32xf32> -> vector<16x32xf32>
    %296 = arith.addf %259, %295 : vector<16x32xf32>
    %297 = vector.extract_strided_slice %141 {offsets = [0, 16], sizes = [16, 8], strides = [1, 1]} : vector<16x32xf32> to vector<16x8xf32>
    %298 = vector.extract_strided_slice %151 {offsets = [0, 16], sizes = [48, 8], strides = [1, 1]} : vector<48x32xf32> to vector<48x8xf32>
    %cst_102 = arith.constant dense<0.000000e+00> : vector<16x48xf32>
    %299 = tpu.matmul %297, %298, %cst_102 {dimension_numbers = #tpu.dot_dimension_numbers<[1], [1], [0], [0], [0, 0, 1, 0], [], []>} : vector<16x8xf32>, vector<48x8xf32>, vector<16x48xf32> -> vector<16x48xf32>
    %300 = vector.extract_strided_slice %299 {offsets = [0, 0], sizes = [16, 16], strides = [1, 1]} : vector<16x48xf32> to vector<16x16xf32>
    %cst_103 = arith.constant -1.000000e+30 : f32
    %301 = vector.broadcast %cst_103 : f32 to vector<16x16xf32>
    %302 = arith.select %186, %300, %301 : vector<16x16xi1>, vector<16x16xf32>
    %cst_104 = arith.constant dense<0xFF800000> : vector<16xf32>
    %303 = vector.multi_reduction <maximumf>, %302, %cst_104 [1] : vector<16x16xf32> to vector<16xf32>
    %304 = vector.shape_cast %303 : vector<16xf32> to vector<16x1xf32>
    %305 = vector.broadcast %304 : vector<16x1xf32> to vector<16x16xf32>
    %306 = arith.subf %302, %305 : vector<16x16xf32>
    %307 = math.exp %306 : vector<16x16xf32>
    %cst_105 = arith.constant dense<0.000000e+00> : vector<16xf32>
    %308 = vector.multi_reduction <add>, %307, %cst_105 [1] : vector<16x16xf32> to vector<16xf32>
    %309 = vector.shape_cast %308 : vector<16xf32> to vector<16x1xf32>
    %310 = tpu.reciprocal %309 {approx = true} : vector<16x1xf32> -> vector<16x1xf32>
    %311 = vector.broadcast %310 : vector<16x1xf32> to vector<16x16xf32>
    %312 = arith.mulf %307, %311 : vector<16x16xf32>
    %313 = vector.extract_strided_slice %299 {offsets = [0, 16], sizes = [16, 32], strides = [1, 1]} : vector<16x48xf32> to vector<16x32xf32>
    %cst_106 = arith.constant -1.000000e+30 : f32
    %314 = vector.broadcast %cst_106 : f32 to vector<16x32xf32>
    %315 = arith.select %221, %313, %314 : vector<16x32xi1>, vector<16x32xf32>
    %cst_107 = arith.constant dense<0xFF800000> : vector<16xf32>
    %316 = vector.multi_reduction <maximumf>, %315, %cst_107 [1] : vector<16x32xf32> to vector<16xf32>
    %317 = vector.shape_cast %316 : vector<16xf32> to vector<16x1xf32>
    %318 = vector.broadcast %317 : vector<16x1xf32> to vector<16x32xf32>
    %319 = arith.subf %315, %318 : vector<16x32xf32>
    %320 = math.exp %319 : vector<16x32xf32>
    %cst_108 = arith.constant dense<0.000000e+00> : vector<16xf32>
    %321 = vector.multi_reduction <add>, %320, %cst_108 [1] : vector<16x32xf32> to vector<16xf32>
    %322 = vector.shape_cast %321 : vector<16xf32> to vector<16x1xf32>
    %323 = tpu.reciprocal %322 {approx = true} : vector<16x1xf32> -> vector<16x1xf32>
    %324 = vector.broadcast %323 : vector<16x1xf32> to vector<16x32xf32>
    %325 = arith.mulf %320, %324 : vector<16x32xf32>
    %326 = vector.extract_strided_slice %143 {offsets = [0, 16], sizes = [16, 8], strides = [1, 1]} : vector<16x32xf32> to vector<16x8xf32>
    %cst_109 = arith.constant dense<0.000000e+00> : vector<16x8xf32>
    %327 = tpu.matmul %312, %326, %cst_109 {dimension_numbers = #tpu.dot_dimension_numbers<[1], [0], [0], [1], [0, 0, 1, 1], [], []>} : vector<16x16xf32>, vector<16x8xf32>, vector<16x8xf32> -> vector<16x8xf32>
    %328 = vector.extract_strided_slice %150 {offsets = [0, 16], sizes = [32, 8], strides = [1, 1]} : vector<32x32xf32> to vector<32x8xf32>
    %cst_110 = arith.constant dense<0.000000e+00> : vector<16x8xf32>
    %329 = tpu.matmul %325, %328, %cst_110 {dimension_numbers = #tpu.dot_dimension_numbers<[1], [0], [0], [1], [0, 0, 1, 1], [], []>} : vector<16x32xf32>, vector<32x8xf32>, vector<16x8xf32> -> vector<16x8xf32>
    %330 = arith.addf %327, %329 : vector<16x8xf32>
    %331 = vector.extract_strided_slice %8 {offsets = [0, 16], sizes = [32, 8], strides = [1, 1]} : vector<32x32xf32> to vector<32x8xf32>
    %cst_111 = arith.constant dense<0.000000e+00> : vector<16x32xf32>
    %332 = tpu.matmul %330, %331, %cst_111 {dimension_numbers = #tpu.dot_dimension_numbers<[1], [1], [0], [0], [0, 0, 1, 0], [], []>} : vector<16x8xf32>, vector<32x8xf32>, vector<16x32xf32> -> vector<16x32xf32>
    %333 = arith.addf %296, %332 : vector<16x32xf32>
    %334 = vector.extract_strided_slice %141 {offsets = [0, 24], sizes = [16, 8], strides = [1, 1]} : vector<16x32xf32> to vector<16x8xf32>
    %335 = vector.extract_strided_slice %151 {offsets = [0, 24], sizes = [48, 8], strides = [1, 1]} : vector<48x32xf32> to vector<48x8xf32>
    %cst_112 = arith.constant dense<0.000000e+00> : vector<16x48xf32>
    %336 = tpu.matmul %334, %335, %cst_112 {dimension_numbers = #tpu.dot_dimension_numbers<[1], [1], [0], [0], [0, 0, 1, 0], [], []>} : vector<16x8xf32>, vector<48x8xf32>, vector<16x48xf32> -> vector<16x48xf32>
    %337 = vector.extract_strided_slice %336 {offsets = [0, 0], sizes = [16, 16], strides = [1, 1]} : vector<16x48xf32> to vector<16x16xf32>
    %cst_113 = arith.constant -1.000000e+30 : f32
    %338 = vector.broadcast %cst_113 : f32 to vector<16x16xf32>
    %339 = arith.select %186, %337, %338 : vector<16x16xi1>, vector<16x16xf32>
    %cst_114 = arith.constant dense<0xFF800000> : vector<16xf32>
    %340 = vector.multi_reduction <maximumf>, %339, %cst_114 [1] : vector<16x16xf32> to vector<16xf32>
    %341 = vector.shape_cast %340 : vector<16xf32> to vector<16x1xf32>
    %342 = vector.broadcast %341 : vector<16x1xf32> to vector<16x16xf32>
    %343 = arith.subf %339, %342 : vector<16x16xf32>
    %344 = math.exp %343 : vector<16x16xf32>
    %cst_115 = arith.constant dense<0.000000e+00> : vector<16xf32>
    %345 = vector.multi_reduction <add>, %344, %cst_115 [1] : vector<16x16xf32> to vector<16xf32>
    %346 = vector.shape_cast %345 : vector<16xf32> to vector<16x1xf32>
    %347 = tpu.reciprocal %346 {approx = true} : vector<16x1xf32> -> vector<16x1xf32>
    %348 = vector.broadcast %347 : vector<16x1xf32> to vector<16x16xf32>
    %349 = arith.mulf %344, %348 : vector<16x16xf32>
    %350 = vector.extract_strided_slice %336 {offsets = [0, 16], sizes = [16, 32], strides = [1, 1]} : vector<16x48xf32> to vector<16x32xf32>
    %cst_116 = arith.constant -1.000000e+30 : f32
    %351 = vector.broadcast %cst_116 : f32 to vector<16x32xf32>
    %352 = arith.select %221, %350, %351 : vector<16x32xi1>, vector<16x32xf32>
    %cst_117 = arith.constant dense<0xFF800000> : vector<16xf32>
    %353 = vector.multi_reduction <maximumf>, %352, %cst_117 [1] : vector<16x32xf32> to vector<16xf32>
    %354 = vector.shape_cast %353 : vector<16xf32> to vector<16x1xf32>
    %355 = vector.broadcast %354 : vector<16x1xf32> to vector<16x32xf32>
    %356 = arith.subf %352, %355 : vector<16x32xf32>
    %357 = math.exp %356 : vector<16x32xf32>
    %cst_118 = arith.constant dense<0.000000e+00> : vector<16xf32>
    %358 = vector.multi_reduction <add>, %357, %cst_118 [1] : vector<16x32xf32> to vector<16xf32>
    %359 = vector.shape_cast %358 : vector<16xf32> to vector<16x1xf32>
    %360 = tpu.reciprocal %359 {approx = true} : vector<16x1xf32> -> vector<16x1xf32>
    %361 = vector.broadcast %360 : vector<16x1xf32> to vector<16x32xf32>
    %362 = arith.mulf %357, %361 : vector<16x32xf32>
    %363 = vector.extract_strided_slice %143 {offsets = [0, 24], sizes = [16, 8], strides = [1, 1]} : vector<16x32xf32> to vector<16x8xf32>
    %cst_119 = arith.constant dense<0.000000e+00> : vector<16x8xf32>
    %364 = tpu.matmul %349, %363, %cst_119 {dimension_numbers = #tpu.dot_dimension_numbers<[1], [0], [0], [1], [0, 0, 1, 1], [], []>} : vector<16x16xf32>, vector<16x8xf32>, vector<16x8xf32> -> vector<16x8xf32>
    %365 = vector.extract_strided_slice %150 {offsets = [0, 24], sizes = [32, 8], strides = [1, 1]} : vector<32x32xf32> to vector<32x8xf32>
    %cst_120 = arith.constant dense<0.000000e+00> : vector<16x8xf32>
    %366 = tpu.matmul %362, %365, %cst_120 {dimension_numbers = #tpu.dot_dimension_numbers<[1], [0], [0], [1], [0, 0, 1, 1], [], []>} : vector<16x32xf32>, vector<32x8xf32>, vector<16x8xf32> -> vector<16x8xf32>
    %367 = arith.addf %364, %366 : vector<16x8xf32>
    %368 = vector.extract_strided_slice %8 {offsets = [0, 24], sizes = [32, 8], strides = [1, 1]} : vector<32x32xf32> to vector<32x8xf32>
    %cst_121 = arith.constant dense<0.000000e+00> : vector<16x32xf32>
    %369 = tpu.matmul %367, %368, %cst_121 {dimension_numbers = #tpu.dot_dimension_numbers<[1], [1], [0], [0], [0, 0, 1, 0], [], []>} : vector<16x8xf32>, vector<32x8xf32>, vector<16x32xf32> -> vector<16x32xf32>
    %370 = arith.addf %333, %369 : vector<16x32xf32>
    %cst_122 = arith.constant 2.000000e+00 : f32
    %371 = vector.broadcast %cst_122 : f32 to vector<1x32xf32>
    %372 = arith.mulf %371, %9 : vector<1x32xf32>
    %373 = vector.broadcast %372 : vector<1x32xf32> to vector<16x32xf32>
    %374 = arith.addf %370, %373 : vector<16x32xf32>
    %c0_123 = arith.constant 0 : index
    %c0_124 = arith.constant 0 : index
    %375 = vector.load %arg10[%c0_123, %c0_124] : memref<16x32xf32, #tpu.memory_space<vmem>>, vector<16x32xf32>
    tpu.vector_store %arg10[%c0_123, %c0_124], %374 {strides = array<i32>} : memref<16x32xf32, #tpu.memory_space<vmem>>, vector<16x32xf32>,
    return
  }
}

</mosaic_0001>

<llo_original>
// kernel: simple_mmca_forward.1
$region0: #{simple_mmca_forward.1}
  #allocation0 [shape = 'u32[]', space=smem, size = 0x4, offset = 0x4, fixed_abs, tag = 'smem constant byte address 0x4 - core index']
  #allocation1 [shape = 'u32[144,128]{1,0:T(1,128)}', space=vmem, size = 0x12000, scoped, tag = 'internal scratch']
  %s0 = inlined_call_operand.vmem [shape: f32[32,32], index: 0, kind: input, shape index: {}]
  %s1 = inlined_call_operand.vmem [shape: f32[16,32], index: 1, kind: input, shape index: {}]
  %s2 = inlined_call_operand.vmem [shape: f32[96,32], index: 2, kind: input, shape index: {}]
  %s3 = inlined_call_operand.vmem [shape: f32[1,96], index: 3, kind: input, shape index: {}]
  %s4 = inlined_call_operand.vmem [shape: f32[32,32], index: 4, kind: input, shape index: {}]
  %s5 = inlined_call_operand.vmem [shape: f32[1,32], index: 5, kind: input, shape index: {}]
  %s6 = inlined_call_operand.vmem [shape: f32[96,32], index: 6, kind: input, shape index: {}]
  %s7 = inlined_call_operand.vmem [shape: f32[1,96], index: 7, kind: input, shape index: {}]
  %s8 = inlined_call_operand.vmem [shape: f32[32,32], index: 8, kind: input, shape index: {}]
  %s9 = inlined_call_operand.vmem [shape: f32[1,32], index: 9, kind: input, shape index: {}]
  %s10 = inlined_call_operand.hbm [shape: f32[16,32], index: 10, kind: output, shape index: {}]
  %s11 = sld [smem:[#allocation0]]
  $region50: #{simple_mmca_forward.1} parent=0
    _
  %s13 = ssub.s32 1, %s11
  %s14 = scalar_select 0, %s13, %s11
  $region1: #{simple_mmca_forward.1} parent=0
    #allocation2 [shape = 'u8[8192]{0}', space=vmem, size = 0x2000, scoped, tag = 'output window, operand 0, single buffered']
    #allocation3 [shape = 's32[1]{0}', space=sflag, size = 0x4, scoped, tag = 'scoped memory for simple_mmca_forward.1']
    %15 = vsyncpa [#allocation3], 0
    // Predicated region
    $region2: #{simple_mmca_forward.1} parent=1 // pred_check
      _
    $region3: #{simple_mmca_forward.1} parent=1 // pred_check_branch
      %17 = sbr.rel (0) target = $region5
    $region4: #{simple_mmca_forward.1} parent=1 // pred_region
      _
    $region5: #{simple_mmca_forward.1} parent=1 // pred_fallthru
      _
    // Predicated region
    $region6: #{simple_mmca_forward.1} parent=1 // pred_check
      _
    $region7: #{simple_mmca_forward.1} parent=1 // pred_check_branch
      %19 = sbr.rel (0) target = $region9
    $region8: #{simple_mmca_forward.1} parent=1 // pred_region
      _
    $region9: #{simple_mmca_forward.1} parent=1 // pred_fallthru
      _
    // Predicated region
    $region10: #{simple_mmca_forward.1} parent=1 // pred_check
      _
    $region11: #{simple_mmca_forward.1} parent=1 // pred_check_branch
      %21 = sbr.rel (0) target = $region13
    $region12: #{simple_mmca_forward.1} parent=1 // pred_region
      _
    $region13: #{simple_mmca_forward.1} parent=1 // pred_fallthru
      _
    // Predicated region
    $region14: #{simple_mmca_forward.1} parent=1 // pred_check
      _
    $region15: #{simple_mmca_forward.1} parent=1 // pred_check_branch
      %23 = sbr.rel (0) target = $region17
    $region16: #{simple_mmca_forward.1} parent=1 // pred_region
      _
    $region17: #{simple_mmca_forward.1} parent=1 // pred_fallthru
      _
    // Predicated region
    $region18: #{simple_mmca_forward.1} parent=1 // pred_check
      _
    $region19: #{simple_mmca_forward.1} parent=1 // pred_check_branch
      %25 = sbr.rel (0) target = $region21
    $region20: #{simple_mmca_forward.1} parent=1 // pred_region
      _
    $region21: #{simple_mmca_forward.1} parent=1 // pred_fallthru
      _
    // Predicated region
    $region22: #{simple_mmca_forward.1} parent=1 // pred_check
      _
    $region23: #{simple_mmca_forward.1} parent=1 // pred_check_branch
      %27 = sbr.rel (0) target = $region25
    $region24: #{simple_mmca_forward.1} parent=1 // pred_region
      _
    $region25: #{simple_mmca_forward.1} parent=1 // pred_fallthru
      _
    // Predicated region
    $region26: #{simple_mmca_forward.1} parent=1 // pred_check
      _
    $region27: #{simple_mmca_forward.1} parent=1 // pred_check_branch
      %29 = sbr.rel (0) target = $region29
    $region28: #{simple_mmca_forward.1} parent=1 // pred_region
      _
    $region29: #{simple_mmca_forward.1} parent=1 // pred_fallthru
      _
    // Predicated region
    $region30: #{simple_mmca_forward.1} parent=1 // pred_check
      _
    $region31: #{simple_mmca_forward.1} parent=1 // pred_check_branch
      %31 = sbr.rel (0) target = $region33
    $region32: #{simple_mmca_forward.1} parent=1 // pred_region
      _
    $region33: #{simple_mmca_forward.1} parent=1 // pred_fallthru
      _
    // Predicated region
    $region34: #{simple_mmca_forward.1} parent=1 // pred_check
      _
    $region35: #{simple_mmca_forward.1} parent=1 // pred_check_branch
      %33 = sbr.rel (0) target = $region37
    $region36: #{simple_mmca_forward.1} parent=1 // pred_region
      _
    $region37: #{simple_mmca_forward.1} parent=1 // pred_fallthru
      _
    // Predicated region
    $region38: #{simple_mmca_forward.1} parent=1 // pred_check
      _
    $region39: #{simple_mmca_forward.1} parent=1 // pred_check_branch
      %35 = sbr.rel (0) target = $region41
    $region40: #{simple_mmca_forward.1} parent=1 // pred_region
      _
    $region41: #{simple_mmca_forward.1} parent=1 // pred_fallthru
      _
    %v36 = vld [vmem:[%s0] sm:$0xff]
    %v37 = vld [vmem:[%s0 + $0x8] sm:$0xff]
    %v38 = vld [vmem:[%s0 + $0x10] sm:$0xff]
    %v39 = vld [vmem:[%s0 + $0x18] sm:$0xff]
    %v40 = vld [vmem:[%s1] sm:$0xff]
    %v41 = vld [vmem:[%s1 + $0x8] sm:$0xff]
    %v42 = vld [vmem:[%s2] sm:$0xff]
    %v43 = vld [vmem:[%s2 + $0x8] sm:$0xff]
    %v44 = vld [vmem:[%s2 + $0x10] sm:$0xff]
    %v45 = vld [vmem:[%s2 + $0x18] sm:$0xff]
    %v46 = vld [vmem:[%s2 + $0x20] sm:$0xff]
    %v47 = vld [vmem:[%s2 + $0x28] sm:$0xff]
    %v48 = vld [vmem:[%s2 + $0x30] sm:$0xff]
    %v49 = vld [vmem:[%s2 + $0x38] sm:$0xff]
    %v50 = vld [vmem:[%s2 + $0x40] sm:$0xff]
    %v51 = vld [vmem:[%s2 + $0x48] sm:$0xff]
    %v52 = vld [vmem:[%s2 + $0x50] sm:$0xff]
    %v53 = vld [vmem:[%s2 + $0x58] sm:$0xff]
    %v54 = vld [vmem:[%s3] sm:$0x1]
    %v55 = vld [vmem:[%s4] sm:$0xff]
    %v56 = vld [vmem:[%s4 + $0x8] sm:$0xff]
    %v57 = vld [vmem:[%s4 + $0x10] sm:$0xff]
    %v58 = vld [vmem:[%s4 + $0x18] sm:$0xff]
    %v59 = vld [vmem:[%s5] sm:$0x1]
    %v60 = vld [vmem:[%s6] sm:$0xff]
    %v61 = vld [vmem:[%s6 + $0x8] sm:$0xff]
    %v62 = vld [vmem:[%s6 + $0x10] sm:$0xff]
    %v63 = vld [vmem:[%s6 + $0x18] sm:$0xff]
    %v64 = vld [vmem:[%s6 + $0x20] sm:$0xff]
    %v65 = vld [vmem:[%s6 + $0x28] sm:$0xff]
    %v66 = vld [vmem:[%s6 + $0x30] sm:$0xff]
    %v67 = vld [vmem:[%s6 + $0x38] sm:$0xff]
    %v68 = vld [vmem:[%s6 + $0x40] sm:$0xff]
    %v69 = vld [vmem:[%s6 + $0x48] sm:$0xff]
    %v70 = vld [vmem:[%s6 + $0x50] sm:$0xff]
    %v71 = vld [vmem:[%s6 + $0x58] sm:$0xff]
    %v72 = vld [vmem:[%s7] sm:$0x1]
    %v73 = vld [vmem:[%s8] sm:$0xff]
    %v74 = vld [vmem:[%s8 + $0x8] sm:$0xff]
    %v75 = vld [vmem:[%s8 + $0x10] sm:$0xff]
    %v76 = vld [vmem:[%s8 + $0x18] sm:$0xff]
    %v77 = vld [vmem:[%s9] sm:$0x1]
    %v79 = vlaneseq
    %v80 = vshrl.u32 %v79, 7
    %v81 = vsub.s32 0, %v80
    %v82 = vrot.slane %v54, %v81
    %vm84 = vcmask 261120
    %v86 = vsel %vm84, %v36, 0
    %v89 = vsel %vm84, %v37, 0
    %v92 = vsel %vm84, %v38, 0
    %v95 = vsel %vm84, %v39, 0
    %v98 = vsel %vm84, %v42, 0
    %v101 = vsel %vm84, %v43, 0
    %v104 = vsel %vm84, %v44, 0
    %v107 = vsel %vm84, %v45, 0
    %v110 = vsel %vm84, %v46, 0
    %v113 = vsel %vm84, %v47, 0
    %v116 = vsel %vm84, %v48, 0
    %v119 = vsel %vm84, %v49, 0
    %v122 = vsel %vm84, %v50, 0
    %v125 = vsel %vm84, %v51, 0
    %v128 = vsel %vm84, %v52, 0
    %v131 = vsel %vm84, %v53, 0
    %133 = vmatprep.subr.mxu0 0.0
    %134 = vmatpush1.xpose.msra.mxu0 %v98
    %135 = vmatprep.subr.mxu0 0.0
    %136 = vmatpush1.xpose.msra.mxu0 %v101
    %137 = vmatprep.subr.mxu0 0.0
    %138 = vmatpush1.xpose.msra.mxu0 %v104
    %139 = vmatprep.subr.mxu0 0.0
    %140 = vmatpush1.xpose.msra.mxu0 %v107
    %141 = vmatprep.subr.mxu0 0.0
    %142 = vmatpush1.xpose.msra.mxu0 %v110
    %143 = vmatprep.subr.mxu0 0.0
    %144 = vmatpush1.xpose.msra.mxu0 %v113
    %145 = vmatprep.subr.mxu0 0.0
    %146 = vmatpush1.xpose.msra.mxu0 %v116
    %147 = vmatprep.subr.mxu0 0.0
    %148 = vmatpush1.xpose.msra.mxu0 %v119
    %149 = vmatprep.subr.mxu0 0.0
    %150 = vmatpush1.xpose.msra.mxu0 %v122
    %151 = vmatprep.subr.mxu0 0.0
    %152 = vmatpush1.xpose.msra.mxu0 %v125
    %153 = vmatprep.subr.mxu0 0.0
    %154 = vmatpush1.xpose.msra.mxu0 %v128
    %155 = vmatprep.subr.mxu0 0.0
    %156 = vmatpush1.xpose.msra.mxu0 %v131
    %157 = vmatprep.subr.mxu0 0.0
    %158 = vmatpush1.xpose.msra.mxu0 0.0
    %159 = vmatprep.subr.mxu0 0.0
    %160 = vmatpush1.xpose.msra.mxu0 0.0
    %161 = vmatprep.subr.mxu0 0.0
    %162 = vmatpush1.xpose.msra.mxu0 0.0
    %163 = vmatprep.subr.mxu0 0.0
    %164 = vmatpush1.xpose.msra.mxu0 0.0
    %165 = vmatprep.subr.mxu0 0.0
    %166 = vmatpush1.xpose.msra.mxu0 0.0
    %167 = vmatprep.subr.mxu0 0.0
    %168 = vmatpush1.xpose.msra.mxu0 0.0
    %169 = vmatprep.subr.mxu0 0.0
    %170 = vmatpush1.xpose.msra.mxu0 0.0
    %171 = vmatprep.subr.mxu0 0.0
    %172 = vmatpush1.xpose.msra.mxu0 0.0
    %173 = vmatprep.subr.mxu0 0.0
    %174 = vmatpush1.xpose.msra.mxu0 0.0
    %175 = vmatprep.subr.mxu0 0.0
    %176 = vmatpush1.xpose.msra.mxu0 0.0
    %177 = vmatprep.subr.mxu0 0.0
    %178 = vmatpush1.xpose.msra.mxu0 0.0
    %179 = vmatprep.subr.mxu0 0.0
    %180 = vmatpush1.xpose.msra.mxu0 0.0
    %181 = vmatprep.subr.mxu0 0.0
    %182 = vmatpush1.xpose.msra.mxu0 0.0
    %183 = vmatprep.subr.mxu0 0.0
    %184 = vmatpush1.xpose.msra.mxu0 0.0
    %185 = vmatprep.subr.mxu0 0.0
    %186 = vmatpush1.xpose.msra.mxu0 0.0
    %187 = vmatprep.subr.mxu0 0.0
    %188 = vmatpush1.xpose.msra.mxu0 0.0
    %189 = vmatprep.subr.mxu0 0.0
    %190 = vmatpush1.xpose.msra.mxu0 0.0
    %191 = vmatprep.subr.mxu0 0.0
    %192 = vmatpush1.xpose.msra.mxu0 0.0
    %193 = vmatprep.subr.mxu0 0.0
    %194 = vmatpush1.xpose.msra.mxu0 0.0
    %195 = vmatprep.subr.mxu0 0.0
    %196 = vmatpush1.xpose.msra.mxu0 0.0
    %197 = vmatprep.mubr.f32.mxu0 0.0
    %198 = vmatmul.mubr.f32.gmra.mrb[0].mxu0 %v86
    %v199 = vpop.f32.mrb[0].mxu0
    %v200 = vadd.f32 %v82, %v199
    %v201 = vpop.f32.mrb[0].mxu0
    %202 = vmatprep.mubr.f32.mxu0 0.0
    %203 = vmatmul.mubr.f32.gmra.mrb[0].mxu0 %v89
    %v204 = vpop.f32.mrb[0].mxu0
    %v205 = vadd.f32 %v82, %v204
    %v206 = vpop.f32.mrb[0].mxu0
    %207 = vmatprep.mubr.f32.mxu0 0.0
    %208 = vmatmul.mubr.f32.gmra.mrb[0].mxu0 %v92
    %v209 = vpop.f32.mrb[0].mxu0
    %v210 = vadd.f32 %v82, %v209
    %v211 = vpop.f32.mrb[0].mxu0
    %212 = vmatprep.mubr.f32.mxu0 0.0
    %213 = vmatmul.mubr.f32.gmra.mrb[0].mxu0 %v95
    %v214 = vpop.f32.mrb[0].mxu0
    %v215 = vadd.f32 %v82, %v214
    %v216 = vpop.f32.mrb[0].mxu0
    %217 = vdwg.mxu0
    %v218 = vmul.f32 %v200, 0.35355338
    %v219 = vmul.f32 %v205, 0.35355338
    %v220 = vmul.f32 %v210, 0.35355338
    %v221 = vmul.f32 %v215, 0.35355338
    %v222 = vlaneseq
    %v223 = vshrl.u32 %v222, 7
    %v224 = vadd.s32 %v223, 8
    %v225 = vadd.s32 %v223, 16
    %v226 = vadd.s32 %v223, 24
    %v227 = vlaneseq
    %v228 = vand.u32 %v227, 127
    %vm229 = vcmp.lt.s32.totalorder %v223, 0
    %v230 = vsub.s32 0, %v223
    %v231 = vsel %vm229, %v230, %v223
    %v232 = vshrl.u32 %v231, 1
    %v233 = vand.u32 %v231, 1
    %v234 = vsub.s32 0, %v233
    %v235 = vsel %vm229, %v234, %v233
    %vm236 = vcmp.lt.s32.totalorder %v224, 0
    %v237 = vsub.s32 0, %v224
    %v238 = vsel %vm236, %v237, %v224
    %v239 = vshrl.u32 %v238, 1
    %v240 = vand.u32 %v238, 1
    %v241 = vsub.s32 0, %v240
    %v242 = vsel %vm236, %v241, %v240
    %vm243 = vcmp.lt.s32.totalorder %v225, 0
    %v244 = vsub.s32 0, %v225
    %v245 = vsel %vm243, %v244, %v225
    %v246 = vshrl.u32 %v245, 1
    %v247 = vand.u32 %v245, 1
    %v248 = vsub.s32 0, %v247
    %v249 = vsel %vm243, %v248, %v247
    %vm250 = vcmp.lt.s32.totalorder %v226, 0
    %v251 = vsub.s32 0, %v226
    %v252 = vsel %vm250, %v251, %v226
    %v253 = vshrl.u32 %v252, 1
    %v254 = vand.u32 %v252, 1
    %v255 = vsub.s32 0, %v254
    %v256 = vsel %vm250, %v255, %v254
    %vm257 = vcmp.ne.s32.totalorder %v235, 0
    %vm258 = vcmp.ne.s32.totalorder %v242, 0
    %vm259 = vcmp.ne.s32.totalorder %v249, 0
    %vm260 = vcmp.ne.s32.totalorder %v256, 0
    %vm261 = vcmp.lt.s32.totalorder %v235, 0
    %vm262 = vcmp.lt.s32.totalorder %v242, 0
    %vm263 = vcmp.lt.s32.totalorder %v249, 0
    %vm264 = vcmp.lt.s32.totalorder %v256, 0
    %vm265 = vmand %vm261, %vm257
    %vm266 = vmand %vm262, %vm258
    %vm267 = vmand %vm263, %vm259
    %vm268 = vmand %vm264, %vm260
    %v269 = vadd.s32 %v235, 2
    %v270 = vadd.s32 %v242, 2
    %v271 = vadd.s32 %v249, 2
    %v272 = vadd.s32 %v256, 2
    %v273 = vsel %vm265, %v269, %v235
    %v274 = vsel %vm266, %v270, %v242
    %v275 = vsel %vm267, %v271, %v249
    %v276 = vsel %vm268, %v272, %v256
    %vm277 = vcmp.lt.s32.totalorder %v228, 0
    %v278 = vsub.s32 0, %v228
    %v279 = vsel %vm277, %v278, %v228
    %v280 = vshrl.u32 %v279, 1
    %v281 = vand.u32 %v279, 1
    %v282 = vsub.s32 0, %v281
    %v283 = vsel %vm277, %v282, %v281
    %vm284 = vcmp.ne.s32.totalorder %v283, 0
    %vm285 = vcmp.lt.s32.totalorder %v283, 0
    %vm286 = vmand %vm285, %vm284
    %v287 = vadd.s32 %v283, 2
    %v288 = vsel %vm286, %v287, %v283
    %vm289 = vcmp.eq.s32.totalorder %v273, %v288
    %vm290 = vcmp.eq.s32.totalorder %v274, %v288
    %vm291 = vcmp.eq.s32.totalorder %v275, %v288
    %vm292 = vcmp.eq.s32.totalorder %v276, %v288
    %297 = vrot.lane.b32.xlu0 %v200, 96
    %v298 = vpop.permute.xlu0 %297
    %299 = vrot.lane.b32.xlu0 %v205, 96
    %v300 = vpop.permute.xlu0 %299
    %301 = vrot.lane.b32.xlu0 %v210, 96
    %v302 = vpop.permute.xlu0 %301
    %303 = vrot.lane.b32.xlu0 %v215, 96
    %v304 = vpop.permute.xlu0 %303
    %vm305 = vcmask 64512
    %v307 = vsel %vm305, %v218, 0
    %v310 = vsel %vm305, %v219, 0
    %v313 = vsel %vm305, %v220, 0
    %v316 = vsel %vm305, %v221, 0
    %v318 = vsel %vm305, %v298, 0
    %v320 = vsel %vm305, %v300, 0
    %v322 = vsel %vm305, %v302, 0
    %v324 = vsel %vm305, %v304, 0
    %326 = vmatprep.subr.mxu0 0.0
    %327 = vmatpush1.xpose.msra.mxu0 %v318
    %328 = vmatprep.subr.mxu0 0.0
    %329 = vmatpush1.xpose.msra.mxu0 %v320
    %330 = vmatprep.subr.mxu0 0.0
    %331 = vmatpush1.xpose.msra.mxu0 %v322
    %332 = vmatprep.subr.mxu0 0.0
    %333 = vmatpush1.xpose.msra.mxu0 %v324
    %334 = vmatprep.subr.mxu0 0.0
    %335 = vmatpush1.xpose.msra.mxu0 0.0
    %336 = vmatprep.subr.mxu0 0.0
    %337 = vmatpush1.xpose.msra.mxu0 0.0
    %338 = vmatprep.subr.mxu0 0.0
    %339 = vmatpush1.xpose.msra.mxu0 0.0
    %340 = vmatprep.subr.mxu0 0.0
    %341 = vmatpush1.xpose.msra.mxu0 0.0
    %342 = vmatprep.subr.mxu0 0.0
    %343 = vmatpush1.xpose.msra.mxu0 0.0
    %344 = vmatprep.subr.mxu0 0.0
    %345 = vmatpush1.xpose.msra.mxu0 0.0
    %346 = vmatprep.subr.mxu0 0.0
    %347 = vmatpush1.xpose.msra.mxu0 0.0
    %348 = vmatprep.subr.mxu0 0.0
    %349 = vmatpush1.xpose.msra.mxu0 0.0
    %350 = vmatprep.subr.mxu0 0.0
    %351 = vmatpush1.xpose.msra.mxu0 0.0
    %352 = vmatprep.subr.mxu0 0.0
    %353 = vmatpush1.xpose.msra.mxu0 0.0
    %354 = vmatprep.subr.mxu0 0.0
    %355 = vmatpush1.xpose.msra.mxu0 0.0
    %356 = vmatprep.subr.mxu0 0.0
    %357 = vmatpush1.xpose.msra.mxu0 0.0
    %358 = vmatprep.subr.mxu0 0.0
    %359 = vmatpush1.xpose.msra.mxu0 0.0
    %360 = vmatprep.subr.mxu0 0.0
    %361 = vmatpush1.xpose.msra.mxu0 0.0
    %362 = vmatprep.subr.mxu0 0.0
    %363 = vmatpush1.xpose.msra.mxu0 0.0
    %364 = vmatprep.subr.mxu0 0.0
    %365 = vmatpush1.xpose.msra.mxu0 0.0
    %366 = vmatprep.subr.mxu0 0.0
    %367 = vmatpush1.xpose.msra.mxu0 0.0
    %368 = vmatprep.subr.mxu0 0.0
    %369 = vmatpush1.xpose.msra.mxu0 0.0
    %370 = vmatprep.subr.mxu0 0.0
    %371 = vmatpush1.xpose.msra.mxu0 0.0
    %372 = vmatprep.subr.mxu0 0.0
    %373 = vmatpush1.xpose.msra.mxu0 0.0
    %374 = vmatprep.subr.mxu0 0.0
    %375 = vmatpush1.xpose.msra.mxu0 0.0
    %376 = vmatprep.subr.mxu0 0.0
    %377 = vmatpush1.xpose.msra.mxu0 0.0
    %378 = vmatprep.subr.mxu0 0.0
    %379 = vmatpush1.xpose.msra.mxu0 0.0
    %380 = vmatprep.subr.mxu0 0.0
    %381 = vmatpush1.xpose.msra.mxu0 0.0
    %382 = vmatprep.subr.mxu0 0.0
    %383 = vmatpush1.xpose.msra.mxu0 0.0
    %384 = vmatprep.subr.mxu0 0.0
    %385 = vmatpush1.xpose.msra.mxu0 0.0
    %386 = vmatprep.subr.mxu0 0.0
    %387 = vmatpush1.xpose.msra.mxu0 0.0
    %388 = vmatprep.subr.mxu0 0.0
    %389 = vmatpush1.xpose.msra.mxu0 0.0
    %390 = vmatprep.mubr.f32.mxu0 0.0
    %391 = vmatmul.mubr.f32.gmra.mrb[0].mxu0 %v307
    %v392 = vpop.f32.mrb[0].mxu0
    %v393 = vadd.f32 0.0, %v392
    %v394 = vpop.f32.mrb[0].mxu0
    %395 = vmatprep.mubr.f32.mxu0 0.0
    %396 = vmatmul.mubr.f32.gmra.mrb[0].mxu0 %v310
    %v397 = vpop.f32.mrb[0].mxu0
    %v398 = vadd.f32 0.0, %v397
    %v399 = vpop.f32.mrb[0].mxu0
    %400 = vmatprep.mubr.f32.mxu0 0.0
    %401 = vmatmul.mubr.f32.gmra.mrb[0].mxu0 %v313
    %v402 = vpop.f32.mrb[0].mxu0
    %v403 = vadd.f32 0.0, %v402
    %v404 = vpop.f32.mrb[0].mxu0
    %405 = vmatprep.mubr.f32.mxu0 0.0
    %406 = vmatmul.mubr.f32.gmra.mrb[0].mxu0 %v316
    %v407 = vpop.f32.mrb[0].mxu0
    %v408 = vadd.f32 0.0, %v407
    %v409 = vpop.f32.mrb[0].mxu0
    %410 = vdwg.mxu0
    %v411 = vsel %vm289, %v393, -1e+30
    %v412 = vsel %vm290, %v398, -1e+30
    %v413 = vsel %vm291, %v403, -1e+30
    %v414 = vsel %vm292, %v408, -1e+30
    %v415 = vsel %vm84, %v411, -inf
    %416 = vmax.xlane.f32.xlu0 %v415
    %v417 = vpop.xlane.xlu0 %416
    %v418 = vsel %vm84, %v412, -inf
    %419 = vmax.xlane.f32.xlu0 %v418
    %v420 = vpop.xlane.xlu0 %419
    %v421 = vsel %vm84, %v413, -inf
    %422 = vmax.xlane.f32.xlu0 %v421
    %v423 = vpop.xlane.xlu0 %422
    %v424 = vsel %vm84, %v414, -inf
    %425 = vmax.xlane.f32.xlu0 %v424
    %v426 = vpop.xlane.xlu0 %425
    %v427 = vsub.f32 %v411, %v417
    %v428 = vsub.f32 %v412, %v420
    %v429 = vsub.f32 %v413, %v423
    %v430 = vsub.f32 %v414, %v426
    %v431 = vmul.f32 %v427, 1.442695
    %v432 = vpow.pop %v431
    %v433 = vmul.f32 %v428, 1.442695
    %v434 = vpow.pop %v433
    %v435 = vmul.f32 %v429, 1.442695
    %v436 = vpow.pop %v435
    %v437 = vmul.f32 %v430, 1.442695
    %v438 = vpow.pop %v437
    %v439 = vsel %vm84, %v432, 0.0
    %440 = vadd.xlane.f32.xlu0 %v439
    %v441 = vpop.xlane.xlu0 %440
    %v442 = vsel %vm84, %v434, 0.0
    %443 = vadd.xlane.f32.xlu0 %v442
    %v444 = vpop.xlane.xlu0 %443
    %v445 = vsel %vm84, %v436, 0.0
    %446 = vadd.xlane.f32.xlu0 %v445
    %v447 = vpop.xlane.xlu0 %446
    %v448 = vsel %vm84, %v438, 0.0
    %449 = vadd.xlane.f32.xlu0 %v448
    %v450 = vpop.xlane.xlu0 %449
    %v451 = vrcp.pop %v441
    %v452 = vrcp.pop %v444
    %v453 = vrcp.pop %v447
    %v454 = vrcp.pop %v450
    %v455 = vmul.f32 %v432, %v451
    %v456 = vmul.f32 %v434, %v452
    %v457 = vmul.f32 %v436, %v453
    %v458 = vmul.f32 %v438, %v454
    %459 = vrot.lane.b32.xlu0 %v200, 64
    %v460 = vpop.permute.xlu0 %459
    %461 = vrot.lane.b32.xlu0 %v205, 64
    %v462 = vpop.permute.xlu0 %461
    %463 = vrot.lane.b32.xlu0 %v210, 64
    %v464 = vpop.permute.xlu0 %463
    %465 = vrot.lane.b32.xlu0 %v215, 64
    %v466 = vpop.permute.xlu0 %465
    %v472 = vsel %vm84, %v455, 0
    %v475 = vsel %vm84, %v456, 0
    %v478 = vsel %vm84, %v457, 0
    %v481 = vsel %vm84, %v458, 0
    %483 = vmatprep.subr.mxu0 0.0
    %484 = vmatpush1.msra.mxu0 %v460
    %485 = vmatprep.subr.mxu0 0.0
    %486 = vmatpush1.msra.mxu0 %v462
    %487 = vmatprep.subr.mxu0 0.0
    %488 = vmatpush1.msra.mxu0 %v464
    %489 = vmatprep.subr.mxu0 0.0
    %490 = vmatpush1.msra.mxu0 %v466
    %491 = vmatprep.subr.mxu0 0.0
    %492 = vmatpush1.msra.mxu0 0.0
    %493 = vmatprep.subr.mxu0 0.0
    %494 = vmatpush1.msra.mxu0 0.0
    %495 = vmatprep.subr.mxu0 0.0
    %496 = vmatpush1.msra.mxu0 0.0
    %497 = vmatprep.subr.mxu0 0.0
    %498 = vmatpush1.msra.mxu0 0.0
    %499 = vmatprep.subr.mxu0 0.0
    %500 = vmatpush1.msra.mxu0 0.0
    %501 = vmatprep.subr.mxu0 0.0
    %502 = vmatpush1.msra.mxu0 0.0
    %503 = vmatprep.subr.mxu0 0.0
    %504 = vmatpush1.msra.mxu0 0.0
    %505 = vmatprep.subr.mxu0 0.0
    %506 = vmatpush1.msra.mxu0 0.0
    %507 = vmatprep.subr.mxu0 0.0
    %508 = vmatpush1.msra.mxu0 0.0
    %509 = vmatprep.subr.mxu0 0.0
    %510 = vmatpush1.msra.mxu0 0.0
    %511 = vmatprep.subr.mxu0 0.0
    %512 = vmatpush1.msra.mxu0 0.0
    %513 = vmatprep.subr.mxu0 0.0
    %514 = vmatpush1.msra.mxu0 0.0
    %515 = vmatprep.subr.mxu0 0.0
    %516 = vmatpush1.msra.mxu0 0.0
    %517 = vmatprep.subr.mxu0 0.0
    %518 = vmatpush1.msra.mxu0 0.0
    %519 = vmatprep.subr.mxu0 0.0
    %520 = vmatpush1.msra.mxu0 0.0
    %521 = vmatprep.subr.mxu0 0.0
    %522 = vmatpush1.msra.mxu0 0.0
    %523 = vmatprep.subr.mxu0 0.0
    %524 = vmatpush1.msra.mxu0 0.0
    %525 = vmatprep.subr.mxu0 0.0
    %526 = vmatpush1.msra.mxu0 0.0
    %527 = vmatprep.subr.mxu0 0.0
    %528 = vmatpush1.msra.mxu0 0.0
    %529 = vmatprep.subr.mxu0 0.0
    %530 = vmatpush1.msra.mxu0 0.0
    %531 = vmatprep.subr.mxu0 0.0
    %532 = vmatpush1.msra.mxu0 0.0
    %533 = vmatprep.subr.mxu0 0.0
    %534 = vmatpush1.msra.mxu0 0.0
    %535 = vmatprep.subr.mxu0 0.0
    %536 = vmatpush1.msra.mxu0 0.0
    %537 = vmatprep.subr.mxu0 0.0
    %538 = vmatpush1.msra.mxu0 0.0
    %539 = vmatprep.subr.mxu0 0.0
    %540 = vmatpush1.msra.mxu0 0.0
    %541 = vmatprep.subr.mxu0 0.0
    %542 = vmatpush1.msra.mxu0 0.0
    %543 = vmatprep.subr.mxu0 0.0
    %544 = vmatpush1.msra.mxu0 0.0
    %545 = vmatprep.subr.mxu0 0.0
    %546 = vmatpush1.msra.mxu0 0.0
    %547 = vmatprep.mubr.f32.mxu0 0.0
    %548 = vmatmul.mubr.f32.gmra.mrb[0].mxu0 %v472
    %v549 = vpop.f32.mrb[0].mxu0
    %v550 = vadd.f32 0.0, %v549
    %v551 = vpop.f32.mrb[0].mxu0
    %552 = vmatprep.mubr.f32.mxu0 0.0
    %553 = vmatmul.mubr.f32.gmra.mrb[0].mxu0 %v475
    %v554 = vpop.f32.mrb[0].mxu0
    %v555 = vadd.f32 0.0, %v554
    %v556 = vpop.f32.mrb[0].mxu0
    %557 = vmatprep.mubr.f32.mxu0 0.0
    %558 = vmatmul.mubr.f32.gmra.mrb[0].mxu0 %v478
    %v559 = vpop.f32.mrb[0].mxu0
    %v560 = vadd.f32 0.0, %v559
    %v561 = vpop.f32.mrb[0].mxu0
    %562 = vmatprep.mubr.f32.mxu0 0.0
    %563 = vmatmul.mubr.f32.gmra.mrb[0].mxu0 %v481
    %v564 = vpop.f32.mrb[0].mxu0
    %v565 = vadd.f32 0.0, %v564
    %v566 = vpop.f32.mrb[0].mxu0
    %567 = vdwg.mxu0
    %568 = vrot.lane.b32.xlu0 %v218, 120
    %v569 = vpop.permute.xlu0 %568
    %570 = vrot.lane.b32.xlu0 %v219, 120
    %v571 = vpop.permute.xlu0 %570
    %572 = vrot.lane.b32.xlu0 %v220, 120
    %v573 = vpop.permute.xlu0 %572
    %574 = vrot.lane.b32.xlu0 %v221, 120
    %v575 = vpop.permute.xlu0 %574
    %576 = vrot.lane.b32.xlu0 %v200, 88
    %v577 = vpop.permute.xlu0 %576
    %578 = vrot.lane.b32.xlu0 %v205, 88
    %v579 = vpop.permute.xlu0 %578
    %580 = vrot.lane.b32.xlu0 %v210, 88
    %v581 = vpop.permute.xlu0 %580
    %582 = vrot.lane.b32.xlu0 %v215, 88
    %v583 = vpop.permute.xlu0 %582
    %v584 = vsel %vm305, %v569, 0
    %v586 = vsel %vm305, %v571, 0
    %v588 = vsel %vm305, %v573, 0
    %v590 = vsel %vm305, %v575, 0
    %v592 = vsel %vm305, %v577, 0
    %v594 = vsel %vm305, %v579, 0
    %v596 = vsel %vm305, %v581, 0
    %v598 = vsel %vm305, %v583, 0
    %600 = vmatprep.subr.mxu0 0.0
    %601 = vmatpush1.xpose.msra.mxu0 %v592
    %602 = vmatprep.subr.mxu0 0.0
    %603 = vmatpush1.xpose.msra.mxu0 %v594
    %604 = vmatprep.subr.mxu0 0.0
    %605 = vmatpush1.xpose.msra.mxu0 %v596
    %606 = vmatprep.subr.mxu0 0.0
    %607 = vmatpush1.xpose.msra.mxu0 %v598
    %608 = vmatprep.subr.mxu0 0.0
    %609 = vmatpush1.xpose.msra.mxu0 0.0
    %610 = vmatprep.subr.mxu0 0.0
    %611 = vmatpush1.xpose.msra.mxu0 0.0
    %612 = vmatprep.subr.mxu0 0.0
    %613 = vmatpush1.xpose.msra.mxu0 0.0
    %614 = vmatprep.subr.mxu0 0.0
    %615 = vmatpush1.xpose.msra.mxu0 0.0
    %616 = vmatprep.subr.mxu0 0.0
    %617 = vmatpush1.xpose.msra.mxu0 0.0
    %618 = vmatprep.subr.mxu0 0.0
    %619 = vmatpush1.xpose.msra.mxu0 0.0
    %620 = vmatprep.subr.mxu0 0.0
    %621 = vmatpush1.xpose.msra.mxu0 0.0
    %622 = vmatprep.subr.mxu0 0.0
    %623 = vmatpush1.xpose.msra.mxu0 0.0
    %624 = vmatprep.subr.mxu0 0.0
    %625 = vmatpush1.xpose.msra.mxu0 0.0
    %626 = vmatprep.subr.mxu0 0.0
    %627 = vmatpush1.xpose.msra.mxu0 0.0
    %628 = vmatprep.subr.mxu0 0.0
    %629 = vmatpush1.xpose.msra.mxu0 0.0
    %630 = vmatprep.subr.mxu0 0.0
    %631 = vmatpush1.xpose.msra.mxu0 0.0
    %632 = vmatprep.subr.mxu0 0.0
    %633 = vmatpush1.xpose.msra.mxu0 0.0
    %634 = vmatprep.subr.mxu0 0.0
    %635 = vmatpush1.xpose.msra.mxu0 0.0
    %636 = vmatprep.subr.mxu0 0.0
    %637 = vmatpush1.xpose.msra.mxu0 0.0
    %638 = vmatprep.subr.mxu0 0.0
    %639 = vmatpush1.xpose.msra.mxu0 0.0
    %640 = vmatprep.subr.mxu0 0.0
    %641 = vmatpush1.xpose.msra.mxu0 0.0
    %642 = vmatprep.subr.mxu0 0.0
    %643 = vmatpush1.xpose.msra.mxu0 0.0
    %644 = vmatprep.subr.mxu0 0.0
    %645 = vmatpush1.xpose.msra.mxu0 0.0
    %646 = vmatprep.subr.mxu0 0.0
    %647 = vmatpush1.xpose.msra.mxu0 0.0
    %648 = vmatprep.subr.mxu0 0.0
    %649 = vmatpush1.xpose.msra.mxu0 0.0
    %650 = vmatprep.subr.mxu0 0.0
    %651 = vmatpush1.xpose.msra.mxu0 0.0
    %652 = vmatprep.subr.mxu0 0.0
    %653 = vmatpush1.xpose.msra.mxu0 0.0
    %654 = vmatprep.subr.mxu0 0.0
    %655 = vmatpush1.xpose.msra.mxu0 0.0
    %656 = vmatprep.subr.mxu0 0.0
    %657 = vmatpush1.xpose.msra.mxu0 0.0
    %658 = vmatprep.subr.mxu0 0.0
    %659 = vmatpush1.xpose.msra.mxu0 0.0
    %660 = vmatprep.subr.mxu0 0.0
    %661 = vmatpush1.xpose.msra.mxu0 0.0
    %662 = vmatprep.subr.mxu0 0.0
    %663 = vmatpush1.xpose.msra.mxu0 0.0
    %664 = vmatprep.mubr.f32.mxu0 0.0
    %665 = vmatmul.mubr.f32.gmra.mrb[0].mxu0 %v584
    %v666 = vpop.f32.mrb[0].mxu0
    %v667 = vadd.f32 0.0, %v666
    %v668 = vpop.f32.mrb[0].mxu0
    %669 = vmatprep.mubr.f32.mxu0 0.0
    %670 = vmatmul.mubr.f32.gmra.mrb[0].mxu0 %v586
    %v671 = vpop.f32.mrb[0].mxu0
    %v672 = vadd.f32 0.0, %v671
    %v673 = vpop.f32.mrb[0].mxu0
    %674 = vmatprep.mubr.f32.mxu0 0.0
    %675 = vmatmul.mubr.f32.gmra.mrb[0].mxu0 %v588
    %v676 = vpop.f32.mrb[0].mxu0
    %v677 = vadd.f32 0.0, %v676
    %v678 = vpop.f32.mrb[0].mxu0
    %679 = vmatprep.mubr.f32.mxu0 0.0
    %680 = vmatmul.mubr.f32.gmra.mrb[0].mxu0 %v590
    %v681 = vpop.f32.mrb[0].mxu0
    %v682 = vadd.f32 0.0, %v681
    %v683 = vpop.f32.mrb[0].mxu0
    %684 = vdwg.mxu0
    %v685 = vsel %vm289, %v667, -1e+30
    %v686 = vsel %vm290, %v672, -1e+30
    %v687 = vsel %vm291, %v677, -1e+30
    %v688 = vsel %vm292, %v682, -1e+30
    %v689 = vsel %vm84, %v685, -inf
    %690 = vmax.xlane.f32.xlu0 %v689
    %v691 = vpop.xlane.xlu0 %690
    %v692 = vsel %vm84, %v686, -inf
    %693 = vmax.xlane.f32.xlu0 %v692
    %v694 = vpop.xlane.xlu0 %693
    %v695 = vsel %vm84, %v687, -inf
    %696 = vmax.xlane.f32.xlu0 %v695
    %v697 = vpop.xlane.xlu0 %696
    %v698 = vsel %vm84, %v688, -inf
    %699 = vmax.xlane.f32.xlu0 %v698
    %v700 = vpop.xlane.xlu0 %699
    %v701 = vsub.f32 %v685, %v691
    %v702 = vsub.f32 %v686, %v694
    %v703 = vsub.f32 %v687, %v697
    %v704 = vsub.f32 %v688, %v700
    %v705 = vmul.f32 %v701, 1.442695
    %v706 = vpow.pop %v705
    %v707 = vmul.f32 %v702, 1.442695
    %v708 = vpow.pop %v707
    %v709 = vmul.f32 %v703, 1.442695
    %v710 = vpow.pop %v709
    %v711 = vmul.f32 %v704, 1.442695
    %v712 = vpow.pop %v711
    %v713 = vsel %vm84, %v706, 0.0
    %714 = vadd.xlane.f32.xlu0 %v713
    %v715 = vpop.xlane.xlu0 %714
    %v716 = vsel %vm84, %v708, 0.0
    %717 = vadd.xlane.f32.xlu0 %v716
    %v718 = vpop.xlane.xlu0 %717
    %v719 = vsel %vm84, %v710, 0.0
    %720 = vadd.xlane.f32.xlu0 %v719
    %v721 = vpop.xlane.xlu0 %720
    %v722 = vsel %vm84, %v712, 0.0
    %723 = vadd.xlane.f32.xlu0 %v722
    %v724 = vpop.xlane.xlu0 %723
    %v725 = vrcp.pop %v715
    %v726 = vrcp.pop %v718
    %v727 = vrcp.pop %v721
    %v728 = vrcp.pop %v724
    %v729 = vmul.f32 %v706, %v725
    %v730 = vmul.f32 %v708, %v726
    %v731 = vmul.f32 %v710, %v727
    %v732 = vmul.f32 %v712, %v728
    %733 = vrot.lane.b32.xlu0 %v200, 56
    %v734 = vpop.permute.xlu0 %733
    %735 = vrot.lane.b32.xlu0 %v205, 56
    %v736 = vpop.permute.xlu0 %735
    %737 = vrot.lane.b32.xlu0 %v210, 56
    %v738 = vpop.permute.xlu0 %737
    %739 = vrot.lane.b32.xlu0 %v215, 56
    %v740 = vpop.permute.xlu0 %739
    %v746 = vsel %vm84, %v729, 0
    %v749 = vsel %vm84, %v730, 0
    %v752 = vsel %vm84, %v731, 0
    %v755 = vsel %vm84, %v732, 0
    %757 = vmatprep.subr.mxu0 0.0
    %758 = vmatpush1.msra.mxu0 %v734
    %759 = vmatprep.subr.mxu0 0.0
    %760 = vmatpush1.msra.mxu0 %v736
    %761 = vmatprep.subr.mxu0 0.0
    %762 = vmatpush1.msra.mxu0 %v738
    %763 = vmatprep.subr.mxu0 0.0
    %764 = vmatpush1.msra.mxu0 %v740
    %765 = vmatprep.subr.mxu0 0.0
    %766 = vmatpush1.msra.mxu0 0.0
    %767 = vmatprep.subr.mxu0 0.0
    %768 = vmatpush1.msra.mxu0 0.0
    %769 = vmatprep.subr.mxu0 0.0
    %770 = vmatpush1.msra.mxu0 0.0
    %771 = vmatprep.subr.mxu0 0.0
    %772 = vmatpush1.msra.mxu0 0.0
    %773 = vmatprep.subr.mxu0 0.0
    %774 = vmatpush1.msra.mxu0 0.0
    %775 = vmatprep.subr.mxu0 0.0
    %776 = vmatpush1.msra.mxu0 0.0
    %777 = vmatprep.subr.mxu0 0.0
    %778 = vmatpush1.msra.mxu0 0.0
    %779 = vmatprep.subr.mxu0 0.0
    %780 = vmatpush1.msra.mxu0 0.0
    %781 = vmatprep.subr.mxu0 0.0
    %782 = vmatpush1.msra.mxu0 0.0
    %783 = vmatprep.subr.mxu0 0.0
    %784 = vmatpush1.msra.mxu0 0.0
    %785 = vmatprep.subr.mxu0 0.0
    %786 = vmatpush1.msra.mxu0 0.0
    %787 = vmatprep.subr.mxu0 0.0
    %788 = vmatpush1.msra.mxu0 0.0
    %789 = vmatprep.subr.mxu0 0.0
    %790 = vmatpush1.msra.mxu0 0.0
    %791 = vmatprep.subr.mxu0 0.0
    %792 = vmatpush1.msra.mxu0 0.0
    %793 = vmatprep.subr.mxu0 0.0
    %794 = vmatpush1.msra.mxu0 0.0
    %795 = vmatprep.subr.mxu0 0.0
    %796 = vmatpush1.msra.mxu0 0.0
    %797 = vmatprep.subr.mxu0 0.0
    %798 = vmatpush1.msra.mxu0 0.0
    %799 = vmatprep.subr.mxu0 0.0
    %800 = vmatpush1.msra.mxu0 0.0
    %801 = vmatprep.subr.mxu0 0.0
    %802 = vmatpush1.msra.mxu0 0.0
    %803 = vmatprep.subr.mxu0 0.0
    %804 = vmatpush1.msra.mxu0 0.0
    %805 = vmatprep.subr.mxu0 0.0
    %806 = vmatpush1.msra.mxu0 0.0
    %807 = vmatprep.subr.mxu0 0.0
    %808 = vmatpush1.msra.mxu0 0.0
    %809 = vmatprep.subr.mxu0 0.0
    %810 = vmatpush1.msra.mxu0 0.0
    %811 = vmatprep.subr.mxu0 0.0
    %812 = vmatpush1.msra.mxu0 0.0
    %813 = vmatprep.subr.mxu0 0.0
    %814 = vmatpush1.msra.mxu0 0.0
    %815 = vmatprep.subr.mxu0 0.0
    %816 = vmatpush1.msra.mxu0 0.0
    %817 = vmatprep.subr.mxu0 0.0
    %818 = vmatpush1.msra.mxu0 0.0
    %819 = vmatprep.subr.mxu0 0.0
    %820 = vmatpush1.msra.mxu0 0.0
    %821 = vmatprep.mubr.f32.mxu0 0.0
    %822 = vmatmul.mubr.f32.gmra.mrb[0].mxu0 %v746
    %v823 = vpop.f32.mrb[0].mxu0
    %v824 = vadd.f32 0.0, %v823
    %v825 = vpop.f32.mrb[0].mxu0
    %826 = vmatprep.mubr.f32.mxu0 0.0
    %827 = vmatmul.mubr.f32.gmra.mrb[0].mxu0 %v749
    %v828 = vpop.f32.mrb[0].mxu0
    %v829 = vadd.f32 0.0, %v828
    %v830 = vpop.f32.mrb[0].mxu0
    %831 = vmatprep.mubr.f32.mxu0 0.0
    %832 = vmatmul.mubr.f32.gmra.mrb[0].mxu0 %v752
    %v833 = vpop.f32.mrb[0].mxu0
    %v834 = vadd.f32 0.0, %v833
    %v835 = vpop.f32.mrb[0].mxu0
    %836 = vmatprep.mubr.f32.mxu0 0.0
    %837 = vmatmul.mubr.f32.gmra.mrb[0].mxu0 %v755
    %v838 = vpop.f32.mrb[0].mxu0
    %v839 = vadd.f32 0.0, %v838
    %v840 = vpop.f32.mrb[0].mxu0
    %841 = vdwg.mxu0
    %846 = vrot.lane.b32.xlu0 %v55, 120
    %v847 = vpop.permute.xlu0 %846
    %848 = vrot.lane.b32.xlu0 %v56, 120
    %v849 = vpop.permute.xlu0 %848
    %850 = vrot.lane.b32.xlu0 %v57, 120
    %v851 = vpop.permute.xlu0 %850
    %852 = vrot.lane.b32.xlu0 %v58, 120
    %v853 = vpop.permute.xlu0 %852
    %v855 = vsel %vm305, %v824, 0
    %v858 = vsel %vm305, %v829, 0
    %v861 = vsel %vm305, %v834, 0
    %v864 = vsel %vm305, %v839, 0
    %v866 = vsel %vm305, %v847, 0
    %v868 = vsel %vm305, %v849, 0
    %v870 = vsel %vm305, %v851, 0
    %v872 = vsel %vm305, %v853, 0
    %874 = vmatprep.subr.mxu0 0.0
    %875 = vmatpush1.xpose.msra.mxu0 %v866
    %876 = vmatprep.subr.mxu0 0.0
    %877 = vmatpush1.xpose.msra.mxu0 %v868
    %878 = vmatprep.subr.mxu0 0.0
    %879 = vmatpush1.xpose.msra.mxu0 %v870
    %880 = vmatprep.subr.mxu0 0.0
    %881 = vmatpush1.xpose.msra.mxu0 %v872
    %882 = vmatprep.subr.mxu0 0.0
    %883 = vmatpush1.xpose.msra.mxu0 0.0
    %884 = vmatprep.subr.mxu0 0.0
    %885 = vmatpush1.xpose.msra.mxu0 0.0
    %886 = vmatprep.subr.mxu0 0.0
    %887 = vmatpush1.xpose.msra.mxu0 0.0
    %888 = vmatprep.subr.mxu0 0.0
    %889 = vmatpush1.xpose.msra.mxu0 0.0
    %890 = vmatprep.subr.mxu0 0.0
    %891 = vmatpush1.xpose.msra.mxu0 0.0
    %892 = vmatprep.subr.mxu0 0.0
    %893 = vmatpush1.xpose.msra.mxu0 0.0
    %894 = vmatprep.subr.mxu0 0.0
    %895 = vmatpush1.xpose.msra.mxu0 0.0
    %896 = vmatprep.subr.mxu0 0.0
    %897 = vmatpush1.xpose.msra.mxu0 0.0
    %898 = vmatprep.subr.mxu0 0.0
    %899 = vmatpush1.xpose.msra.mxu0 0.0
    %900 = vmatprep.subr.mxu0 0.0
    %901 = vmatpush1.xpose.msra.mxu0 0.0
    %902 = vmatprep.subr.mxu0 0.0
    %903 = vmatpush1.xpose.msra.mxu0 0.0
    %904 = vmatprep.subr.mxu0 0.0
    %905 = vmatpush1.xpose.msra.mxu0 0.0
    %906 = vmatprep.subr.mxu0 0.0
    %907 = vmatpush1.xpose.msra.mxu0 0.0
    %908 = vmatprep.subr.mxu0 0.0
    %909 = vmatpush1.xpose.msra.mxu0 0.0
    %910 = vmatprep.subr.mxu0 0.0
    %911 = vmatpush1.xpose.msra.mxu0 0.0
    %912 = vmatprep.subr.mxu0 0.0
    %913 = vmatpush1.xpose.msra.mxu0 0.0
    %914 = vmatprep.subr.mxu0 0.0
    %915 = vmatpush1.xpose.msra.mxu0 0.0
    %916 = vmatprep.subr.mxu0 0.0
    %917 = vmatpush1.xpose.msra.mxu0 0.0
    %918 = vmatprep.subr.mxu0 0.0
    %919 = vmatpush1.xpose.msra.mxu0 0.0
    %920 = vmatprep.subr.mxu0 0.0
    %921 = vmatpush1.xpose.msra.mxu0 0.0
    %922 = vmatprep.subr.mxu0 0.0
    %923 = vmatpush1.xpose.msra.mxu0 0.0
    %924 = vmatprep.subr.mxu0 0.0
    %925 = vmatpush1.xpose.msra.mxu0 0.0
    %926 = vmatprep.subr.mxu0 0.0
    %927 = vmatpush1.xpose.msra.mxu0 0.0
    %928 = vmatprep.subr.mxu0 0.0
    %929 = vmatpush1.xpose.msra.mxu0 0.0
    %930 = vmatprep.subr.mxu0 0.0
    %931 = vmatpush1.xpose.msra.mxu0 0.0
    %932 = vmatprep.subr.mxu0 0.0
    %933 = vmatpush1.xpose.msra.mxu0 0.0
    %934 = vmatprep.subr.mxu0 0.0
    %935 = vmatpush1.xpose.msra.mxu0 0.0
    %936 = vmatprep.subr.mxu0 0.0
    %937 = vmatpush1.xpose.msra.mxu0 0.0
    %938 = vmatprep.mubr.f32.mxu0 0.0
    %939 = vmatmul.mubr.f32.gmra.mrb[0].mxu0 %v855
    %v940 = vpop.f32.mrb[0].mxu0
    %v941 = vadd.f32 0.0, %v940
    %v942 = vpop.f32.mrb[0].mxu0
    %943 = vmatprep.mubr.f32.mxu0 0.0
    %944 = vmatmul.mubr.f32.gmra.mrb[0].mxu0 %v858
    %v945 = vpop.f32.mrb[0].mxu0
    %v946 = vadd.f32 0.0, %v945
    %v947 = vpop.f32.mrb[0].mxu0
    %948 = vmatprep.mubr.f32.mxu0 0.0
    %949 = vmatmul.mubr.f32.gmra.mrb[0].mxu0 %v861
    %v950 = vpop.f32.mrb[0].mxu0
    %v951 = vadd.f32 0.0, %v950
    %v952 = vpop.f32.mrb[0].mxu0
    %953 = vmatprep.mubr.f32.mxu0 0.0
    %954 = vmatmul.mubr.f32.gmra.mrb[0].mxu0 %v864
    %v955 = vpop.f32.mrb[0].mxu0
    %v956 = vadd.f32 0.0, %v955
    %v957 = vpop.f32.mrb[0].mxu0
    %958 = vdwg.mxu0
    %v960 = vsel %vm305, %v550, 0
    %v963 = vsel %vm305, %v555, 0
    %v966 = vsel %vm305, %v560, 0
    %v969 = vsel %vm305, %v565, 0
    %v971 = vsel %vm305, %v55, 0
    %v973 = vsel %vm305, %v56, 0
    %v975 = vsel %vm305, %v57, 0
    %v977 = vsel %vm305, %v58, 0
    %979 = vmatprep.subr.mxu0 0.0
    %980 = vmatpush1.xpose.msra.mxu0 %v971
    %981 = vmatprep.subr.mxu0 0.0
    %982 = vmatpush1.xpose.msra.mxu0 %v973
    %983 = vmatprep.subr.mxu0 0.0
    %984 = vmatpush1.xpose.msra.mxu0 %v975
    %985 = vmatprep.subr.mxu0 0.0
    %986 = vmatpush1.xpose.msra.mxu0 %v977
    %987 = vmatprep.subr.mxu0 0.0
    %988 = vmatpush1.xpose.msra.mxu0 0.0
    %989 = vmatprep.subr.mxu0 0.0
    %990 = vmatpush1.xpose.msra.mxu0 0.0
    %991 = vmatprep.subr.mxu0 0.0
    %992 = vmatpush1.xpose.msra.mxu0 0.0
    %993 = vmatprep.subr.mxu0 0.0
    %994 = vmatpush1.xpose.msra.mxu0 0.0
    %995 = vmatprep.subr.mxu0 0.0
    %996 = vmatpush1.xpose.msra.mxu0 0.0
    %997 = vmatprep.subr.mxu0 0.0
    %998 = vmatpush1.xpose.msra.mxu0 0.0
    %999 = vmatprep.subr.mxu0 0.0
    %1000 = vmatpush1.xpose.msra.mxu0 0.0
    %1001 = vmatprep.subr.mxu0 0.0
    %1002 = vmatpush1.xpose.msra.mxu0 0.0
    %1003 = vmatprep.subr.mxu0 0.0
    %1004 = vmatpush1.xpose.msra.mxu0 0.0
    %1005 = vmatprep.subr.mxu0 0.0
    %1006 = vmatpush1.xpose.msra.mxu0 0.0
    %1007 = vmatprep.subr.mxu0 0.0
    %1008 = vmatpush1.xpose.msra.mxu0 0.0
    %1009 = vmatprep.subr.mxu0 0.0
    %1010 = vmatpush1.xpose.msra.mxu0 0.0
    %1011 = vmatprep.subr.mxu0 0.0
    %1012 = vmatpush1.xpose.msra.mxu0 0.0
    %1013 = vmatprep.subr.mxu0 0.0
    %1014 = vmatpush1.xpose.msra.mxu0 0.0
    %1015 = vmatprep.subr.mxu0 0.0
    %1016 = vmatpush1.xpose.msra.mxu0 0.0
    %1017 = vmatprep.subr.mxu0 0.0
    %1018 = vmatpush1.xpose.msra.mxu0 0.0
    %1019 = vmatprep.subr.mxu0 0.0
    %1020 = vmatpush1.xpose.msra.mxu0 0.0
    %1021 = vmatprep.subr.mxu0 0.0
    %1022 = vmatpush1.xpose.msra.mxu0 0.0
    %1023 = vmatprep.subr.mxu0 0.0
    %1024 = vmatpush1.xpose.msra.mxu0 0.0
    %1025 = vmatprep.subr.mxu0 0.0
    %1026 = vmatpush1.xpose.msra.mxu0 0.0
    %1027 = vmatprep.subr.mxu0 0.0
    %1028 = vmatpush1.xpose.msra.mxu0 0.0
    %1029 = vmatprep.subr.mxu0 0.0
    %1030 = vmatpush1.xpose.msra.mxu0 0.0
    %1031 = vmatprep.subr.mxu0 0.0
    %1032 = vmatpush1.xpose.msra.mxu0 0.0
    %1033 = vmatprep.subr.mxu0 0.0
    %1034 = vmatpush1.xpose.msra.mxu0 0.0
    %1035 = vmatprep.subr.mxu0 0.0
    %1036 = vmatpush1.xpose.msra.mxu0 0.0
    %1037 = vmatprep.subr.mxu0 0.0
    %1038 = vmatpush1.xpose.msra.mxu0 0.0
    %1039 = vmatprep.subr.mxu0 0.0
    %1040 = vmatpush1.xpose.msra.mxu0 0.0
    %1041 = vmatprep.subr.mxu0 0.0
    %1042 = vmatpush1.xpose.msra.mxu0 0.0
    %1043 = vmatprep.mubr.f32.mxu0 0.0
    %1044 = vmatmul.mubr.f32.gmra.mrb[0].mxu0 %v960
    %v1045 = vpop.f32.mrb[0].mxu0
    %v1046 = vadd.f32 %v941, %v1045
    %v1047 = vpop.f32.mrb[0].mxu0
    %1048 = vmatprep.mubr.f32.mxu0 0.0
    %1049 = vmatmul.mubr.f32.gmra.mrb[0].mxu0 %v963
    %v1050 = vpop.f32.mrb[0].mxu0
    %v1051 = vadd.f32 %v946, %v1050
    %v1052 = vpop.f32.mrb[0].mxu0
    %1053 = vmatprep.mubr.f32.mxu0 0.0
    %1054 = vmatmul.mubr.f32.gmra.mrb[0].mxu0 %v966
    %v1055 = vpop.f32.mrb[0].mxu0
    %v1056 = vadd.f32 %v951, %v1055
    %v1057 = vpop.f32.mrb[0].mxu0
    %1058 = vmatprep.mubr.f32.mxu0 0.0
    %1059 = vmatmul.mubr.f32.gmra.mrb[0].mxu0 %v969
    %v1060 = vpop.f32.mrb[0].mxu0
    %v1061 = vadd.f32 %v956, %v1060
    %v1062 = vpop.f32.mrb[0].mxu0
    %1063 = vdwg.mxu0
    %1064 = vrot.lane.b32.xlu0 %v218, 112
    %v1065 = vpop.permute.xlu0 %1064
    %1066 = vrot.lane.b32.xlu0 %v219, 112
    %v1067 = vpop.permute.xlu0 %1066
    %1068 = vrot.lane.b32.xlu0 %v220, 112
    %v1069 = vpop.permute.xlu0 %1068
    %1070 = vrot.lane.b32.xlu0 %v221, 112
    %v1071 = vpop.permute.xlu0 %1070
    %1072 = vrot.lane.b32.xlu0 %v200, 80
    %v1073 = vpop.permute.xlu0 %1072
    %1074 = vrot.lane.b32.xlu0 %v205, 80
    %v1075 = vpop.permute.xlu0 %1074
    %1076 = vrot.lane.b32.xlu0 %v210, 80
    %v1077 = vpop.permute.xlu0 %1076
    %1078 = vrot.lane.b32.xlu0 %v215, 80
    %v1079 = vpop.permute.xlu0 %1078
    %v1080 = vsel %vm305, %v1065, 0
    %v1082 = vsel %vm305, %v1067, 0
    %v1084 = vsel %vm305, %v1069, 0
    %v1086 = vsel %vm305, %v1071, 0
    %v1088 = vsel %vm305, %v1073, 0
    %v1090 = vsel %vm305, %v1075, 0
    %v1092 = vsel %vm305, %v1077, 0
    %v1094 = vsel %vm305, %v1079, 0
    %1096 = vmatprep.subr.mxu0 0.0
    %1097 = vmatpush1.xpose.msra.mxu0 %v1088
    %1098 = vmatprep.subr.mxu0 0.0
    %1099 = vmatpush1.xpose.msra.mxu0 %v1090
    %1100 = vmatprep.subr.mxu0 0.0
    %1101 = vmatpush1.xpose.msra.mxu0 %v1092
    %1102 = vmatprep.subr.mxu0 0.0
    %1103 = vmatpush1.xpose.msra.mxu0 %v1094
    %1104 = vmatprep.subr.mxu0 0.0
    %1105 = vmatpush1.xpose.msra.mxu0 0.0
    %1106 = vmatprep.subr.mxu0 0.0
    %1107 = vmatpush1.xpose.msra.mxu0 0.0
    %1108 = vmatprep.subr.mxu0 0.0
    %1109 = vmatpush1.xpose.msra.mxu0 0.0
    %1110 = vmatprep.subr.mxu0 0.0
    %1111 = vmatpush1.xpose.msra.mxu0 0.0
    %1112 = vmatprep.subr.mxu0 0.0
    %1113 = vmatpush1.xpose.msra.mxu0 0.0
    %1114 = vmatprep.subr.mxu0 0.0
    %1115 = vmatpush1.xpose.msra.mxu0 0.0
    %1116 = vmatprep.subr.mxu0 0.0
    %1117 = vmatpush1.xpose.msra.mxu0 0.0
    %1118 = vmatprep.subr.mxu0 0.0
    %1119 = vmatpush1.xpose.msra.mxu0 0.0
    %1120 = vmatprep.subr.mxu0 0.0
    %1121 = vmatpush1.xpose.msra.mxu0 0.0
    %1122 = vmatprep.subr.mxu0 0.0
    %1123 = vmatpush1.xpose.msra.mxu0 0.0
    %1124 = vmatprep.subr.mxu0 0.0
    %1125 = vmatpush1.xpose.msra.mxu0 0.0
    %1126 = vmatprep.subr.mxu0 0.0
    %1127 = vmatpush1.xpose.msra.mxu0 0.0
    %1128 = vmatprep.subr.mxu0 0.0
    %1129 = vmatpush1.xpose.msra.mxu0 0.0
    %1130 = vmatprep.subr.mxu0 0.0
    %1131 = vmatpush1.xpose.msra.mxu0 0.0
    %1132 = vmatprep.subr.mxu0 0.0
    %1133 = vmatpush1.xpose.msra.mxu0 0.0
    %1134 = vmatprep.subr.mxu0 0.0
    %1135 = vmatpush1.xpose.msra.mxu0 0.0
    %1136 = vmatprep.subr.mxu0 0.0
    %1137 = vmatpush1.xpose.msra.mxu0 0.0
    %1138 = vmatprep.subr.mxu0 0.0
    %1139 = vmatpush1.xpose.msra.mxu0 0.0
    %1140 = vmatprep.subr.mxu0 0.0
    %1141 = vmatpush1.xpose.msra.mxu0 0.0
    %1142 = vmatprep.subr.mxu0 0.0
    %1143 = vmatpush1.xpose.msra.mxu0 0.0
    %1144 = vmatprep.subr.mxu0 0.0
    %1145 = vmatpush1.xpose.msra.mxu0 0.0
    %1146 = vmatprep.subr.mxu0 0.0
    %1147 = vmatpush1.xpose.msra.mxu0 0.0
    %1148 = vmatprep.subr.mxu0 0.0
    %1149 = vmatpush1.xpose.msra.mxu0 0.0
    %1150 = vmatprep.subr.mxu0 0.0
    %1151 = vmatpush1.xpose.msra.mxu0 0.0
    %1152 = vmatprep.subr.mxu0 0.0
    %1153 = vmatpush1.xpose.msra.mxu0 0.0
    %1154 = vmatprep.subr.mxu0 0.0
    %1155 = vmatpush1.xpose.msra.mxu0 0.0
    %1156 = vmatprep.subr.mxu0 0.0
    %1157 = vmatpush1.xpose.msra.mxu0 0.0
    %1158 = vmatprep.subr.mxu0 0.0
    %1159 = vmatpush1.xpose.msra.mxu0 0.0
    %1160 = vmatprep.mubr.f32.mxu0 0.0
    %1161 = vmatmul.mubr.f32.gmra.mrb[0].mxu0 %v1080
    %v1162 = vpop.f32.mrb[0].mxu0
    %v1163 = vadd.f32 0.0, %v1162
    %v1164 = vpop.f32.mrb[0].mxu0
    %1165 = vmatprep.mubr.f32.mxu0 0.0
    %1166 = vmatmul.mubr.f32.gmra.mrb[0].mxu0 %v1082
    %v1167 = vpop.f32.mrb[0].mxu0
    %v1168 = vadd.f32 0.0, %v1167
    %v1169 = vpop.f32.mrb[0].mxu0
    %1170 = vmatprep.mubr.f32.mxu0 0.0
    %1171 = vmatmul.mubr.f32.gmra.mrb[0].mxu0 %v1084
    %v1172 = vpop.f32.mrb[0].mxu0
    %v1173 = vadd.f32 0.0, %v1172
    %v1174 = vpop.f32.mrb[0].mxu0
    %1175 = vmatprep.mubr.f32.mxu0 0.0
    %1176 = vmatmul.mubr.f32.gmra.mrb[0].mxu0 %v1086
    %v1177 = vpop.f32.mrb[0].mxu0
    %v1178 = vadd.f32 0.0, %v1177
    %v1179 = vpop.f32.mrb[0].mxu0
    %1180 = vdwg.mxu0
    %v1181 = vsel %vm289, %v1163, -1e+30
    %v1182 = vsel %vm290, %v1168, -1e+30
    %v1183 = vsel %vm291, %v1173, -1e+30
    %v1184 = vsel %vm292, %v1178, -1e+30
    %v1185 = vsel %vm84, %v1181, -inf
    %1186 = vmax.xlane.f32.xlu0 %v1185
    %v1187 = vpop.xlane.xlu0 %1186
    %v1188 = vsel %vm84, %v1182, -inf
    %1189 = vmax.xlane.f32.xlu0 %v1188
    %v1190 = vpop.xlane.xlu0 %1189
    %v1191 = vsel %vm84, %v1183, -inf
    %1192 = vmax.xlane.f32.xlu0 %v1191
    %v1193 = vpop.xlane.xlu0 %1192
    %v1194 = vsel %vm84, %v1184, -inf
    %1195 = vmax.xlane.f32.xlu0 %v1194
    %v1196 = vpop.xlane.xlu0 %1195
    %v1197 = vsub.f32 %v1181, %v1187
    %v1198 = vsub.f32 %v1182, %v1190
    %v1199 = vsub.f32 %v1183, %v1193
    %v1200 = vsub.f32 %v1184, %v1196
    %v1201 = vmul.f32 %v1197, 1.442695
    %v1202 = vpow.pop %v1201
    %v1203 = vmul.f32 %v1198, 1.442695
    %v1204 = vpow.pop %v1203
    %v1205 = vmul.f32 %v1199, 1.442695
    %v1206 = vpow.pop %v1205
    %v1207 = vmul.f32 %v1200, 1.442695
    %v1208 = vpow.pop %v1207
    %v1209 = vsel %vm84, %v1202, 0.0
    %1210 = vadd.xlane.f32.xlu0 %v1209
    %v1211 = vpop.xlane.xlu0 %1210
    %v1212 = vsel %vm84, %v1204, 0.0
    %1213 = vadd.xlane.f32.xlu0 %v1212
    %v1214 = vpop.xlane.xlu0 %1213
    %v1215 = vsel %vm84, %v1206, 0.0
    %1216 = vadd.xlane.f32.xlu0 %v1215
    %v1217 = vpop.xlane.xlu0 %1216
    %v1218 = vsel %vm84, %v1208, 0.0
    %1219 = vadd.xlane.f32.xlu0 %v1218
    %v1220 = vpop.xlane.xlu0 %1219
    %v1221 = vrcp.pop %v1211
    %v1222 = vrcp.pop %v1214
    %v1223 = vrcp.pop %v1217
    %v1224 = vrcp.pop %v1220
    %v1225 = vmul.f32 %v1202, %v1221
    %v1226 = vmul.f32 %v1204, %v1222
    %v1227 = vmul.f32 %v1206, %v1223
    %v1228 = vmul.f32 %v1208, %v1224
    %1229 = vrot.lane.b32.xlu0 %v200, 48
    %v1230 = vpop.permute.xlu0 %1229
    %1231 = vrot.lane.b32.xlu0 %v205, 48
    %v1232 = vpop.permute.xlu0 %1231
    %1233 = vrot.lane.b32.xlu0 %v210, 48
    %v1234 = vpop.permute.xlu0 %1233
    %1235 = vrot.lane.b32.xlu0 %v215, 48
    %v1236 = vpop.permute.xlu0 %1235
    %v1242 = vsel %vm84, %v1225, 0
    %v1245 = vsel %vm84, %v1226, 0
    %v1248 = vsel %vm84, %v1227, 0
    %v1251 = vsel %vm84, %v1228, 0
    %1253 = vmatprep.subr.mxu0 0.0
    %1254 = vmatpush1.msra.mxu0 %v1230
    %1255 = vmatprep.subr.mxu0 0.0
    %1256 = vmatpush1.msra.mxu0 %v1232
    %1257 = vmatprep.subr.mxu0 0.0
    %1258 = vmatpush1.msra.mxu0 %v1234
    %1259 = vmatprep.subr.mxu0 0.0
    %1260 = vmatpush1.msra.mxu0 %v1236
    %1261 = vmatprep.subr.mxu0 0.0
    %1262 = vmatpush1.msra.mxu0 0.0
    %1263 = vmatprep.subr.mxu0 0.0
    %1264 = vmatpush1.msra.mxu0 0.0
    %1265 = vmatprep.subr.mxu0 0.0
    %1266 = vmatpush1.msra.mxu0 0.0
    %1267 = vmatprep.subr.mxu0 0.0
    %1268 = vmatpush1.msra.mxu0 0.0
    %1269 = vmatprep.subr.mxu0 0.0
    %1270 = vmatpush1.msra.mxu0 0.0
    %1271 = vmatprep.subr.mxu0 0.0
    %1272 = vmatpush1.msra.mxu0 0.0
    %1273 = vmatprep.subr.mxu0 0.0
    %1274 = vmatpush1.msra.mxu0 0.0
    %1275 = vmatprep.subr.mxu0 0.0
    %1276 = vmatpush1.msra.mxu0 0.0
    %1277 = vmatprep.subr.mxu0 0.0
    %1278 = vmatpush1.msra.mxu0 0.0
    %1279 = vmatprep.subr.mxu0 0.0
    %1280 = vmatpush1.msra.mxu0 0.0
    %1281 = vmatprep.subr.mxu0 0.0
    %1282 = vmatpush1.msra.mxu0 0.0
    %1283 = vmatprep.subr.mxu0 0.0
    %1284 = vmatpush1.msra.mxu0 0.0
    %1285 = vmatprep.subr.mxu0 0.0
    %1286 = vmatpush1.msra.mxu0 0.0
    %1287 = vmatprep.subr.mxu0 0.0
    %1288 = vmatpush1.msra.mxu0 0.0
    %1289 = vmatprep.subr.mxu0 0.0
    %1290 = vmatpush1.msra.mxu0 0.0
    %1291 = vmatprep.subr.mxu0 0.0
    %1292 = vmatpush1.msra.mxu0 0.0
    %1293 = vmatprep.subr.mxu0 0.0
    %1294 = vmatpush1.msra.mxu0 0.0
    %1295 = vmatprep.subr.mxu0 0.0
    %1296 = vmatpush1.msra.mxu0 0.0
    %1297 = vmatprep.subr.mxu0 0.0
    %1298 = vmatpush1.msra.mxu0 0.0
    %1299 = vmatprep.subr.mxu0 0.0
    %1300 = vmatpush1.msra.mxu0 0.0
    %1301 = vmatprep.subr.mxu0 0.0
    %1302 = vmatpush1.msra.mxu0 0.0
    %1303 = vmatprep.subr.mxu0 0.0
    %1304 = vmatpush1.msra.mxu0 0.0
    %1305 = vmatprep.subr.mxu0 0.0
    %1306 = vmatpush1.msra.mxu0 0.0
    %1307 = vmatprep.subr.mxu0 0.0
    %1308 = vmatpush1.msra.mxu0 0.0
    %1309 = vmatprep.subr.mxu0 0.0
    %1310 = vmatpush1.msra.mxu0 0.0
    %1311 = vmatprep.subr.mxu0 0.0
    %1312 = vmatpush1.msra.mxu0 0.0
    %1313 = vmatprep.subr.mxu0 0.0
    %1314 = vmatpush1.msra.mxu0 0.0
    %1315 = vmatprep.subr.mxu0 0.0
    %1316 = vmatpush1.msra.mxu0 0.0
    %1317 = vmatprep.mubr.f32.mxu0 0.0
    %1318 = vmatmul.mubr.f32.gmra.mrb[0].mxu0 %v1242
    %v1319 = vpop.f32.mrb[0].mxu0
    %v1320 = vadd.f32 0.0, %v1319
    %v1321 = vpop.f32.mrb[0].mxu0
    %1322 = vmatprep.mubr.f32.mxu0 0.0
    %1323 = vmatmul.mubr.f32.gmra.mrb[0].mxu0 %v1245
    %v1324 = vpop.f32.mrb[0].mxu0
    %v1325 = vadd.f32 0.0, %v1324
    %v1326 = vpop.f32.mrb[0].mxu0
    %1327 = vmatprep.mubr.f32.mxu0 0.0
    %1328 = vmatmul.mubr.f32.gmra.mrb[0].mxu0 %v1248
    %v1329 = vpop.f32.mrb[0].mxu0
    %v1330 = vadd.f32 0.0, %v1329
    %v1331 = vpop.f32.mrb[0].mxu0
    %1332 = vmatprep.mubr.f32.mxu0 0.0
    %1333 = vmatmul.mubr.f32.gmra.mrb[0].mxu0 %v1251
    %v1334 = vpop.f32.mrb[0].mxu0
    %v1335 = vadd.f32 0.0, %v1334
    %v1336 = vpop.f32.mrb[0].mxu0
    %1337 = vdwg.mxu0
    %1338 = vrot.lane.b32.xlu0 %v55, 112
    %v1339 = vpop.permute.xlu0 %1338
    %1340 = vrot.lane.b32.xlu0 %v56, 112
    %v1341 = vpop.permute.xlu0 %1340
    %1342 = vrot.lane.b32.xlu0 %v57, 112
    %v1343 = vpop.permute.xlu0 %1342
    %1344 = vrot.lane.b32.xlu0 %v58, 112
    %v1345 = vpop.permute.xlu0 %1344
    %v1347 = vsel %vm305, %v1320, 0
    %v1350 = vsel %vm305, %v1325, 0
    %v1353 = vsel %vm305, %v1330, 0
    %v1356 = vsel %vm305, %v1335, 0
    %v1358 = vsel %vm305, %v1339, 0
    %v1360 = vsel %vm305, %v1341, 0
    %v1362 = vsel %vm305, %v1343, 0
    %v1364 = vsel %vm305, %v1345, 0
    %1366 = vmatprep.subr.mxu0 0.0
    %1367 = vmatpush1.xpose.msra.mxu0 %v1358
    %1368 = vmatprep.subr.mxu0 0.0
    %1369 = vmatpush1.xpose.msra.mxu0 %v1360
    %1370 = vmatprep.subr.mxu0 0.0
    %1371 = vmatpush1.xpose.msra.mxu0 %v1362
    %1372 = vmatprep.subr.mxu0 0.0
    %1373 = vmatpush1.xpose.msra.mxu0 %v1364
    %1374 = vmatprep.subr.mxu0 0.0
    %1375 = vmatpush1.xpose.msra.mxu0 0.0
    %1376 = vmatprep.subr.mxu0 0.0
    %1377 = vmatpush1.xpose.msra.mxu0 0.0
    %1378 = vmatprep.subr.mxu0 0.0
    %1379 = vmatpush1.xpose.msra.mxu0 0.0
    %1380 = vmatprep.subr.mxu0 0.0
    %1381 = vmatpush1.xpose.msra.mxu0 0.0
    %1382 = vmatprep.subr.mxu0 0.0
    %1383 = vmatpush1.xpose.msra.mxu0 0.0
    %1384 = vmatprep.subr.mxu0 0.0
    %1385 = vmatpush1.xpose.msra.mxu0 0.0
    %1386 = vmatprep.subr.mxu0 0.0
    %1387 = vmatpush1.xpose.msra.mxu0 0.0
    %1388 = vmatprep.subr.mxu0 0.0
    %1389 = vmatpush1.xpose.msra.mxu0 0.0
    %1390 = vmatprep.subr.mxu0 0.0
    %1391 = vmatpush1.xpose.msra.mxu0 0.0
    %1392 = vmatprep.subr.mxu0 0.0
    %1393 = vmatpush1.xpose.msra.mxu0 0.0
    %1394 = vmatprep.subr.mxu0 0.0
    %1395 = vmatpush1.xpose.msra.mxu0 0.0
    %1396 = vmatprep.subr.mxu0 0.0
    %1397 = vmatpush1.xpose.msra.mxu0 0.0
    %1398 = vmatprep.subr.mxu0 0.0
    %1399 = vmatpush1.xpose.msra.mxu0 0.0
    %1400 = vmatprep.subr.mxu0 0.0
    %1401 = vmatpush1.xpose.msra.mxu0 0.0
    %1402 = vmatprep.subr.mxu0 0.0
    %1403 = vmatpush1.xpose.msra.mxu0 0.0
    %1404 = vmatprep.subr.mxu0 0.0
    %1405 = vmatpush1.xpose.msra.mxu0 0.0
    %1406 = vmatprep.subr.mxu0 0.0
    %1407 = vmatpush1.xpose.msra.mxu0 0.0
    %1408 = vmatprep.subr.mxu0 0.0
    %1409 = vmatpush1.xpose.msra.mxu0 0.0
    %1410 = vmatprep.subr.mxu0 0.0
    %1411 = vmatpush1.xpose.msra.mxu0 0.0
    %1412 = vmatprep.subr.mxu0 0.0
    %1413 = vmatpush1.xpose.msra.mxu0 0.0
    %1414 = vmatprep.subr.mxu0 0.0
    %1415 = vmatpush1.xpose.msra.mxu0 0.0
    %1416 = vmatprep.subr.mxu0 0.0
    %1417 = vmatpush1.xpose.msra.mxu0 0.0
    %1418 = vmatprep.subr.mxu0 0.0
    %1419 = vmatpush1.xpose.msra.mxu0 0.0
    %1420 = vmatprep.subr.mxu0 0.0
    %1421 = vmatpush1.xpose.msra.mxu0 0.0
    %1422 = vmatprep.subr.mxu0 0.0
    %1423 = vmatpush1.xpose.msra.mxu0 0.0
    %1424 = vmatprep.subr.mxu0 0.0
    %1425 = vmatpush1.xpose.msra.mxu0 0.0
    %1426 = vmatprep.subr.mxu0 0.0
    %1427 = vmatpush1.xpose.msra.mxu0 0.0
    %1428 = vmatprep.subr.mxu0 0.0
    %1429 = vmatpush1.xpose.msra.mxu0 0.0
    %1430 = vmatprep.mubr.f32.mxu0 0.0
    %1431 = vmatmul.mubr.f32.gmra.mrb[0].mxu0 %v1347
    %v1432 = vpop.f32.mrb[0].mxu0
    %v1433 = vadd.f32 0.0, %v1432
    %v1434 = vpop.f32.mrb[0].mxu0
    %1435 = vmatprep.mubr.f32.mxu0 0.0
    %1436 = vmatmul.mubr.f32.gmra.mrb[0].mxu0 %v1350
    %v1437 = vpop.f32.mrb[0].mxu0
    %v1438 = vadd.f32 0.0, %v1437
    %v1439 = vpop.f32.mrb[0].mxu0
    %1440 = vmatprep.mubr.f32.mxu0 0.0
    %1441 = vmatmul.mubr.f32.gmra.mrb[0].mxu0 %v1353
    %v1442 = vpop.f32.mrb[0].mxu0
    %v1443 = vadd.f32 0.0, %v1442
    %v1444 = vpop.f32.mrb[0].mxu0
    %1445 = vmatprep.mubr.f32.mxu0 0.0
    %1446 = vmatmul.mubr.f32.gmra.mrb[0].mxu0 %v1356
    %v1447 = vpop.f32.mrb[0].mxu0
    %v1448 = vadd.f32 0.0, %v1447
    %v1449 = vpop.f32.mrb[0].mxu0
    %1450 = vdwg.mxu0
    %v1451 = vadd.f32 %v1046, %v1433
    %v1452 = vadd.f32 %v1051, %v1438
    %v1453 = vadd.f32 %v1056, %v1443
    %v1454 = vadd.f32 %v1061, %v1448
    %1455 = vrot.lane.b32.xlu0 %v218, 104
    %v1456 = vpop.permute.xlu0 %1455
    %1457 = vrot.lane.b32.xlu0 %v219, 104
    %v1458 = vpop.permute.xlu0 %1457
    %1459 = vrot.lane.b32.xlu0 %v220, 104
    %v1460 = vpop.permute.xlu0 %1459
    %1461 = vrot.lane.b32.xlu0 %v221, 104
    %v1462 = vpop.permute.xlu0 %1461
    %1463 = vrot.lane.b32.xlu0 %v200, 72
    %v1464 = vpop.permute.xlu0 %1463
    %1465 = vrot.lane.b32.xlu0 %v205, 72
    %v1466 = vpop.permute.xlu0 %1465
    %1467 = vrot.lane.b32.xlu0 %v210, 72
    %v1468 = vpop.permute.xlu0 %1467
    %1469 = vrot.lane.b32.xlu0 %v215, 72
    %v1470 = vpop.permute.xlu0 %1469
    %v1471 = vsel %vm305, %v1456, 0
    %v1473 = vsel %vm305, %v1458, 0
    %v1475 = vsel %vm305, %v1460, 0
    %v1477 = vsel %vm305, %v1462, 0
    %v1479 = vsel %vm305, %v1464, 0
    %v1481 = vsel %vm305, %v1466, 0
    %v1483 = vsel %vm305, %v1468, 0
    %v1485 = vsel %vm305, %v1470, 0
    %1487 = vmatprep.subr.mxu0 0.0
    %1488 = vmatpush1.xpose.msra.mxu0 %v1479
    %1489 = vmatprep.subr.mxu0 0.0
    %1490 = vmatpush1.xpose.msra.mxu0 %v1481
    %1491 = vmatprep.subr.mxu0 0.0
    %1492 = vmatpush1.xpose.msra.mxu0 %v1483
    %1493 = vmatprep.subr.mxu0 0.0
    %1494 = vmatpush1.xpose.msra.mxu0 %v1485
    %1495 = vmatprep.subr.mxu0 0.0
    %1496 = vmatpush1.xpose.msra.mxu0 0.0
    %1497 = vmatprep.subr.mxu0 0.0
    %1498 = vmatpush1.xpose.msra.mxu0 0.0
    %1499 = vmatprep.subr.mxu0 0.0
    %1500 = vmatpush1.xpose.msra.mxu0 0.0
    %1501 = vmatprep.subr.mxu0 0.0
    %1502 = vmatpush1.xpose.msra.mxu0 0.0
    %1503 = vmatprep.subr.mxu0 0.0
    %1504 = vmatpush1.xpose.msra.mxu0 0.0
    %1505 = vmatprep.subr.mxu0 0.0
    %1506 = vmatpush1.xpose.msra.mxu0 0.0
    %1507 = vmatprep.subr.mxu0 0.0
    %1508 = vmatpush1.xpose.msra.mxu0 0.0
    %1509 = vmatprep.subr.mxu0 0.0
    %1510 = vmatpush1.xpose.msra.mxu0 0.0
    %1511 = vmatprep.subr.mxu0 0.0
    %1512 = vmatpush1.xpose.msra.mxu0 0.0
    %1513 = vmatprep.subr.mxu0 0.0
    %1514 = vmatpush1.xpose.msra.mxu0 0.0
    %1515 = vmatprep.subr.mxu0 0.0
    %1516 = vmatpush1.xpose.msra.mxu0 0.0
    %1517 = vmatprep.subr.mxu0 0.0
    %1518 = vmatpush1.xpose.msra.mxu0 0.0
    %1519 = vmatprep.subr.mxu0 0.0
    %1520 = vmatpush1.xpose.msra.mxu0 0.0
    %1521 = vmatprep.subr.mxu0 0.0
    %1522 = vmatpush1.xpose.msra.mxu0 0.0
    %1523 = vmatprep.subr.mxu0 0.0
    %1524 = vmatpush1.xpose.msra.mxu0 0.0
    %1525 = vmatprep.subr.mxu0 0.0
    %1526 = vmatpush1.xpose.msra.mxu0 0.0
    %1527 = vmatprep.subr.mxu0 0.0
    %1528 = vmatpush1.xpose.msra.mxu0 0.0
    %1529 = vmatprep.subr.mxu0 0.0
    %1530 = vmatpush1.xpose.msra.mxu0 0.0
    %1531 = vmatprep.subr.mxu0 0.0
    %1532 = vmatpush1.xpose.msra.mxu0 0.0
    %1533 = vmatprep.subr.mxu0 0.0
    %1534 = vmatpush1.xpose.msra.mxu0 0.0
    %1535 = vmatprep.subr.mxu0 0.0
    %1536 = vmatpush1.xpose.msra.mxu0 0.0
    %1537 = vmatprep.subr.mxu0 0.0
    %1538 = vmatpush1.xpose.msra.mxu0 0.0
    %1539 = vmatprep.subr.mxu0 0.0
    %1540 = vmatpush1.xpose.msra.mxu0 0.0
    %1541 = vmatprep.subr.mxu0 0.0
    %1542 = vmatpush1.xpose.msra.mxu0 0.0
    %1543 = vmatprep.subr.mxu0 0.0
    %1544 = vmatpush1.xpose.msra.mxu0 0.0
    %1545 = vmatprep.subr.mxu0 0.0
    %1546 = vmatpush1.xpose.msra.mxu0 0.0
    %1547 = vmatprep.subr.mxu0 0.0
    %1548 = vmatpush1.xpose.msra.mxu0 0.0
    %1549 = vmatprep.subr.mxu0 0.0
    %1550 = vmatpush1.xpose.msra.mxu0 0.0
    %1551 = vmatprep.mubr.f32.mxu0 0.0
    %1552 = vmatmul.mubr.f32.gmra.mrb[0].mxu0 %v1471
    %v1553 = vpop.f32.mrb[0].mxu0
    %v1554 = vadd.f32 0.0, %v1553
    %v1555 = vpop.f32.mrb[0].mxu0
    %1556 = vmatprep.mubr.f32.mxu0 0.0
    %1557 = vmatmul.mubr.f32.gmra.mrb[0].mxu0 %v1473
    %v1558 = vpop.f32.mrb[0].mxu0
    %v1559 = vadd.f32 0.0, %v1558
    %v1560 = vpop.f32.mrb[0].mxu0
    %1561 = vmatprep.mubr.f32.mxu0 0.0
    %1562 = vmatmul.mubr.f32.gmra.mrb[0].mxu0 %v1475
    %v1563 = vpop.f32.mrb[0].mxu0
    %v1564 = vadd.f32 0.0, %v1563
    %v1565 = vpop.f32.mrb[0].mxu0
    %1566 = vmatprep.mubr.f32.mxu0 0.0
    %1567 = vmatmul.mubr.f32.gmra.mrb[0].mxu0 %v1477
    %v1568 = vpop.f32.mrb[0].mxu0
    %v1569 = vadd.f32 0.0, %v1568
    %v1570 = vpop.f32.mrb[0].mxu0
    %1571 = vdwg.mxu0
    %v1572 = vsel %vm289, %v1554, -1e+30
    %v1573 = vsel %vm290, %v1559, -1e+30
    %v1574 = vsel %vm291, %v1564, -1e+30
    %v1575 = vsel %vm292, %v1569, -1e+30
    %v1576 = vsel %vm84, %v1572, -inf
    %1577 = vmax.xlane.f32.xlu0 %v1576
    %v1578 = vpop.xlane.xlu0 %1577
    %v1579 = vsel %vm84, %v1573, -inf
    %1580 = vmax.xlane.f32.xlu0 %v1579
    %v1581 = vpop.xlane.xlu0 %1580
    %v1582 = vsel %vm84, %v1574, -inf
    %1583 = vmax.xlane.f32.xlu0 %v1582
    %v1584 = vpop.xlane.xlu0 %1583
    %v1585 = vsel %vm84, %v1575, -inf
    %1586 = vmax.xlane.f32.xlu0 %v1585
    %v1587 = vpop.xlane.xlu0 %1586
    %v1588 = vsub.f32 %v1572, %v1578
    %v1589 = vsub.f32 %v1573, %v1581
    %v1590 = vsub.f32 %v1574, %v1584
    %v1591 = vsub.f32 %v1575, %v1587
    %v1592 = vmul.f32 %v1588, 1.442695
    %v1593 = vpow.pop %v1592
    %v1594 = vmul.f32 %v1589, 1.442695
    %v1595 = vpow.pop %v1594
    %v1596 = vmul.f32 %v1590, 1.442695
    %v1597 = vpow.pop %v1596
    %v1598 = vmul.f32 %v1591, 1.442695
    %v1599 = vpow.pop %v1598
    %v1600 = vsel %vm84, %v1593, 0.0
    %1601 = vadd.xlane.f32.xlu0 %v1600
    %v1602 = vpop.xlane.xlu0 %1601
    %v1603 = vsel %vm84, %v1595, 0.0
    %1604 = vadd.xlane.f32.xlu0 %v1603
    %v1605 = vpop.xlane.xlu0 %1604
    %v1606 = vsel %vm84, %v1597, 0.0
    %1607 = vadd.xlane.f32.xlu0 %v1606
    %v1608 = vpop.xlane.xlu0 %1607
    %v1609 = vsel %vm84, %v1599, 0.0
    %1610 = vadd.xlane.f32.xlu0 %v1609
    %v1611 = vpop.xlane.xlu0 %1610
    %v1612 = vrcp.pop %v1602
    %v1613 = vrcp.pop %v1605
    %v1614 = vrcp.pop %v1608
    %v1615 = vrcp.pop %v1611
    %v1616 = vmul.f32 %v1593, %v1612
    %v1617 = vmul.f32 %v1595, %v1613
    %v1618 = vmul.f32 %v1597, %v1614
    %v1619 = vmul.f32 %v1599, %v1615
    %1620 = vrot.lane.b32.xlu0 %v200, 40
    %v1621 = vpop.permute.xlu0 %1620
    %1622 = vrot.lane.b32.xlu0 %v205, 40
    %v1623 = vpop.permute.xlu0 %1622
    %1624 = vrot.lane.b32.xlu0 %v210, 40
    %v1625 = vpop.permute.xlu0 %1624
    %1626 = vrot.lane.b32.xlu0 %v215, 40
    %v1627 = vpop.permute.xlu0 %1626
    %v1633 = vsel %vm84, %v1616, 0
    %v1636 = vsel %vm84, %v1617, 0
    %v1639 = vsel %vm84, %v1618, 0
    %v1642 = vsel %vm84, %v1619, 0
    %1644 = vmatprep.subr.mxu0 0.0
    %1645 = vmatpush1.msra.mxu0 %v1621
    %1646 = vmatprep.subr.mxu0 0.0
    %1647 = vmatpush1.msra.mxu0 %v1623
    %1648 = vmatprep.subr.mxu0 0.0
    %1649 = vmatpush1.msra.mxu0 %v1625
    %1650 = vmatprep.subr.mxu0 0.0
    %1651 = vmatpush1.msra.mxu0 %v1627
    %1652 = vmatprep.subr.mxu0 0.0
    %1653 = vmatpush1.msra.mxu0 0.0
    %1654 = vmatprep.subr.mxu0 0.0
    %1655 = vmatpush1.msra.mxu0 0.0
    %1656 = vmatprep.subr.mxu0 0.0
    %1657 = vmatpush1.msra.mxu0 0.0
    %1658 = vmatprep.subr.mxu0 0.0
    %1659 = vmatpush1.msra.mxu0 0.0
    %1660 = vmatprep.subr.mxu0 0.0
    %1661 = vmatpush1.msra.mxu0 0.0
    %1662 = vmatprep.subr.mxu0 0.0
    %1663 = vmatpush1.msra.mxu0 0.0
    %1664 = vmatprep.subr.mxu0 0.0
    %1665 = vmatpush1.msra.mxu0 0.0
    %1666 = vmatprep.subr.mxu0 0.0
    %1667 = vmatpush1.msra.mxu0 0.0
    %1668 = vmatprep.subr.mxu0 0.0
    %1669 = vmatpush1.msra.mxu0 0.0
    %1670 = vmatprep.subr.mxu0 0.0
    %1671 = vmatpush1.msra.mxu0 0.0
    %1672 = vmatprep.subr.mxu0 0.0
    %1673 = vmatpush1.msra.mxu0 0.0
    %1674 = vmatprep.subr.mxu0 0.0
    %1675 = vmatpush1.msra.mxu0 0.0
    %1676 = vmatprep.subr.mxu0 0.0
    %1677 = vmatpush1.msra.mxu0 0.0
    %1678 = vmatprep.subr.mxu0 0.0
    %1679 = vmatpush1.msra.mxu0 0.0
    %1680 = vmatprep.subr.mxu0 0.0
    %1681 = vmatpush1.msra.mxu0 0.0
    %1682 = vmatprep.subr.mxu0 0.0
    %1683 = vmatpush1.msra.mxu0 0.0
    %1684 = vmatprep.subr.mxu0 0.0
    %1685 = vmatpush1.msra.mxu0 0.0
    %1686 = vmatprep.subr.mxu0 0.0
    %1687 = vmatpush1.msra.mxu0 0.0
    %1688 = vmatprep.subr.mxu0 0.0
    %1689 = vmatpush1.msra.mxu0 0.0
    %1690 = vmatprep.subr.mxu0 0.0
    %1691 = vmatpush1.msra.mxu0 0.0
    %1692 = vmatprep.subr.mxu0 0.0
    %1693 = vmatpush1.msra.mxu0 0.0
    %1694 = vmatprep.subr.mxu0 0.0
    %1695 = vmatpush1.msra.mxu0 0.0
    %1696 = vmatprep.subr.mxu0 0.0
    %1697 = vmatpush1.msra.mxu0 0.0
    %1698 = vmatprep.subr.mxu0 0.0
    %1699 = vmatpush1.msra.mxu0 0.0
    %1700 = vmatprep.subr.mxu0 0.0
    %1701 = vmatpush1.msra.mxu0 0.0
    %1702 = vmatprep.subr.mxu0 0.0
    %1703 = vmatpush1.msra.mxu0 0.0
    %1704 = vmatprep.subr.mxu0 0.0
    %1705 = vmatpush1.msra.mxu0 0.0
    %1706 = vmatprep.subr.mxu0 0.0
    %1707 = vmatpush1.msra.mxu0 0.0
    %1708 = vmatprep.mubr.f32.mxu0 0.0
    %1709 = vmatmul.mubr.f32.gmra.mrb[0].mxu0 %v1633
    %v1710 = vpop.f32.mrb[0].mxu0
    %v1711 = vadd.f32 0.0, %v1710
    %v1712 = vpop.f32.mrb[0].mxu0
    %1713 = vmatprep.mubr.f32.mxu0 0.0
    %1714 = vmatmul.mubr.f32.gmra.mrb[0].mxu0 %v1636
    %v1715 = vpop.f32.mrb[0].mxu0
    %v1716 = vadd.f32 0.0, %v1715
    %v1717 = vpop.f32.mrb[0].mxu0
    %1718 = vmatprep.mubr.f32.mxu0 0.0
    %1719 = vmatmul.mubr.f32.gmra.mrb[0].mxu0 %v1639
    %v1720 = vpop.f32.mrb[0].mxu0
    %v1721 = vadd.f32 0.0, %v1720
    %v1722 = vpop.f32.mrb[0].mxu0
    %1723 = vmatprep.mubr.f32.mxu0 0.0
    %1724 = vmatmul.mubr.f32.gmra.mrb[0].mxu0 %v1642
    %v1725 = vpop.f32.mrb[0].mxu0
    %v1726 = vadd.f32 0.0, %v1725
    %v1727 = vpop.f32.mrb[0].mxu0
    %1728 = vdwg.mxu0
    %1729 = vrot.lane.b32.xlu0 %v55, 104
    %v1730 = vpop.permute.xlu0 %1729
    %1731 = vrot.lane.b32.xlu0 %v56, 104
    %v1732 = vpop.permute.xlu0 %1731
    %1733 = vrot.lane.b32.xlu0 %v57, 104
    %v1734 = vpop.permute.xlu0 %1733
    %1735 = vrot.lane.b32.xlu0 %v58, 104
    %v1736 = vpop.permute.xlu0 %1735
    %v1738 = vsel %vm305, %v1711, 0
    %v1741 = vsel %vm305, %v1716, 0
    %v1744 = vsel %vm305, %v1721, 0
    %v1747 = vsel %vm305, %v1726, 0
    %v1749 = vsel %vm305, %v1730, 0
    %v1751 = vsel %vm305, %v1732, 0
    %v1753 = vsel %vm305, %v1734, 0
    %v1755 = vsel %vm305, %v1736, 0
    %1757 = vmatprep.subr.mxu0 0.0
    %1758 = vmatpush1.xpose.msra.mxu0 %v1749
    %1759 = vmatprep.subr.mxu0 0.0
    %1760 = vmatpush1.xpose.msra.mxu0 %v1751
    %1761 = vmatprep.subr.mxu0 0.0
    %1762 = vmatpush1.xpose.msra.mxu0 %v1753
    %1763 = vmatprep.subr.mxu0 0.0
    %1764 = vmatpush1.xpose.msra.mxu0 %v1755
    %1765 = vmatprep.subr.mxu0 0.0
    %1766 = vmatpush1.xpose.msra.mxu0 0.0
    %1767 = vmatprep.subr.mxu0 0.0
    %1768 = vmatpush1.xpose.msra.mxu0 0.0
    %1769 = vmatprep.subr.mxu0 0.0
    %1770 = vmatpush1.xpose.msra.mxu0 0.0
    %1771 = vmatprep.subr.mxu0 0.0
    %1772 = vmatpush1.xpose.msra.mxu0 0.0
    %1773 = vmatprep.subr.mxu0 0.0
    %1774 = vmatpush1.xpose.msra.mxu0 0.0
    %1775 = vmatprep.subr.mxu0 0.0
    %1776 = vmatpush1.xpose.msra.mxu0 0.0
    %1777 = vmatprep.subr.mxu0 0.0
    %1778 = vmatpush1.xpose.msra.mxu0 0.0
    %1779 = vmatprep.subr.mxu0 0.0
    %1780 = vmatpush1.xpose.msra.mxu0 0.0
    %1781 = vmatprep.subr.mxu0 0.0
    %1782 = vmatpush1.xpose.msra.mxu0 0.0
    %1783 = vmatprep.subr.mxu0 0.0
    %1784 = vmatpush1.xpose.msra.mxu0 0.0
    %1785 = vmatprep.subr.mxu0 0.0
    %1786 = vmatpush1.xpose.msra.mxu0 0.0
    %1787 = vmatprep.subr.mxu0 0.0
    %1788 = vmatpush1.xpose.msra.mxu0 0.0
    %1789 = vmatprep.subr.mxu0 0.0
    %1790 = vmatpush1.xpose.msra.mxu0 0.0
    %1791 = vmatprep.subr.mxu0 0.0
    %1792 = vmatpush1.xpose.msra.mxu0 0.0
    %1793 = vmatprep.subr.mxu0 0.0
    %1794 = vmatpush1.xpose.msra.mxu0 0.0
    %1795 = vmatprep.subr.mxu0 0.0
    %1796 = vmatpush1.xpose.msra.mxu0 0.0
    %1797 = vmatprep.subr.mxu0 0.0
    %1798 = vmatpush1.xpose.msra.mxu0 0.0
    %1799 = vmatprep.subr.mxu0 0.0
    %1800 = vmatpush1.xpose.msra.mxu0 0.0
    %1801 = vmatprep.subr.mxu0 0.0
    %1802 = vmatpush1.xpose.msra.mxu0 0.0
    %1803 = vmatprep.subr.mxu0 0.0
    %1804 = vmatpush1.xpose.msra.mxu0 0.0
    %1805 = vmatprep.subr.mxu0 0.0
    %1806 = vmatpush1.xpose.msra.mxu0 0.0
    %1807 = vmatprep.subr.mxu0 0.0
    %1808 = vmatpush1.xpose.msra.mxu0 0.0
    %1809 = vmatprep.subr.mxu0 0.0
    %1810 = vmatpush1.xpose.msra.mxu0 0.0
    %1811 = vmatprep.subr.mxu0 0.0
    %1812 = vmatpush1.xpose.msra.mxu0 0.0
    %1813 = vmatprep.subr.mxu0 0.0
    %1814 = vmatpush1.xpose.msra.mxu0 0.0
    %1815 = vmatprep.subr.mxu0 0.0
    %1816 = vmatpush1.xpose.msra.mxu0 0.0
    %1817 = vmatprep.subr.mxu0 0.0
    %1818 = vmatpush1.xpose.msra.mxu0 0.0
    %1819 = vmatprep.subr.mxu0 0.0
    %1820 = vmatpush1.xpose.msra.mxu0 0.0
    %1821 = vmatprep.mubr.f32.mxu0 0.0
    %1822 = vmatmul.mubr.f32.gmra.mrb[0].mxu0 %v1738
    %v1823 = vpop.f32.mrb[0].mxu0
    %v1824 = vadd.f32 0.0, %v1823
    %v1825 = vpop.f32.mrb[0].mxu0
    %1826 = vmatprep.mubr.f32.mxu0 0.0
    %1827 = vmatmul.mubr.f32.gmra.mrb[0].mxu0 %v1741
    %v1828 = vpop.f32.mrb[0].mxu0
    %v1829 = vadd.f32 0.0, %v1828
    %v1830 = vpop.f32.mrb[0].mxu0
    %1831 = vmatprep.mubr.f32.mxu0 0.0
    %1832 = vmatmul.mubr.f32.gmra.mrb[0].mxu0 %v1744
    %v1833 = vpop.f32.mrb[0].mxu0
    %v1834 = vadd.f32 0.0, %v1833
    %v1835 = vpop.f32.mrb[0].mxu0
    %1836 = vmatprep.mubr.f32.mxu0 0.0
    %1837 = vmatmul.mubr.f32.gmra.mrb[0].mxu0 %v1747
    %v1838 = vpop.f32.mrb[0].mxu0
    %v1839 = vadd.f32 0.0, %v1838
    %v1840 = vpop.f32.mrb[0].mxu0
    %1841 = vdwg.mxu0
    %v1842 = vadd.f32 %v1451, %v1824
    %v1843 = vadd.f32 %v1452, %v1829
    %v1844 = vadd.f32 %v1453, %v1834
    %v1845 = vadd.f32 %v1454, %v1839
    %v1847 = vlaneseq
    %v1848 = vshrl.u32 %v1847, 7
    %v1849 = vsub.s32 0, %v1848
    %v1850 = vrot.slane %v59, %v1849
    %v1852 = vadd.f32 %v1842, %v1850
    %v1853 = vadd.f32 %v1843, %v1850
    %v1854 = vadd.f32 %v1844, %v1850
    %v1855 = vadd.f32 %v1845, %v1850
    %v1857 = vlaneseq
    %v1858 = vshrl.u32 %v1857, 7
    %v1859 = vsub.s32 0, %v1858
    %v1860 = vrot.slane %v72, %v1859
    %v1863 = vsel %vm84, %v40, 0
    %v1866 = vsel %vm84, %v41, 0
    %v1869 = vsel %vm84, %v60, 0
    %v1872 = vsel %vm84, %v61, 0
    %v1875 = vsel %vm84, %v62, 0
    %v1878 = vsel %vm84, %v63, 0
    %v1881 = vsel %vm84, %v64, 0
    %v1884 = vsel %vm84, %v65, 0
    %v1887 = vsel %vm84, %v66, 0
    %v1890 = vsel %vm84, %v67, 0
    %v1893 = vsel %vm84, %v68, 0
    %v1896 = vsel %vm84, %v69, 0
    %v1899 = vsel %vm84, %v70, 0
    %v1902 = vsel %vm84, %v71, 0
    %1904 = vmatprep.subr.mxu0 0.0
    %1905 = vmatpush1.xpose.msra.mxu0 %v1869
    %1906 = vmatprep.subr.mxu0 0.0
    %1907 = vmatpush1.xpose.msra.mxu0 %v1872
    %1908 = vmatprep.subr.mxu0 0.0
    %1909 = vmatpush1.xpose.msra.mxu0 %v1875
    %1910 = vmatprep.subr.mxu0 0.0
    %1911 = vmatpush1.xpose.msra.mxu0 %v1878
    %1912 = vmatprep.subr.mxu0 0.0
    %1913 = vmatpush1.xpose.msra.mxu0 %v1881
    %1914 = vmatprep.subr.mxu0 0.0
    %1915 = vmatpush1.xpose.msra.mxu0 %v1884
    %1916 = vmatprep.subr.mxu0 0.0
    %1917 = vmatpush1.xpose.msra.mxu0 %v1887
    %1918 = vmatprep.subr.mxu0 0.0
    %1919 = vmatpush1.xpose.msra.mxu0 %v1890
    %1920 = vmatprep.subr.mxu0 0.0
    %1921 = vmatpush1.xpose.msra.mxu0 %v1893
    %1922 = vmatprep.subr.mxu0 0.0
    %1923 = vmatpush1.xpose.msra.mxu0 %v1896
    %1924 = vmatprep.subr.mxu0 0.0
    %1925 = vmatpush1.xpose.msra.mxu0 %v1899
    %1926 = vmatprep.subr.mxu0 0.0
    %1927 = vmatpush1.xpose.msra.mxu0 %v1902
    %1928 = vmatprep.subr.mxu0 0.0
    %1929 = vmatpush1.xpose.msra.mxu0 0.0
    %1930 = vmatprep.subr.mxu0 0.0
    %1931 = vmatpush1.xpose.msra.mxu0 0.0
    %1932 = vmatprep.subr.mxu0 0.0
    %1933 = vmatpush1.xpose.msra.mxu0 0.0
    %1934 = vmatprep.subr.mxu0 0.0
    %1935 = vmatpush1.xpose.msra.mxu0 0.0
    %1936 = vmatprep.subr.mxu0 0.0
    %1937 = vmatpush1.xpose.msra.mxu0 0.0
    %1938 = vmatprep.subr.mxu0 0.0
    %1939 = vmatpush1.xpose.msra.mxu0 0.0
    %1940 = vmatprep.subr.mxu0 0.0
    %1941 = vmatpush1.xpose.msra.mxu0 0.0
    %1942 = vmatprep.subr.mxu0 0.0
    %1943 = vmatpush1.xpose.msra.mxu0 0.0
    %1944 = vmatprep.subr.mxu0 0.0
    %1945 = vmatpush1.xpose.msra.mxu0 0.0
    %1946 = vmatprep.subr.mxu0 0.0
    %1947 = vmatpush1.xpose.msra.mxu0 0.0
    %1948 = vmatprep.subr.mxu0 0.0
    %1949 = vmatpush1.xpose.msra.mxu0 0.0
    %1950 = vmatprep.subr.mxu0 0.0
    %1951 = vmatpush1.xpose.msra.mxu0 0.0
    %1952 = vmatprep.subr.mxu0 0.0
    %1953 = vmatpush1.xpose.msra.mxu0 0.0
    %1954 = vmatprep.subr.mxu0 0.0
    %1955 = vmatpush1.xpose.msra.mxu0 0.0
    %1956 = vmatprep.subr.mxu0 0.0
    %1957 = vmatpush1.xpose.msra.mxu0 0.0
    %1958 = vmatprep.subr.mxu0 0.0
    %1959 = vmatpush1.xpose.msra.mxu0 0.0
    %1960 = vmatprep.subr.mxu0 0.0
    %1961 = vmatpush1.xpose.msra.mxu0 0.0
    %1962 = vmatprep.subr.mxu0 0.0
    %1963 = vmatpush1.xpose.msra.mxu0 0.0
    %1964 = vmatprep.subr.mxu0 0.0
    %1965 = vmatpush1.xpose.msra.mxu0 0.0
    %1966 = vmatprep.subr.mxu0 0.0
    %1967 = vmatpush1.xpose.msra.mxu0 0.0
    %1968 = vmatprep.mubr.f32.mxu0 0.0
    %1969 = vmatmul.mubr.f32.gmra.mrb[0].mxu0 %v1863
    %v1970 = vpop.f32.mrb[0].mxu0
    %v1971 = vadd.f32 %v1860, %v1970
    %v1972 = vpop.f32.mrb[0].mxu0
    %1973 = vmatprep.mubr.f32.mxu0 0.0
    %1974 = vmatmul.mubr.f32.gmra.mrb[0].mxu0 %v1866
    %v1975 = vpop.f32.mrb[0].mxu0
    %v1976 = vadd.f32 %v1860, %v1975
    %v1977 = vpop.f32.mrb[0].mxu0
    %1978 = vdwg.mxu0
    %v1979 = vmul.f32 %v1971, 0.35355338
    %v1980 = vmul.f32 %v1976, 0.35355338
    %1981 = vrot.lane.b32.xlu0 %v1860, 96
    %v1982 = vpop.permute.xlu0 %1981
    %v1985 = vsel %vm84, %v1852, 0
    %v1988 = vsel %vm84, %v1853, 0
    %v1991 = vsel %vm84, %v1854, 0
    %v1994 = vsel %vm84, %v1855, 0
    %1996 = vmatprep.subr.mxu0 0.0
    %1997 = vmatpush1.xpose.msra.mxu0 %v1881
    %1998 = vmatprep.subr.mxu0 0.0
    %1999 = vmatpush1.xpose.msra.mxu0 %v1884
    %2000 = vmatprep.subr.mxu0 0.0
    %2001 = vmatpush1.xpose.msra.mxu0 %v1887
    %2002 = vmatprep.subr.mxu0 0.0
    %2003 = vmatpush1.xpose.msra.mxu0 %v1890
    %2004 = vmatprep.subr.mxu0 0.0
    %2005 = vmatpush1.xpose.msra.mxu0 %v1893
    %2006 = vmatprep.subr.mxu0 0.0
    %2007 = vmatpush1.xpose.msra.mxu0 %v1896
    %2008 = vmatprep.subr.mxu0 0.0
    %2009 = vmatpush1.xpose.msra.mxu0 %v1899
    %2010 = vmatprep.subr.mxu0 0.0
    %2011 = vmatpush1.xpose.msra.mxu0 %v1902
    %2012 = vmatprep.subr.mxu0 0.0
    %2013 = vmatpush1.xpose.msra.mxu0 0.0
    %2014 = vmatprep.subr.mxu0 0.0
    %2015 = vmatpush1.xpose.msra.mxu0 0.0
    %2016 = vmatprep.subr.mxu0 0.0
    %2017 = vmatpush1.xpose.msra.mxu0 0.0
    %2018 = vmatprep.subr.mxu0 0.0
    %2019 = vmatpush1.xpose.msra.mxu0 0.0
    %2020 = vmatprep.subr.mxu0 0.0
    %2021 = vmatpush1.xpose.msra.mxu0 0.0
    %2022 = vmatprep.subr.mxu0 0.0
    %2023 = vmatpush1.xpose.msra.mxu0 0.0
    %2024 = vmatprep.subr.mxu0 0.0
    %2025 = vmatpush1.xpose.msra.mxu0 0.0
    %2026 = vmatprep.subr.mxu0 0.0
    %2027 = vmatpush1.xpose.msra.mxu0 0.0
    %2028 = vmatprep.subr.mxu0 0.0
    %2029 = vmatpush1.xpose.msra.mxu0 0.0
    %2030 = vmatprep.subr.mxu0 0.0
    %2031 = vmatpush1.xpose.msra.mxu0 0.0
    %2032 = vmatprep.subr.mxu0 0.0
    %2033 = vmatpush1.xpose.msra.mxu0 0.0
    %2034 = vmatprep.subr.mxu0 0.0
    %2035 = vmatpush1.xpose.msra.mxu0 0.0
    %2036 = vmatprep.subr.mxu0 0.0
    %2037 = vmatpush1.xpose.msra.mxu0 0.0
    %2038 = vmatprep.subr.mxu0 0.0
    %2039 = vmatpush1.xpose.msra.mxu0 0.0
    %2040 = vmatprep.subr.mxu0 0.0
    %2041 = vmatpush1.xpose.msra.mxu0 0.0
    %2042 = vmatprep.subr.mxu0 0.0
    %2043 = vmatpush1.xpose.msra.mxu0 0.0
    %2044 = vmatprep.subr.mxu0 0.0
    %2045 = vmatpush1.xpose.msra.mxu0 0.0
    %2046 = vmatprep.subr.mxu0 0.0
    %2047 = vmatpush1.xpose.msra.mxu0 0.0
    %2048 = vmatprep.subr.mxu0 0.0
    %2049 = vmatpush1.xpose.msra.mxu0 0.0
    %2050 = vmatprep.subr.mxu0 0.0
    %2051 = vmatpush1.xpose.msra.mxu0 0.0
    %2052 = vmatprep.subr.mxu0 0.0
    %2053 = vmatpush1.xpose.msra.mxu0 0.0
    %2054 = vmatprep.subr.mxu0 0.0
    %2055 = vmatpush1.xpose.msra.mxu0 0.0
    %2056 = vmatprep.subr.mxu0 0.0
    %2057 = vmatpush1.xpose.msra.mxu0 0.0
    %2058 = vmatprep.subr.mxu0 0.0
    %2059 = vmatpush1.xpose.msra.mxu0 0.0
    %2060 = vmatprep.mubr.f32.mxu0 0.0
    %2061 = vmatmul.mubr.f32.gmra.mrb[0].mxu0 %v1985
    %v2062 = vpop.f32.mrb[0].mxu0
    %v2063 = vadd.f32 %v1982, %v2062
    %v2064 = vpop.f32.mrb[0].mxu0
    %2065 = vmatprep.mubr.f32.mxu0 0.0
    %2066 = vmatmul.mubr.f32.gmra.mrb[0].mxu0 %v1988
    %v2067 = vpop.f32.mrb[0].mxu0
    %v2068 = vadd.f32 %v1982, %v2067
    %v2069 = vpop.f32.mrb[0].mxu0
    %2070 = vmatprep.mubr.f32.mxu0 0.0
    %2071 = vmatmul.mubr.f32.gmra.mrb[0].mxu0 %v1991
    %v2072 = vpop.f32.mrb[0].mxu0
    %v2073 = vadd.f32 %v1982, %v2072
    %v2074 = vpop.f32.mrb[0].mxu0
    %2075 = vmatprep.mubr.f32.mxu0 0.0
    %2076 = vmatmul.mubr.f32.gmra.mrb[0].mxu0 %v1994
    %v2077 = vpop.f32.mrb[0].mxu0
    %v2078 = vadd.f32 %v1982, %v2077
    %v2079 = vpop.f32.mrb[0].mxu0
    %2080 = vdwg.mxu0
    %2085 = vrot.lane.b32.xlu0 %v2063, 32
    %v2086 = vpop.permute.xlu0 %2085
    %2087 = vrot.lane.b32.xlu0 %v2068, 32
    %v2088 = vpop.permute.xlu0 %2087
    %2089 = vrot.lane.b32.xlu0 %v2073, 32
    %v2090 = vpop.permute.xlu0 %2089
    %2091 = vrot.lane.b32.xlu0 %v2078, 32
    %v2092 = vpop.permute.xlu0 %2091
    %2095 = vrot.lane.b32.xlu0 %v1971, 96
    %v2096 = vpop.permute.xlu0 %2095
    %2097 = vrot.lane.b32.xlu0 %v1976, 96
    %v2098 = vpop.permute.xlu0 %2097
    %2099 = vrot.lane.b32.xlu0 %v2086, 96
    %v2100 = vpop.permute.xlu0 %2099
    %2101 = vrot.lane.b32.xlu0 %v2088, 96
    %v2102 = vpop.permute.xlu0 %2101
    %2103 = vrot.lane.b32.xlu0 %v2090, 96
    %v2104 = vpop.permute.xlu0 %2103
    %2105 = vrot.lane.b32.xlu0 %v2092, 96
    %v2106 = vpop.permute.xlu0 %2105
    %v2108 = vsel %vm305, %v1979, 0
    %v2111 = vsel %vm305, %v1980, 0
    %v2113 = vsel %vm305, %v2096, 0
    %v2115 = vsel %vm305, %v2098, 0
    %v2117 = vsel %vm305, %v2100, 0
    %v2119 = vsel %vm305, %v2102, 0
    %v2121 = vsel %vm305, %v2104, 0
    %v2123 = vsel %vm305, %v2106, 0
    %2125 = vmatprep.subr.mxu0 0.0
    %2126 = vmatpush1.xpose.msra.mxu0 %v2113
    %2127 = vmatprep.subr.mxu0 0.0
    %2128 = vmatpush1.xpose.msra.mxu0 %v2115
    %2129 = vmatprep.subr.mxu0 0.0
    %2130 = vmatpush1.xpose.msra.mxu0 %v2117
    %2131 = vmatprep.subr.mxu0 0.0
    %2132 = vmatpush1.xpose.msra.mxu0 %v2119
    %2133 = vmatprep.subr.mxu0 0.0
    %2134 = vmatpush1.xpose.msra.mxu0 %v2121
    %2135 = vmatprep.subr.mxu0 0.0
    %2136 = vmatpush1.xpose.msra.mxu0 %v2123
    %2137 = vmatprep.subr.mxu0 0.0
    %2138 = vmatpush1.xpose.msra.mxu0 0.0
    %2139 = vmatprep.subr.mxu0 0.0
    %2140 = vmatpush1.xpose.msra.mxu0 0.0
    %2141 = vmatprep.subr.mxu0 0.0
    %2142 = vmatpush1.xpose.msra.mxu0 0.0
    %2143 = vmatprep.subr.mxu0 0.0
    %2144 = vmatpush1.xpose.msra.mxu0 0.0
    %2145 = vmatprep.subr.mxu0 0.0
    %2146 = vmatpush1.xpose.msra.mxu0 0.0
    %2147 = vmatprep.subr.mxu0 0.0
    %2148 = vmatpush1.xpose.msra.mxu0 0.0
    %2149 = vmatprep.subr.mxu0 0.0
    %2150 = vmatpush1.xpose.msra.mxu0 0.0
    %2151 = vmatprep.subr.mxu0 0.0
    %2152 = vmatpush1.xpose.msra.mxu0 0.0
    %2153 = vmatprep.subr.mxu0 0.0
    %2154 = vmatpush1.xpose.msra.mxu0 0.0
    %2155 = vmatprep.subr.mxu0 0.0
    %2156 = vmatpush1.xpose.msra.mxu0 0.0
    %2157 = vmatprep.subr.mxu0 0.0
    %2158 = vmatpush1.xpose.msra.mxu0 0.0
    %2159 = vmatprep.subr.mxu0 0.0
    %2160 = vmatpush1.xpose.msra.mxu0 0.0
    %2161 = vmatprep.subr.mxu0 0.0
    %2162 = vmatpush1.xpose.msra.mxu0 0.0
    %2163 = vmatprep.subr.mxu0 0.0
    %2164 = vmatpush1.xpose.msra.mxu0 0.0
    %2165 = vmatprep.subr.mxu0 0.0
    %2166 = vmatpush1.xpose.msra.mxu0 0.0
    %2167 = vmatprep.subr.mxu0 0.0
    %2168 = vmatpush1.xpose.msra.mxu0 0.0
    %2169 = vmatprep.subr.mxu0 0.0
    %2170 = vmatpush1.xpose.msra.mxu0 0.0
    %2171 = vmatprep.subr.mxu0 0.0
    %2172 = vmatpush1.xpose.msra.mxu0 0.0
    %2173 = vmatprep.subr.mxu0 0.0
    %2174 = vmatpush1.xpose.msra.mxu0 0.0
    %2175 = vmatprep.subr.mxu0 0.0
    %2176 = vmatpush1.xpose.msra.mxu0 0.0
    %2177 = vmatprep.subr.mxu0 0.0
    %2178 = vmatpush1.xpose.msra.mxu0 0.0
    %2179 = vmatprep.subr.mxu0 0.0
    %2180 = vmatpush1.xpose.msra.mxu0 0.0
    %2181 = vmatprep.subr.mxu0 0.0
    %2182 = vmatpush1.xpose.msra.mxu0 0.0
    %2183 = vmatprep.subr.mxu0 0.0
    %2184 = vmatpush1.xpose.msra.mxu0 0.0
    %2185 = vmatprep.subr.mxu0 0.0
    %2186 = vmatpush1.xpose.msra.mxu0 0.0
    %2187 = vmatprep.subr.mxu0 0.0
    %2188 = vmatpush1.xpose.msra.mxu0 0.0
    %2189 = vmatprep.mubr.f32.mxu0 0.0
    %2190 = vmatmul.mubr.f32.gmra.mrb[0].mxu0 %v2108
    %v2191 = vpop.f32.mrb[0].mxu0
    %v2192 = vadd.f32 0.0, %v2191
    %v2193 = vpop.f32.mrb[0].mxu0
    %2194 = vmatprep.mubr.f32.mxu0 0.0
    %2195 = vmatmul.mubr.f32.gmra.mrb[0].mxu0 %v2111
    %v2196 = vpop.f32.mrb[0].mxu0
    %v2197 = vadd.f32 0.0, %v2196
    %v2198 = vpop.f32.mrb[0].mxu0
    %2199 = vdwg.mxu0
    %v2200 = vsel %vm289, %v2192, -1e+30
    %v2201 = vsel %vm290, %v2197, -1e+30
    %vm2202 = vcmask 130048
    %v2203 = vsel %vm2202, %v2200, -inf
    %2204 = vmax.xlane.f32.xlu0 %v2203
    %v2205 = vpop.xlane.xlu0 %2204
    %v2206 = vsel %vm2202, %v2201, -inf
    %2207 = vmax.xlane.f32.xlu0 %v2206
    %v2208 = vpop.xlane.xlu0 %2207
    %v2209 = vsub.f32 %v2200, %v2205
    %v2210 = vsub.f32 %v2201, %v2208
    %v2211 = vmul.f32 %v2209, 1.442695
    %v2212 = vpow.pop %v2211
    %v2213 = vmul.f32 %v2210, 1.442695
    %v2214 = vpow.pop %v2213
    %v2215 = vsel %vm2202, %v2212, 0.0
    %2216 = vadd.xlane.f32.xlu0 %v2215
    %v2217 = vpop.xlane.xlu0 %2216
    %v2218 = vsel %vm2202, %v2214, 0.0
    %2219 = vadd.xlane.f32.xlu0 %v2218
    %v2220 = vpop.xlane.xlu0 %2219
    %v2221 = vrcp.pop %v2217
    %v2222 = vrcp.pop %v2220
    %v2223 = vmul.f32 %v2212, %v2221
    %v2224 = vmul.f32 %v2214, %v2222
    %2227 = vrot.lane.b32.xlu0 %v2192, 112
    %v2228 = vpop.permute.xlu0 %2227
    %2229 = vrot.lane.b32.xlu0 %v2197, 112
    %v2230 = vpop.permute.xlu0 %2229
    %v2233 = vsel %vm289, %v2228, -1e+30
    %v2234 = vsel %vm290, %v2230, -1e+30
    %v2235 = vsel %vm84, %v2233, -inf
    %2236 = vmax.xlane.f32.xlu0 %v2235
    %v2237 = vpop.xlane.xlu0 %2236
    %v2238 = vsel %vm84, %v2234, -inf
    %2239 = vmax.xlane.f32.xlu0 %v2238
    %v2240 = vpop.xlane.xlu0 %2239
    %v2241 = vsub.f32 %v2233, %v2237
    %v2242 = vsub.f32 %v2234, %v2240
    %v2243 = vmul.f32 %v2241, 1.442695
    %v2244 = vpow.pop %v2243
    %v2245 = vmul.f32 %v2242, 1.442695
    %v2246 = vpow.pop %v2245
    %v2247 = vsel %vm84, %v2244, 0.0
    %2248 = vadd.xlane.f32.xlu0 %v2247
    %v2249 = vpop.xlane.xlu0 %2248
    %v2250 = vsel %vm84, %v2246, 0.0
    %2251 = vadd.xlane.f32.xlu0 %v2250
    %v2252 = vpop.xlane.xlu0 %2251
    %v2253 = vrcp.pop %v2249
    %v2254 = vrcp.pop %v2252
    %v2255 = vmul.f32 %v2244, %v2253
    %v2256 = vmul.f32 %v2246, %v2254
    %2257 = vrot.lane.b32.xlu0 %v2063, 96
    %v2258 = vpop.permute.xlu0 %2257
    %2259 = vrot.lane.b32.xlu0 %v2068, 96
    %v2260 = vpop.permute.xlu0 %2259
    %2261 = vrot.lane.b32.xlu0 %v2073, 96
    %v2262 = vpop.permute.xlu0 %2261
    %2263 = vrot.lane.b32.xlu0 %v2078, 96
    %v2264 = vpop.permute.xlu0 %2263
    %v2270 = vsel %vm84, %v2255, 0
    %v2273 = vsel %vm84, %v2256, 0
    %2275 = vmatprep.subr.mxu0 0.0
    %2276 = vmatpush1.msra.mxu0 %v2258
    %2277 = vmatprep.subr.mxu0 0.0
    %2278 = vmatpush1.msra.mxu0 %v2260
    %2279 = vmatprep.subr.mxu0 0.0
    %2280 = vmatpush1.msra.mxu0 %v2262
    %2281 = vmatprep.subr.mxu0 0.0
    %2282 = vmatpush1.msra.mxu0 %v2264
    %2283 = vmatprep.subr.mxu0 0.0
    %2284 = vmatpush1.msra.mxu0 0.0
    %2285 = vmatprep.subr.mxu0 0.0
    %2286 = vmatpush1.msra.mxu0 0.0
    %2287 = vmatprep.subr.mxu0 0.0
    %2288 = vmatpush1.msra.mxu0 0.0
    %2289 = vmatprep.subr.mxu0 0.0
    %2290 = vmatpush1.msra.mxu0 0.0
    %2291 = vmatprep.subr.mxu0 0.0
    %2292 = vmatpush1.msra.mxu0 0.0
    %2293 = vmatprep.subr.mxu0 0.0
    %2294 = vmatpush1.msra.mxu0 0.0
    %2295 = vmatprep.subr.mxu0 0.0
    %2296 = vmatpush1.msra.mxu0 0.0
    %2297 = vmatprep.subr.mxu0 0.0
    %2298 = vmatpush1.msra.mxu0 0.0
    %2299 = vmatprep.subr.mxu0 0.0
    %2300 = vmatpush1.msra.mxu0 0.0
    %2301 = vmatprep.subr.mxu0 0.0
    %2302 = vmatpush1.msra.mxu0 0.0
    %2303 = vmatprep.subr.mxu0 0.0
    %2304 = vmatpush1.msra.mxu0 0.0
    %2305 = vmatprep.subr.mxu0 0.0
    %2306 = vmatpush1.msra.mxu0 0.0
    %2307 = vmatprep.subr.mxu0 0.0
    %2308 = vmatpush1.msra.mxu0 0.0
    %2309 = vmatprep.subr.mxu0 0.0
    %2310 = vmatpush1.msra.mxu0 0.0
    %2311 = vmatprep.subr.mxu0 0.0
    %2312 = vmatpush1.msra.mxu0 0.0
    %2313 = vmatprep.subr.mxu0 0.0
    %2314 = vmatpush1.msra.mxu0 0.0
    %2315 = vmatprep.subr.mxu0 0.0
    %2316 = vmatpush1.msra.mxu0 0.0
    %2317 = vmatprep.subr.mxu0 0.0
    %2318 = vmatpush1.msra.mxu0 0.0
    %2319 = vmatprep.subr.mxu0 0.0
    %2320 = vmatpush1.msra.mxu0 0.0
    %2321 = vmatprep.subr.mxu0 0.0
    %2322 = vmatpush1.msra.mxu0 0.0
    %2323 = vmatprep.subr.mxu0 0.0
    %2324 = vmatpush1.msra.mxu0 0.0
    %2325 = vmatprep.subr.mxu0 0.0
    %2326 = vmatpush1.msra.mxu0 0.0
    %2327 = vmatprep.subr.mxu0 0.0
    %2328 = vmatpush1.msra.mxu0 0.0
    %2329 = vmatprep.subr.mxu0 0.0
    %2330 = vmatpush1.msra.mxu0 0.0
    %2331 = vmatprep.subr.mxu0 0.0
    %2332 = vmatpush1.msra.mxu0 0.0
    %2333 = vmatprep.subr.mxu0 0.0
    %2334 = vmatpush1.msra.mxu0 0.0
    %2335 = vmatprep.subr.mxu0 0.0
    %2336 = vmatpush1.msra.mxu0 0.0
    %2337 = vmatprep.subr.mxu0 0.0
    %2338 = vmatpush1.msra.mxu0 0.0
    %2339 = vmatprep.mubr.f32.mxu0 0.0
    %2340 = vmatmul.mubr.f32.gmra.mrb[0].mxu0 %v2270
    %v2341 = vpop.f32.mrb[0].mxu0
    %v2342 = vadd.f32 0.0, %v2341
    %v2343 = vpop.f32.mrb[0].mxu0
    %2344 = vmatprep.mubr.f32.mxu0 0.0
    %2345 = vmatmul.mubr.f32.gmra.mrb[0].mxu0 %v2273
    %v2346 = vpop.f32.mrb[0].mxu0
    %v2347 = vadd.f32 0.0, %v2346
    %v2348 = vpop.f32.mrb[0].mxu0
    %2349 = vdwg.mxu0
    %2350 = vrot.lane.b32.xlu0 %v1971, 64
    %v2351 = vpop.permute.xlu0 %2350
    %2352 = vrot.lane.b32.xlu0 %v1976, 64
    %v2353 = vpop.permute.xlu0 %2352
    %v2357 = vsel %vm2202, %v2223, 0
    %v2360 = vsel %vm2202, %v2224, 0
    %2362 = vmatprep.subr.mxu0 0.0
    %2363 = vmatpush1.msra.mxu0 %v2351
    %2364 = vmatprep.subr.mxu0 0.0
    %2365 = vmatpush1.msra.mxu0 %v2353
    %2366 = vmatprep.subr.mxu0 0.0
    %2367 = vmatpush1.msra.mxu0 0.0
    %2368 = vmatprep.subr.mxu0 0.0
    %2369 = vmatpush1.msra.mxu0 0.0
    %2370 = vmatprep.subr.mxu0 0.0
    %2371 = vmatpush1.msra.mxu0 0.0
    %2372 = vmatprep.subr.mxu0 0.0
    %2373 = vmatpush1.msra.mxu0 0.0
    %2374 = vmatprep.subr.mxu0 0.0
    %2375 = vmatpush1.msra.mxu0 0.0
    %2376 = vmatprep.subr.mxu0 0.0
    %2377 = vmatpush1.msra.mxu0 0.0
    %2378 = vmatprep.subr.mxu0 0.0
    %2379 = vmatpush1.msra.mxu0 0.0
    %2380 = vmatprep.subr.mxu0 0.0
    %2381 = vmatpush1.msra.mxu0 0.0
    %2382 = vmatprep.subr.mxu0 0.0
    %2383 = vmatpush1.msra.mxu0 0.0
    %2384 = vmatprep.subr.mxu0 0.0
    %2385 = vmatpush1.msra.mxu0 0.0
    %2386 = vmatprep.subr.mxu0 0.0
    %2387 = vmatpush1.msra.mxu0 0.0
    %2388 = vmatprep.subr.mxu0 0.0
    %2389 = vmatpush1.msra.mxu0 0.0
    %2390 = vmatprep.subr.mxu0 0.0
    %2391 = vmatpush1.msra.mxu0 0.0
    %2392 = vmatprep.subr.mxu0 0.0
    %2393 = vmatpush1.msra.mxu0 0.0
    %2394 = vmatprep.subr.mxu0 0.0
    %2395 = vmatpush1.msra.mxu0 0.0
    %2396 = vmatprep.subr.mxu0 0.0
    %2397 = vmatpush1.msra.mxu0 0.0
    %2398 = vmatprep.subr.mxu0 0.0
    %2399 = vmatpush1.msra.mxu0 0.0
    %2400 = vmatprep.subr.mxu0 0.0
    %2401 = vmatpush1.msra.mxu0 0.0
    %2402 = vmatprep.subr.mxu0 0.0
    %2403 = vmatpush1.msra.mxu0 0.0
    %2404 = vmatprep.subr.mxu0 0.0
    %2405 = vmatpush1.msra.mxu0 0.0
    %2406 = vmatprep.subr.mxu0 0.0
    %2407 = vmatpush1.msra.mxu0 0.0
    %2408 = vmatprep.subr.mxu0 0.0
    %2409 = vmatpush1.msra.mxu0 0.0
    %2410 = vmatprep.subr.mxu0 0.0
    %2411 = vmatpush1.msra.mxu0 0.0
    %2412 = vmatprep.subr.mxu0 0.0
    %2413 = vmatpush1.msra.mxu0 0.0
    %2414 = vmatprep.subr.mxu0 0.0
    %2415 = vmatpush1.msra.mxu0 0.0
    %2416 = vmatprep.subr.mxu0 0.0
    %2417 = vmatpush1.msra.mxu0 0.0
    %2418 = vmatprep.subr.mxu0 0.0
    %2419 = vmatpush1.msra.mxu0 0.0
    %2420 = vmatprep.subr.mxu0 0.0
    %2421 = vmatpush1.msra.mxu0 0.0
    %2422 = vmatprep.subr.mxu0 0.0
    %2423 = vmatpush1.msra.mxu0 0.0
    %2424 = vmatprep.subr.mxu0 0.0
    %2425 = vmatpush1.msra.mxu0 0.0
    %2426 = vmatprep.mubr.f32.mxu0 0.0
    %2427 = vmatmul.mubr.f32.gmra.mrb[0].mxu0 %v2357
    %v2428 = vpop.f32.mrb[0].mxu0
    %v2429 = vadd.f32 %v2342, %v2428
    %v2430 = vpop.f32.mrb[0].mxu0
    %2431 = vmatprep.mubr.f32.mxu0 0.0
    %2432 = vmatmul.mubr.f32.gmra.mrb[0].mxu0 %v2360
    %v2433 = vpop.f32.mrb[0].mxu0
    %v2434 = vadd.f32 %v2347, %v2433
    %v2435 = vpop.f32.mrb[0].mxu0
    %2436 = vdwg.mxu0
    %2437 = vrot.lane.b32.xlu0 %v1979, 120
    %v2438 = vpop.permute.xlu0 %2437
    %2439 = vrot.lane.b32.xlu0 %v1980, 120
    %v2440 = vpop.permute.xlu0 %2439
    %2441 = vrot.lane.b32.xlu0 %v1971, 88
    %v2442 = vpop.permute.xlu0 %2441
    %2443 = vrot.lane.b32.xlu0 %v1976, 88
    %v2444 = vpop.permute.xlu0 %2443
    %2445 = vrot.lane.b32.xlu0 %v2086, 88
    %v2446 = vpop.permute.xlu0 %2445
    %2447 = vrot.lane.b32.xlu0 %v2088, 88
    %v2448 = vpop.permute.xlu0 %2447
    %2449 = vrot.lane.b32.xlu0 %v2090, 88
    %v2450 = vpop.permute.xlu0 %2449
    %2451 = vrot.lane.b32.xlu0 %v2092, 88
    %v2452 = vpop.permute.xlu0 %2451
    %v2453 = vsel %vm305, %v2438, 0
    %v2455 = vsel %vm305, %v2440, 0
    %v2457 = vsel %vm305, %v2442, 0
    %v2459 = vsel %vm305, %v2444, 0
    %v2461 = vsel %vm305, %v2446, 0
    %v2463 = vsel %vm305, %v2448, 0
    %v2465 = vsel %vm305, %v2450, 0
    %v2467 = vsel %vm305, %v2452, 0
    %2469 = vmatprep.subr.mxu0 0.0
    %2470 = vmatpush1.xpose.msra.mxu0 %v2457
    %2471 = vmatprep.subr.mxu0 0.0
    %2472 = vmatpush1.xpose.msra.mxu0 %v2459
    %2473 = vmatprep.subr.mxu0 0.0
    %2474 = vmatpush1.xpose.msra.mxu0 %v2461
    %2475 = vmatprep.subr.mxu0 0.0
    %2476 = vmatpush1.xpose.msra.mxu0 %v2463
    %2477 = vmatprep.subr.mxu0 0.0
    %2478 = vmatpush1.xpose.msra.mxu0 %v2465
    %2479 = vmatprep.subr.mxu0 0.0
    %2480 = vmatpush1.xpose.msra.mxu0 %v2467
    %2481 = vmatprep.subr.mxu0 0.0
    %2482 = vmatpush1.xpose.msra.mxu0 0.0
    %2483 = vmatprep.subr.mxu0 0.0
    %2484 = vmatpush1.xpose.msra.mxu0 0.0
    %2485 = vmatprep.subr.mxu0 0.0
    %2486 = vmatpush1.xpose.msra.mxu0 0.0
    %2487 = vmatprep.subr.mxu0 0.0
    %2488 = vmatpush1.xpose.msra.mxu0 0.0
    %2489 = vmatprep.subr.mxu0 0.0
    %2490 = vmatpush1.xpose.msra.mxu0 0.0
    %2491 = vmatprep.subr.mxu0 0.0
    %2492 = vmatpush1.xpose.msra.mxu0 0.0
    %2493 = vmatprep.subr.mxu0 0.0
    %2494 = vmatpush1.xpose.msra.mxu0 0.0
    %2495 = vmatprep.subr.mxu0 0.0
    %2496 = vmatpush1.xpose.msra.mxu0 0.0
    %2497 = vmatprep.subr.mxu0 0.0
    %2498 = vmatpush1.xpose.msra.mxu0 0.0
    %2499 = vmatprep.subr.mxu0 0.0
    %2500 = vmatpush1.xpose.msra.mxu0 0.0
    %2501 = vmatprep.subr.mxu0 0.0
    %2502 = vmatpush1.xpose.msra.mxu0 0.0
    %2503 = vmatprep.subr.mxu0 0.0
    %2504 = vmatpush1.xpose.msra.mxu0 0.0
    %2505 = vmatprep.subr.mxu0 0.0
    %2506 = vmatpush1.xpose.msra.mxu0 0.0
    %2507 = vmatprep.subr.mxu0 0.0
    %2508 = vmatpush1.xpose.msra.mxu0 0.0
    %2509 = vmatprep.subr.mxu0 0.0
    %2510 = vmatpush1.xpose.msra.mxu0 0.0
    %2511 = vmatprep.subr.mxu0 0.0
    %2512 = vmatpush1.xpose.msra.mxu0 0.0
    %2513 = vmatprep.subr.mxu0 0.0
    %2514 = vmatpush1.xpose.msra.mxu0 0.0
    %2515 = vmatprep.subr.mxu0 0.0
    %2516 = vmatpush1.xpose.msra.mxu0 0.0
    %2517 = vmatprep.subr.mxu0 0.0
    %2518 = vmatpush1.xpose.msra.mxu0 0.0
    %2519 = vmatprep.subr.mxu0 0.0
    %2520 = vmatpush1.xpose.msra.mxu0 0.0
    %2521 = vmatprep.subr.mxu0 0.0
    %2522 = vmatpush1.xpose.msra.mxu0 0.0
    %2523 = vmatprep.subr.mxu0 0.0
    %2524 = vmatpush1.xpose.msra.mxu0 0.0
    %2525 = vmatprep.subr.mxu0 0.0
    %2526 = vmatpush1.xpose.msra.mxu0 0.0
    %2527 = vmatprep.subr.mxu0 0.0
    %2528 = vmatpush1.xpose.msra.mxu0 0.0
    %2529 = vmatprep.subr.mxu0 0.0
    %2530 = vmatpush1.xpose.msra.mxu0 0.0
    %2531 = vmatprep.subr.mxu0 0.0
    %2532 = vmatpush1.xpose.msra.mxu0 0.0
    %2533 = vmatprep.mubr.f32.mxu0 0.0
    %2534 = vmatmul.mubr.f32.gmra.mrb[0].mxu0 %v2453
    %v2535 = vpop.f32.mrb[0].mxu0
    %v2536 = vadd.f32 0.0, %v2535
    %v2537 = vpop.f32.mrb[0].mxu0
    %2538 = vmatprep.mubr.f32.mxu0 0.0
    %2539 = vmatmul.mubr.f32.gmra.mrb[0].mxu0 %v2455
    %v2540 = vpop.f32.mrb[0].mxu0
    %v2541 = vadd.f32 0.0, %v2540
    %v2542 = vpop.f32.mrb[0].mxu0
    %2543 = vdwg.mxu0
    %v2544 = vsel %vm289, %v2536, -1e+30
    %v2545 = vsel %vm290, %v2541, -1e+30
    %v2546 = vsel %vm2202, %v2544, -inf
    %2547 = vmax.xlane.f32.xlu0 %v2546
    %v2548 = vpop.xlane.xlu0 %2547
    %v2549 = vsel %vm2202, %v2545, -inf
    %2550 = vmax.xlane.f32.xlu0 %v2549
    %v2551 = vpop.xlane.xlu0 %2550
    %v2552 = vsub.f32 %v2544, %v2548
    %v2553 = vsub.f32 %v2545, %v2551
    %v2554 = vmul.f32 %v2552, 1.442695
    %v2555 = vpow.pop %v2554
    %v2556 = vmul.f32 %v2553, 1.442695
    %v2557 = vpow.pop %v2556
    %v2558 = vsel %vm2202, %v2555, 0.0
    %2559 = vadd.xlane.f32.xlu0 %v2558
    %v2560 = vpop.xlane.xlu0 %2559
    %v2561 = vsel %vm2202, %v2557, 0.0
    %2562 = vadd.xlane.f32.xlu0 %v2561
    %v2563 = vpop.xlane.xlu0 %2562
    %v2564 = vrcp.pop %v2560
    %v2565 = vrcp.pop %v2563
    %v2566 = vmul.f32 %v2555, %v2564
    %v2567 = vmul.f32 %v2557, %v2565
    %2570 = vrot.lane.b32.xlu0 %v2536, 112
    %v2571 = vpop.permute.xlu0 %2570
    %2572 = vrot.lane.b32.xlu0 %v2541, 112
    %v2573 = vpop.permute.xlu0 %2572
    %v2576 = vsel %vm289, %v2571, -1e+30
    %v2577 = vsel %vm290, %v2573, -1e+30
    %v2578 = vsel %vm84, %v2576, -inf
    %2579 = vmax.xlane.f32.xlu0 %v2578
    %v2580 = vpop.xlane.xlu0 %2579
    %v2581 = vsel %vm84, %v2577, -inf
    %2582 = vmax.xlane.f32.xlu0 %v2581
    %v2583 = vpop.xlane.xlu0 %2582
    %v2584 = vsub.f32 %v2576, %v2580
    %v2585 = vsub.f32 %v2577, %v2583
    %v2586 = vmul.f32 %v2584, 1.442695
    %v2587 = vpow.pop %v2586
    %v2588 = vmul.f32 %v2585, 1.442695
    %v2589 = vpow.pop %v2588
    %v2590 = vsel %vm84, %v2587, 0.0
    %2591 = vadd.xlane.f32.xlu0 %v2590
    %v2592 = vpop.xlane.xlu0 %2591
    %v2593 = vsel %vm84, %v2589, 0.0
    %2594 = vadd.xlane.f32.xlu0 %v2593
    %v2595 = vpop.xlane.xlu0 %2594
    %v2596 = vrcp.pop %v2592
    %v2597 = vrcp.pop %v2595
    %v2598 = vmul.f32 %v2587, %v2596
    %v2599 = vmul.f32 %v2589, %v2597
    %2600 = vrot.lane.b32.xlu0 %v2063, 88
    %v2601 = vpop.permute.xlu0 %2600
    %2602 = vrot.lane.b32.xlu0 %v2068, 88
    %v2603 = vpop.permute.xlu0 %2602
    %2604 = vrot.lane.b32.xlu0 %v2073, 88
    %v2605 = vpop.permute.xlu0 %2604
    %2606 = vrot.lane.b32.xlu0 %v2078, 88
    %v2607 = vpop.permute.xlu0 %2606
    %v2613 = vsel %vm84, %v2598, 0
    %v2616 = vsel %vm84, %v2599, 0
    %2618 = vmatprep.subr.mxu0 0.0
    %2619 = vmatpush1.msra.mxu0 %v2601
    %2620 = vmatprep.subr.mxu0 0.0
    %2621 = vmatpush1.msra.mxu0 %v2603
    %2622 = vmatprep.subr.mxu0 0.0
    %2623 = vmatpush1.msra.mxu0 %v2605
    %2624 = vmatprep.subr.mxu0 0.0
    %2625 = vmatpush1.msra.mxu0 %v2607
    %2626 = vmatprep.subr.mxu0 0.0
    %2627 = vmatpush1.msra.mxu0 0.0
    %2628 = vmatprep.subr.mxu0 0.0
    %2629 = vmatpush1.msra.mxu0 0.0
    %2630 = vmatprep.subr.mxu0 0.0
    %2631 = vmatpush1.msra.mxu0 0.0
    %2632 = vmatprep.subr.mxu0 0.0
    %2633 = vmatpush1.msra.mxu0 0.0
    %2634 = vmatprep.subr.mxu0 0.0
    %2635 = vmatpush1.msra.mxu0 0.0
    %2636 = vmatprep.subr.mxu0 0.0
    %2637 = vmatpush1.msra.mxu0 0.0
    %2638 = vmatprep.subr.mxu0 0.0
    %2639 = vmatpush1.msra.mxu0 0.0
    %2640 = vmatprep.subr.mxu0 0.0
    %2641 = vmatpush1.msra.mxu0 0.0
    %2642 = vmatprep.subr.mxu0 0.0
    %2643 = vmatpush1.msra.mxu0 0.0
    %2644 = vmatprep.subr.mxu0 0.0
    %2645 = vmatpush1.msra.mxu0 0.0
    %2646 = vmatprep.subr.mxu0 0.0
    %2647 = vmatpush1.msra.mxu0 0.0
    %2648 = vmatprep.subr.mxu0 0.0
    %2649 = vmatpush1.msra.mxu0 0.0
    %2650 = vmatprep.subr.mxu0 0.0
    %2651 = vmatpush1.msra.mxu0 0.0
    %2652 = vmatprep.subr.mxu0 0.0
    %2653 = vmatpush1.msra.mxu0 0.0
    %2654 = vmatprep.subr.mxu0 0.0
    %2655 = vmatpush1.msra.mxu0 0.0
    %2656 = vmatprep.subr.mxu0 0.0
    %2657 = vmatpush1.msra.mxu0 0.0
    %2658 = vmatprep.subr.mxu0 0.0
    %2659 = vmatpush1.msra.mxu0 0.0
    %2660 = vmatprep.subr.mxu0 0.0
    %2661 = vmatpush1.msra.mxu0 0.0
    %2662 = vmatprep.subr.mxu0 0.0
    %2663 = vmatpush1.msra.mxu0 0.0
    %2664 = vmatprep.subr.mxu0 0.0
    %2665 = vmatpush1.msra.mxu0 0.0
    %2666 = vmatprep.subr.mxu0 0.0
    %2667 = vmatpush1.msra.mxu0 0.0
    %2668 = vmatprep.subr.mxu0 0.0
    %2669 = vmatpush1.msra.mxu0 0.0
    %2670 = vmatprep.subr.mxu0 0.0
    %2671 = vmatpush1.msra.mxu0 0.0
    %2672 = vmatprep.subr.mxu0 0.0
    %2673 = vmatpush1.msra.mxu0 0.0
    %2674 = vmatprep.subr.mxu0 0.0
    %2675 = vmatpush1.msra.mxu0 0.0
    %2676 = vmatprep.subr.mxu0 0.0
    %2677 = vmatpush1.msra.mxu0 0.0
    %2678 = vmatprep.subr.mxu0 0.0
    %2679 = vmatpush1.msra.mxu0 0.0
    %2680 = vmatprep.subr.mxu0 0.0
    %2681 = vmatpush1.msra.mxu0 0.0
    %2682 = vmatprep.mubr.f32.mxu0 0.0
    %2683 = vmatmul.mubr.f32.gmra.mrb[0].mxu0 %v2613
    %v2684 = vpop.f32.mrb[0].mxu0
    %v2685 = vadd.f32 0.0, %v2684
    %v2686 = vpop.f32.mrb[0].mxu0
    %2687 = vmatprep.mubr.f32.mxu0 0.0
    %2688 = vmatmul.mubr.f32.gmra.mrb[0].mxu0 %v2616
    %v2689 = vpop.f32.mrb[0].mxu0
    %v2690 = vadd.f32 0.0, %v2689
    %v2691 = vpop.f32.mrb[0].mxu0
    %2692 = vdwg.mxu0
    %2693 = vrot.lane.b32.xlu0 %v1971, 56
    %v2694 = vpop.permute.xlu0 %2693
    %2695 = vrot.lane.b32.xlu0 %v1976, 56
    %v2696 = vpop.permute.xlu0 %2695
    %v2700 = vsel %vm2202, %v2566, 0
    %v2703 = vsel %vm2202, %v2567, 0
    %2705 = vmatprep.subr.mxu0 0.0
    %2706 = vmatpush1.msra.mxu0 %v2694
    %2707 = vmatprep.subr.mxu0 0.0
    %2708 = vmatpush1.msra.mxu0 %v2696
    %2709 = vmatprep.subr.mxu0 0.0
    %2710 = vmatpush1.msra.mxu0 0.0
    %2711 = vmatprep.subr.mxu0 0.0
    %2712 = vmatpush1.msra.mxu0 0.0
    %2713 = vmatprep.subr.mxu0 0.0
    %2714 = vmatpush1.msra.mxu0 0.0
    %2715 = vmatprep.subr.mxu0 0.0
    %2716 = vmatpush1.msra.mxu0 0.0
    %2717 = vmatprep.subr.mxu0 0.0
    %2718 = vmatpush1.msra.mxu0 0.0
    %2719 = vmatprep.subr.mxu0 0.0
    %2720 = vmatpush1.msra.mxu0 0.0
    %2721 = vmatprep.subr.mxu0 0.0
    %2722 = vmatpush1.msra.mxu0 0.0
    %2723 = vmatprep.subr.mxu0 0.0
    %2724 = vmatpush1.msra.mxu0 0.0
    %2725 = vmatprep.subr.mxu0 0.0
    %2726 = vmatpush1.msra.mxu0 0.0
    %2727 = vmatprep.subr.mxu0 0.0
    %2728 = vmatpush1.msra.mxu0 0.0
    %2729 = vmatprep.subr.mxu0 0.0
    %2730 = vmatpush1.msra.mxu0 0.0
    %2731 = vmatprep.subr.mxu0 0.0
    %2732 = vmatpush1.msra.mxu0 0.0
    %2733 = vmatprep.subr.mxu0 0.0
    %2734 = vmatpush1.msra.mxu0 0.0
    %2735 = vmatprep.subr.mxu0 0.0
    %2736 = vmatpush1.msra.mxu0 0.0
    %2737 = vmatprep.subr.mxu0 0.0
    %2738 = vmatpush1.msra.mxu0 0.0
    %2739 = vmatprep.subr.mxu0 0.0
    %2740 = vmatpush1.msra.mxu0 0.0
    %2741 = vmatprep.subr.mxu0 0.0
    %2742 = vmatpush1.msra.mxu0 0.0
    %2743 = vmatprep.subr.mxu0 0.0
    %2744 = vmatpush1.msra.mxu0 0.0
    %2745 = vmatprep.subr.mxu0 0.0
    %2746 = vmatpush1.msra.mxu0 0.0
    %2747 = vmatprep.subr.mxu0 0.0
    %2748 = vmatpush1.msra.mxu0 0.0
    %2749 = vmatprep.subr.mxu0 0.0
    %2750 = vmatpush1.msra.mxu0 0.0
    %2751 = vmatprep.subr.mxu0 0.0
    %2752 = vmatpush1.msra.mxu0 0.0
    %2753 = vmatprep.subr.mxu0 0.0
    %2754 = vmatpush1.msra.mxu0 0.0
    %2755 = vmatprep.subr.mxu0 0.0
    %2756 = vmatpush1.msra.mxu0 0.0
    %2757 = vmatprep.subr.mxu0 0.0
    %2758 = vmatpush1.msra.mxu0 0.0
    %2759 = vmatprep.subr.mxu0 0.0
    %2760 = vmatpush1.msra.mxu0 0.0
    %2761 = vmatprep.subr.mxu0 0.0
    %2762 = vmatpush1.msra.mxu0 0.0
    %2763 = vmatprep.subr.mxu0 0.0
    %2764 = vmatpush1.msra.mxu0 0.0
    %2765 = vmatprep.subr.mxu0 0.0
    %2766 = vmatpush1.msra.mxu0 0.0
    %2767 = vmatprep.subr.mxu0 0.0
    %2768 = vmatpush1.msra.mxu0 0.0
    %2769 = vmatprep.mubr.f32.mxu0 0.0
    %2770 = vmatmul.mubr.f32.gmra.mrb[0].mxu0 %v2700
    %v2771 = vpop.f32.mrb[0].mxu0
    %v2772 = vadd.f32 %v2685, %v2771
    %v2773 = vpop.f32.mrb[0].mxu0
    %2774 = vmatprep.mubr.f32.mxu0 0.0
    %2775 = vmatmul.mubr.f32.gmra.mrb[0].mxu0 %v2703
    %v2776 = vpop.f32.mrb[0].mxu0
    %v2777 = vadd.f32 %v2690, %v2776
    %v2778 = vpop.f32.mrb[0].mxu0
    %2779 = vdwg.mxu0
    %2784 = vrot.lane.b32.xlu0 %v73, 120
    %v2785 = vpop.permute.xlu0 %2784
    %2786 = vrot.lane.b32.xlu0 %v74, 120
    %v2787 = vpop.permute.xlu0 %2786
    %2788 = vrot.lane.b32.xlu0 %v75, 120
    %v2789 = vpop.permute.xlu0 %2788
    %2790 = vrot.lane.b32.xlu0 %v76, 120
    %v2791 = vpop.permute.xlu0 %2790
    %v2793 = vsel %vm305, %v2772, 0
    %v2796 = vsel %vm305, %v2777, 0
    %v2798 = vsel %vm305, %v2785, 0
    %v2800 = vsel %vm305, %v2787, 0
    %v2802 = vsel %vm305, %v2789, 0
    %v2804 = vsel %vm305, %v2791, 0
    %2806 = vmatprep.subr.mxu0 0.0
    %2807 = vmatpush1.xpose.msra.mxu0 %v2798
    %2808 = vmatprep.subr.mxu0 0.0
    %2809 = vmatpush1.xpose.msra.mxu0 %v2800
    %2810 = vmatprep.subr.mxu0 0.0
    %2811 = vmatpush1.xpose.msra.mxu0 %v2802
    %2812 = vmatprep.subr.mxu0 0.0
    %2813 = vmatpush1.xpose.msra.mxu0 %v2804
    %2814 = vmatprep.subr.mxu0 0.0
    %2815 = vmatpush1.xpose.msra.mxu0 0.0
    %2816 = vmatprep.subr.mxu0 0.0
    %2817 = vmatpush1.xpose.msra.mxu0 0.0
    %2818 = vmatprep.subr.mxu0 0.0
    %2819 = vmatpush1.xpose.msra.mxu0 0.0
    %2820 = vmatprep.subr.mxu0 0.0
    %2821 = vmatpush1.xpose.msra.mxu0 0.0
    %2822 = vmatprep.subr.mxu0 0.0
    %2823 = vmatpush1.xpose.msra.mxu0 0.0
    %2824 = vmatprep.subr.mxu0 0.0
    %2825 = vmatpush1.xpose.msra.mxu0 0.0
    %2826 = vmatprep.subr.mxu0 0.0
    %2827 = vmatpush1.xpose.msra.mxu0 0.0
    %2828 = vmatprep.subr.mxu0 0.0
    %2829 = vmatpush1.xpose.msra.mxu0 0.0
    %2830 = vmatprep.subr.mxu0 0.0
    %2831 = vmatpush1.xpose.msra.mxu0 0.0
    %2832 = vmatprep.subr.mxu0 0.0
    %2833 = vmatpush1.xpose.msra.mxu0 0.0
    %2834 = vmatprep.subr.mxu0 0.0
    %2835 = vmatpush1.xpose.msra.mxu0 0.0
    %2836 = vmatprep.subr.mxu0 0.0
    %2837 = vmatpush1.xpose.msra.mxu0 0.0
    %2838 = vmatprep.subr.mxu0 0.0
    %2839 = vmatpush1.xpose.msra.mxu0 0.0
    %2840 = vmatprep.subr.mxu0 0.0
    %2841 = vmatpush1.xpose.msra.mxu0 0.0
    %2842 = vmatprep.subr.mxu0 0.0
    %2843 = vmatpush1.xpose.msra.mxu0 0.0
    %2844 = vmatprep.subr.mxu0 0.0
    %2845 = vmatpush1.xpose.msra.mxu0 0.0
    %2846 = vmatprep.subr.mxu0 0.0
    %2847 = vmatpush1.xpose.msra.mxu0 0.0
    %2848 = vmatprep.subr.mxu0 0.0
    %2849 = vmatpush1.xpose.msra.mxu0 0.0
    %2850 = vmatprep.subr.mxu0 0.0
    %2851 = vmatpush1.xpose.msra.mxu0 0.0
    %2852 = vmatprep.subr.mxu0 0.0
    %2853 = vmatpush1.xpose.msra.mxu0 0.0
    %2854 = vmatprep.subr.mxu0 0.0
    %2855 = vmatpush1.xpose.msra.mxu0 0.0
    %2856 = vmatprep.subr.mxu0 0.0
    %2857 = vmatpush1.xpose.msra.mxu0 0.0
    %2858 = vmatprep.subr.mxu0 0.0
    %2859 = vmatpush1.xpose.msra.mxu0 0.0
    %2860 = vmatprep.subr.mxu0 0.0
    %2861 = vmatpush1.xpose.msra.mxu0 0.0
    %2862 = vmatprep.subr.mxu0 0.0
    %2863 = vmatpush1.xpose.msra.mxu0 0.0
    %2864 = vmatprep.subr.mxu0 0.0
    %2865 = vmatpush1.xpose.msra.mxu0 0.0
    %2866 = vmatprep.subr.mxu0 0.0
    %2867 = vmatpush1.xpose.msra.mxu0 0.0
    %2868 = vmatprep.subr.mxu0 0.0
    %2869 = vmatpush1.xpose.msra.mxu0 0.0
    %2870 = vmatprep.mubr.f32.mxu0 0.0
    %2871 = vmatmul.mubr.f32.gmra.mrb[0].mxu0 %v2793
    %v2872 = vpop.f32.mrb[0].mxu0
    %v2873 = vadd.f32 0.0, %v2872
    %v2874 = vpop.f32.mrb[0].mxu0
    %2875 = vmatprep.mubr.f32.mxu0 0.0
    %2876 = vmatmul.mubr.f32.gmra.mrb[0].mxu0 %v2796
    %v2877 = vpop.f32.mrb[0].mxu0
    %v2878 = vadd.f32 0.0, %v2877
    %v2879 = vpop.f32.mrb[0].mxu0
    %2880 = vdwg.mxu0
    %v2882 = vsel %vm305, %v2429, 0
    %v2885 = vsel %vm305, %v2434, 0
    %v2887 = vsel %vm305, %v73, 0
    %v2889 = vsel %vm305, %v74, 0
    %v2891 = vsel %vm305, %v75, 0
    %v2893 = vsel %vm305, %v76, 0
    %2895 = vmatprep.subr.mxu0 0.0
    %2896 = vmatpush1.xpose.msra.mxu0 %v2887
    %2897 = vmatprep.subr.mxu0 0.0
    %2898 = vmatpush1.xpose.msra.mxu0 %v2889
    %2899 = vmatprep.subr.mxu0 0.0
    %2900 = vmatpush1.xpose.msra.mxu0 %v2891
    %2901 = vmatprep.subr.mxu0 0.0
    %2902 = vmatpush1.xpose.msra.mxu0 %v2893
    %2903 = vmatprep.subr.mxu0 0.0
    %2904 = vmatpush1.xpose.msra.mxu0 0.0
    %2905 = vmatprep.subr.mxu0 0.0
    %2906 = vmatpush1.xpose.msra.mxu0 0.0
    %2907 = vmatprep.subr.mxu0 0.0
    %2908 = vmatpush1.xpose.msra.mxu0 0.0
    %2909 = vmatprep.subr.mxu0 0.0
    %2910 = vmatpush1.xpose.msra.mxu0 0.0
    %2911 = vmatprep.subr.mxu0 0.0
    %2912 = vmatpush1.xpose.msra.mxu0 0.0
    %2913 = vmatprep.subr.mxu0 0.0
    %2914 = vmatpush1.xpose.msra.mxu0 0.0
    %2915 = vmatprep.subr.mxu0 0.0
    %2916 = vmatpush1.xpose.msra.mxu0 0.0
    %2917 = vmatprep.subr.mxu0 0.0
    %2918 = vmatpush1.xpose.msra.mxu0 0.0
    %2919 = vmatprep.subr.mxu0 0.0
    %2920 = vmatpush1.xpose.msra.mxu0 0.0
    %2921 = vmatprep.subr.mxu0 0.0
    %2922 = vmatpush1.xpose.msra.mxu0 0.0
    %2923 = vmatprep.subr.mxu0 0.0
    %2924 = vmatpush1.xpose.msra.mxu0 0.0
    %2925 = vmatprep.subr.mxu0 0.0
    %2926 = vmatpush1.xpose.msra.mxu0 0.0
    %2927 = vmatprep.subr.mxu0 0.0
    %2928 = vmatpush1.xpose.msra.mxu0 0.0
    %2929 = vmatprep.subr.mxu0 0.0
    %2930 = vmatpush1.xpose.msra.mxu0 0.0
    %2931 = vmatprep.subr.mxu0 0.0
    %2932 = vmatpush1.xpose.msra.mxu0 0.0
    %2933 = vmatprep.subr.mxu0 0.0
    %2934 = vmatpush1.xpose.msra.mxu0 0.0
    %2935 = vmatprep.subr.mxu0 0.0
    %2936 = vmatpush1.xpose.msra.mxu0 0.0
    %2937 = vmatprep.subr.mxu0 0.0
    %2938 = vmatpush1.xpose.msra.mxu0 0.0
    %2939 = vmatprep.subr.mxu0 0.0
    %2940 = vmatpush1.xpose.msra.mxu0 0.0
    %2941 = vmatprep.subr.mxu0 0.0
    %2942 = vmatpush1.xpose.msra.mxu0 0.0
    %2943 = vmatprep.subr.mxu0 0.0
    %2944 = vmatpush1.xpose.msra.mxu0 0.0
    %2945 = vmatprep.subr.mxu0 0.0
    %2946 = vmatpush1.xpose.msra.mxu0 0.0
    %2947 = vmatprep.subr.mxu0 0.0
    %2948 = vmatpush1.xpose.msra.mxu0 0.0
    %2949 = vmatprep.subr.mxu0 0.0
    %2950 = vmatpush1.xpose.msra.mxu0 0.0
    %2951 = vmatprep.subr.mxu0 0.0
    %2952 = vmatpush1.xpose.msra.mxu0 0.0
    %2953 = vmatprep.subr.mxu0 0.0
    %2954 = vmatpush1.xpose.msra.mxu0 0.0
    %2955 = vmatprep.subr.mxu0 0.0
    %2956 = vmatpush1.xpose.msra.mxu0 0.0
    %2957 = vmatprep.subr.mxu0 0.0
    %2958 = vmatpush1.xpose.msra.mxu0 0.0
    %2959 = vmatprep.mubr.f32.mxu0 0.0
    %2960 = vmatmul.mubr.f32.gmra.mrb[0].mxu0 %v2882
    %v2961 = vpop.f32.mrb[0].mxu0
    %v2962 = vadd.f32 %v2873, %v2961
    %v2963 = vpop.f32.mrb[0].mxu0
    %2964 = vmatprep.mubr.f32.mxu0 0.0
    %2965 = vmatmul.mubr.f32.gmra.mrb[0].mxu0 %v2885
    %v2966 = vpop.f32.mrb[0].mxu0
    %v2967 = vadd.f32 %v2878, %v2966
    %v2968 = vpop.f32.mrb[0].mxu0
    %2969 = vdwg.mxu0
    %2970 = vrot.lane.b32.xlu0 %v1979, 112
    %v2971 = vpop.permute.xlu0 %2970
    %2972 = vrot.lane.b32.xlu0 %v1980, 112
    %v2973 = vpop.permute.xlu0 %2972
    %2974 = vrot.lane.b32.xlu0 %v1971, 80
    %v2975 = vpop.permute.xlu0 %2974
    %2976 = vrot.lane.b32.xlu0 %v1976, 80
    %v2977 = vpop.permute.xlu0 %2976
    %2978 = vrot.lane.b32.xlu0 %v2086, 80
    %v2979 = vpop.permute.xlu0 %2978
    %2980 = vrot.lane.b32.xlu0 %v2088, 80
    %v2981 = vpop.permute.xlu0 %2980
    %2982 = vrot.lane.b32.xlu0 %v2090, 80
    %v2983 = vpop.permute.xlu0 %2982
    %2984 = vrot.lane.b32.xlu0 %v2092, 80
    %v2985 = vpop.permute.xlu0 %2984
    %v2986 = vsel %vm305, %v2971, 0
    %v2988 = vsel %vm305, %v2973, 0
    %v2990 = vsel %vm305, %v2975, 0
    %v2992 = vsel %vm305, %v2977, 0
    %v2994 = vsel %vm305, %v2979, 0
    %v2996 = vsel %vm305, %v2981, 0
    %v2998 = vsel %vm305, %v2983, 0
    %v3000 = vsel %vm305, %v2985, 0
    %3002 = vmatprep.subr.mxu0 0.0
    %3003 = vmatpush1.xpose.msra.mxu0 %v2990
    %3004 = vmatprep.subr.mxu0 0.0
    %3005 = vmatpush1.xpose.msra.mxu0 %v2992
    %3006 = vmatprep.subr.mxu0 0.0
    %3007 = vmatpush1.xpose.msra.mxu0 %v2994
    %3008 = vmatprep.subr.mxu0 0.0
    %3009 = vmatpush1.xpose.msra.mxu0 %v2996
    %3010 = vmatprep.subr.mxu0 0.0
    %3011 = vmatpush1.xpose.msra.mxu0 %v2998
    %3012 = vmatprep.subr.mxu0 0.0
    %3013 = vmatpush1.xpose.msra.mxu0 %v3000
    %3014 = vmatprep.subr.mxu0 0.0
    %3015 = vmatpush1.xpose.msra.mxu0 0.0
    %3016 = vmatprep.subr.mxu0 0.0
    %3017 = vmatpush1.xpose.msra.mxu0 0.0
    %3018 = vmatprep.subr.mxu0 0.0
    %3019 = vmatpush1.xpose.msra.mxu0 0.0
    %3020 = vmatprep.subr.mxu0 0.0
    %3021 = vmatpush1.xpose.msra.mxu0 0.0
    %3022 = vmatprep.subr.mxu0 0.0
    %3023 = vmatpush1.xpose.msra.mxu0 0.0
    %3024 = vmatprep.subr.mxu0 0.0
    %3025 = vmatpush1.xpose.msra.mxu0 0.0
    %3026 = vmatprep.subr.mxu0 0.0
    %3027 = vmatpush1.xpose.msra.mxu0 0.0
    %3028 = vmatprep.subr.mxu0 0.0
    %3029 = vmatpush1.xpose.msra.mxu0 0.0
    %3030 = vmatprep.subr.mxu0 0.0
    %3031 = vmatpush1.xpose.msra.mxu0 0.0
    %3032 = vmatprep.subr.mxu0 0.0
    %3033 = vmatpush1.xpose.msra.mxu0 0.0
    %3034 = vmatprep.subr.mxu0 0.0
    %3035 = vmatpush1.xpose.msra.mxu0 0.0
    %3036 = vmatprep.subr.mxu0 0.0
    %3037 = vmatpush1.xpose.msra.mxu0 0.0
    %3038 = vmatprep.subr.mxu0 0.0
    %3039 = vmatpush1.xpose.msra.mxu0 0.0
    %3040 = vmatprep.subr.mxu0 0.0
    %3041 = vmatpush1.xpose.msra.mxu0 0.0
    %3042 = vmatprep.subr.mxu0 0.0
    %3043 = vmatpush1.xpose.msra.mxu0 0.0
    %3044 = vmatprep.subr.mxu0 0.0
    %3045 = vmatpush1.xpose.msra.mxu0 0.0
    %3046 = vmatprep.subr.mxu0 0.0
    %3047 = vmatpush1.xpose.msra.mxu0 0.0
    %3048 = vmatprep.subr.mxu0 0.0
    %3049 = vmatpush1.xpose.msra.mxu0 0.0
    %3050 = vmatprep.subr.mxu0 0.0
    %3051 = vmatpush1.xpose.msra.mxu0 0.0
    %3052 = vmatprep.subr.mxu0 0.0
    %3053 = vmatpush1.xpose.msra.mxu0 0.0
    %3054 = vmatprep.subr.mxu0 0.0
    %3055 = vmatpush1.xpose.msra.mxu0 0.0
    %3056 = vmatprep.subr.mxu0 0.0
    %3057 = vmatpush1.xpose.msra.mxu0 0.0
    %3058 = vmatprep.subr.mxu0 0.0
    %3059 = vmatpush1.xpose.msra.mxu0 0.0
    %3060 = vmatprep.subr.mxu0 0.0
    %3061 = vmatpush1.xpose.msra.mxu0 0.0
    %3062 = vmatprep.subr.mxu0 0.0
    %3063 = vmatpush1.xpose.msra.mxu0 0.0
    %3064 = vmatprep.subr.mxu0 0.0
    %3065 = vmatpush1.xpose.msra.mxu0 0.0
    %3066 = vmatprep.mubr.f32.mxu0 0.0
    %3067 = vmatmul.mubr.f32.gmra.mrb[0].mxu0 %v2986
    %v3068 = vpop.f32.mrb[0].mxu0
    %v3069 = vadd.f32 0.0, %v3068
    %v3070 = vpop.f32.mrb[0].mxu0
    %3071 = vmatprep.mubr.f32.mxu0 0.0
    %3072 = vmatmul.mubr.f32.gmra.mrb[0].mxu0 %v2988
    %v3073 = vpop.f32.mrb[0].mxu0
    %v3074 = vadd.f32 0.0, %v3073
    %v3075 = vpop.f32.mrb[0].mxu0
    %3076 = vdwg.mxu0
    %v3077 = vsel %vm289, %v3069, -1e+30
    %v3078 = vsel %vm290, %v3074, -1e+30
    %v3079 = vsel %vm2202, %v3077, -inf
    %3080 = vmax.xlane.f32.xlu0 %v3079
    %v3081 = vpop.xlane.xlu0 %3080
    %v3082 = vsel %vm2202, %v3078, -inf
    %3083 = vmax.xlane.f32.xlu0 %v3082
    %v3084 = vpop.xlane.xlu0 %3083
    %v3085 = vsub.f32 %v3077, %v3081
    %v3086 = vsub.f32 %v3078, %v3084
    %v3087 = vmul.f32 %v3085, 1.442695
    %v3088 = vpow.pop %v3087
    %v3089 = vmul.f32 %v3086, 1.442695
    %v3090 = vpow.pop %v3089
    %v3091 = vsel %vm2202, %v3088, 0.0
    %3092 = vadd.xlane.f32.xlu0 %v3091
    %v3093 = vpop.xlane.xlu0 %3092
    %v3094 = vsel %vm2202, %v3090, 0.0
    %3095 = vadd.xlane.f32.xlu0 %v3094
    %v3096 = vpop.xlane.xlu0 %3095
    %v3097 = vrcp.pop %v3093
    %v3098 = vrcp.pop %v3096
    %v3099 = vmul.f32 %v3088, %v3097
    %v3100 = vmul.f32 %v3090, %v3098
    %3103 = vrot.lane.b32.xlu0 %v3069, 112
    %v3104 = vpop.permute.xlu0 %3103
    %3105 = vrot.lane.b32.xlu0 %v3074, 112
    %v3106 = vpop.permute.xlu0 %3105
    %v3109 = vsel %vm289, %v3104, -1e+30
    %v3110 = vsel %vm290, %v3106, -1e+30
    %v3111 = vsel %vm84, %v3109, -inf
    %3112 = vmax.xlane.f32.xlu0 %v3111
    %v3113 = vpop.xlane.xlu0 %3112
    %v3114 = vsel %vm84, %v3110, -inf
    %3115 = vmax.xlane.f32.xlu0 %v3114
    %v3116 = vpop.xlane.xlu0 %3115
    %v3117 = vsub.f32 %v3109, %v3113
    %v3118 = vsub.f32 %v3110, %v3116
    %v3119 = vmul.f32 %v3117, 1.442695
    %v3120 = vpow.pop %v3119
    %v3121 = vmul.f32 %v3118, 1.442695
    %v3122 = vpow.pop %v3121
    %v3123 = vsel %vm84, %v3120, 0.0
    %3124 = vadd.xlane.f32.xlu0 %v3123
    %v3125 = vpop.xlane.xlu0 %3124
    %v3126 = vsel %vm84, %v3122, 0.0
    %3127 = vadd.xlane.f32.xlu0 %v3126
    %v3128 = vpop.xlane.xlu0 %3127
    %v3129 = vrcp.pop %v3125
    %v3130 = vrcp.pop %v3128
    %v3131 = vmul.f32 %v3120, %v3129
    %v3132 = vmul.f32 %v3122, %v3130
    %3133 = vrot.lane.b32.xlu0 %v2063, 80
    %v3134 = vpop.permute.xlu0 %3133
    %3135 = vrot.lane.b32.xlu0 %v2068, 80
    %v3136 = vpop.permute.xlu0 %3135
    %3137 = vrot.lane.b32.xlu0 %v2073, 80
    %v3138 = vpop.permute.xlu0 %3137
    %3139 = vrot.lane.b32.xlu0 %v2078, 80
    %v3140 = vpop.permute.xlu0 %3139
    %v3146 = vsel %vm84, %v3131, 0
    %v3149 = vsel %vm84, %v3132, 0
    %3151 = vmatprep.subr.mxu0 0.0
    %3152 = vmatpush1.msra.mxu0 %v3134
    %3153 = vmatprep.subr.mxu0 0.0
    %3154 = vmatpush1.msra.mxu0 %v3136
    %3155 = vmatprep.subr.mxu0 0.0
    %3156 = vmatpush1.msra.mxu0 %v3138
    %3157 = vmatprep.subr.mxu0 0.0
    %3158 = vmatpush1.msra.mxu0 %v3140
    %3159 = vmatprep.subr.mxu0 0.0
    %3160 = vmatpush1.msra.mxu0 0.0
    %3161 = vmatprep.subr.mxu0 0.0
    %3162 = vmatpush1.msra.mxu0 0.0
    %3163 = vmatprep.subr.mxu0 0.0
    %3164 = vmatpush1.msra.mxu0 0.0
    %3165 = vmatprep.subr.mxu0 0.0
    %3166 = vmatpush1.msra.mxu0 0.0
    %3167 = vmatprep.subr.mxu0 0.0
    %3168 = vmatpush1.msra.mxu0 0.0
    %3169 = vmatprep.subr.mxu0 0.0
    %3170 = vmatpush1.msra.mxu0 0.0
    %3171 = vmatprep.subr.mxu0 0.0
    %3172 = vmatpush1.msra.mxu0 0.0
    %3173 = vmatprep.subr.mxu0 0.0
    %3174 = vmatpush1.msra.mxu0 0.0
    %3175 = vmatprep.subr.mxu0 0.0
    %3176 = vmatpush1.msra.mxu0 0.0
    %3177 = vmatprep.subr.mxu0 0.0
    %3178 = vmatpush1.msra.mxu0 0.0
    %3179 = vmatprep.subr.mxu0 0.0
    %3180 = vmatpush1.msra.mxu0 0.0
    %3181 = vmatprep.subr.mxu0 0.0
    %3182 = vmatpush1.msra.mxu0 0.0
    %3183 = vmatprep.subr.mxu0 0.0
    %3184 = vmatpush1.msra.mxu0 0.0
    %3185 = vmatprep.subr.mxu0 0.0
    %3186 = vmatpush1.msra.mxu0 0.0
    %3187 = vmatprep.subr.mxu0 0.0
    %3188 = vmatpush1.msra.mxu0 0.0
    %3189 = vmatprep.subr.mxu0 0.0
    %3190 = vmatpush1.msra.mxu0 0.0
    %3191 = vmatprep.subr.mxu0 0.0
    %3192 = vmatpush1.msra.mxu0 0.0
    %3193 = vmatprep.subr.mxu0 0.0
    %3194 = vmatpush1.msra.mxu0 0.0
    %3195 = vmatprep.subr.mxu0 0.0
    %3196 = vmatpush1.msra.mxu0 0.0
    %3197 = vmatprep.subr.mxu0 0.0
    %3198 = vmatpush1.msra.mxu0 0.0
    %3199 = vmatprep.subr.mxu0 0.0
    %3200 = vmatpush1.msra.mxu0 0.0
    %3201 = vmatprep.subr.mxu0 0.0
    %3202 = vmatpush1.msra.mxu0 0.0
    %3203 = vmatprep.subr.mxu0 0.0
    %3204 = vmatpush1.msra.mxu0 0.0
    %3205 = vmatprep.subr.mxu0 0.0
    %3206 = vmatpush1.msra.mxu0 0.0
    %3207 = vmatprep.subr.mxu0 0.0
    %3208 = vmatpush1.msra.mxu0 0.0
    %3209 = vmatprep.subr.mxu0 0.0
    %3210 = vmatpush1.msra.mxu0 0.0
    %3211 = vmatprep.subr.mxu0 0.0
    %3212 = vmatpush1.msra.mxu0 0.0
    %3213 = vmatprep.subr.mxu0 0.0
    %3214 = vmatpush1.msra.mxu0 0.0
    %3215 = vmatprep.mubr.f32.mxu0 0.0
    %3216 = vmatmul.mubr.f32.gmra.mrb[0].mxu0 %v3146
    %v3217 = vpop.f32.mrb[0].mxu0
    %v3218 = vadd.f32 0.0, %v3217
    %v3219 = vpop.f32.mrb[0].mxu0
    %3220 = vmatprep.mubr.f32.mxu0 0.0
    %3221 = vmatmul.mubr.f32.gmra.mrb[0].mxu0 %v3149
    %v3222 = vpop.f32.mrb[0].mxu0
    %v3223 = vadd.f32 0.0, %v3222
    %v3224 = vpop.f32.mrb[0].mxu0
    %3225 = vdwg.mxu0
    %3226 = vrot.lane.b32.xlu0 %v1971, 48
    %v3227 = vpop.permute.xlu0 %3226
    %3228 = vrot.lane.b32.xlu0 %v1976, 48
    %v3229 = vpop.permute.xlu0 %3228
    %v3233 = vsel %vm2202, %v3099, 0
    %v3236 = vsel %vm2202, %v3100, 0
    %3238 = vmatprep.subr.mxu0 0.0
    %3239 = vmatpush1.msra.mxu0 %v3227
    %3240 = vmatprep.subr.mxu0 0.0
    %3241 = vmatpush1.msra.mxu0 %v3229
    %3242 = vmatprep.subr.mxu0 0.0
    %3243 = vmatpush1.msra.mxu0 0.0
    %3244 = vmatprep.subr.mxu0 0.0
    %3245 = vmatpush1.msra.mxu0 0.0
    %3246 = vmatprep.subr.mxu0 0.0
    %3247 = vmatpush1.msra.mxu0 0.0
    %3248 = vmatprep.subr.mxu0 0.0
    %3249 = vmatpush1.msra.mxu0 0.0
    %3250 = vmatprep.subr.mxu0 0.0
    %3251 = vmatpush1.msra.mxu0 0.0
    %3252 = vmatprep.subr.mxu0 0.0
    %3253 = vmatpush1.msra.mxu0 0.0
    %3254 = vmatprep.subr.mxu0 0.0
    %3255 = vmatpush1.msra.mxu0 0.0
    %3256 = vmatprep.subr.mxu0 0.0
    %3257 = vmatpush1.msra.mxu0 0.0
    %3258 = vmatprep.subr.mxu0 0.0
    %3259 = vmatpush1.msra.mxu0 0.0
    %3260 = vmatprep.subr.mxu0 0.0
    %3261 = vmatpush1.msra.mxu0 0.0
    %3262 = vmatprep.subr.mxu0 0.0
    %3263 = vmatpush1.msra.mxu0 0.0
    %3264 = vmatprep.subr.mxu0 0.0
    %3265 = vmatpush1.msra.mxu0 0.0
    %3266 = vmatprep.subr.mxu0 0.0
    %3267 = vmatpush1.msra.mxu0 0.0
    %3268 = vmatprep.subr.mxu0 0.0
    %3269 = vmatpush1.msra.mxu0 0.0
    %3270 = vmatprep.subr.mxu0 0.0
    %3271 = vmatpush1.msra.mxu0 0.0
    %3272 = vmatprep.subr.mxu0 0.0
    %3273 = vmatpush1.msra.mxu0 0.0
    %3274 = vmatprep.subr.mxu0 0.0
    %3275 = vmatpush1.msra.mxu0 0.0
    %3276 = vmatprep.subr.mxu0 0.0
    %3277 = vmatpush1.msra.mxu0 0.0
    %3278 = vmatprep.subr.mxu0 0.0
    %3279 = vmatpush1.msra.mxu0 0.0
    %3280 = vmatprep.subr.mxu0 0.0
    %3281 = vmatpush1.msra.mxu0 0.0
    %3282 = vmatprep.subr.mxu0 0.0
    %3283 = vmatpush1.msra.mxu0 0.0
    %3284 = vmatprep.subr.mxu0 0.0
    %3285 = vmatpush1.msra.mxu0 0.0
    %3286 = vmatprep.subr.mxu0 0.0
    %3287 = vmatpush1.msra.mxu0 0.0
    %3288 = vmatprep.subr.mxu0 0.0
    %3289 = vmatpush1.msra.mxu0 0.0
    %3290 = vmatprep.subr.mxu0 0.0
    %3291 = vmatpush1.msra.mxu0 0.0
    %3292 = vmatprep.subr.mxu0 0.0
    %3293 = vmatpush1.msra.mxu0 0.0
    %3294 = vmatprep.subr.mxu0 0.0
    %3295 = vmatpush1.msra.mxu0 0.0
    %3296 = vmatprep.subr.mxu0 0.0
    %3297 = vmatpush1.msra.mxu0 0.0
    %3298 = vmatprep.subr.mxu0 0.0
    %3299 = vmatpush1.msra.mxu0 0.0
    %3300 = vmatprep.subr.mxu0 0.0
    %3301 = vmatpush1.msra.mxu0 0.0
    %3302 = vmatprep.mubr.f32.mxu0 0.0
    %3303 = vmatmul.mubr.f32.gmra.mrb[0].mxu0 %v3233
    %v3304 = vpop.f32.mrb[0].mxu0
    %v3305 = vadd.f32 %v3218, %v3304
    %v3306 = vpop.f32.mrb[0].mxu0
    %3307 = vmatprep.mubr.f32.mxu0 0.0
    %3308 = vmatmul.mubr.f32.gmra.mrb[0].mxu0 %v3236
    %v3309 = vpop.f32.mrb[0].mxu0
    %v3310 = vadd.f32 %v3223, %v3309
    %v3311 = vpop.f32.mrb[0].mxu0
    %3312 = vdwg.mxu0
    %3313 = vrot.lane.b32.xlu0 %v73, 112
    %v3314 = vpop.permute.xlu0 %3313
    %3315 = vrot.lane.b32.xlu0 %v74, 112
    %v3316 = vpop.permute.xlu0 %3315
    %3317 = vrot.lane.b32.xlu0 %v75, 112
    %v3318 = vpop.permute.xlu0 %3317
    %3319 = vrot.lane.b32.xlu0 %v76, 112
    %v3320 = vpop.permute.xlu0 %3319
    %v3322 = vsel %vm305, %v3305, 0
    %v3325 = vsel %vm305, %v3310, 0
    %v3327 = vsel %vm305, %v3314, 0
    %v3329 = vsel %vm305, %v3316, 0
    %v3331 = vsel %vm305, %v3318, 0
    %v3333 = vsel %vm305, %v3320, 0
    %3335 = vmatprep.subr.mxu0 0.0
    %3336 = vmatpush1.xpose.msra.mxu0 %v3327
    %3337 = vmatprep.subr.mxu0 0.0
    %3338 = vmatpush1.xpose.msra.mxu0 %v3329
    %3339 = vmatprep.subr.mxu0 0.0
    %3340 = vmatpush1.xpose.msra.mxu0 %v3331
    %3341 = vmatprep.subr.mxu0 0.0
    %3342 = vmatpush1.xpose.msra.mxu0 %v3333
    %3343 = vmatprep.subr.mxu0 0.0
    %3344 = vmatpush1.xpose.msra.mxu0 0.0
    %3345 = vmatprep.subr.mxu0 0.0
    %3346 = vmatpush1.xpose.msra.mxu0 0.0
    %3347 = vmatprep.subr.mxu0 0.0
    %3348 = vmatpush1.xpose.msra.mxu0 0.0
    %3349 = vmatprep.subr.mxu0 0.0
    %3350 = vmatpush1.xpose.msra.mxu0 0.0
    %3351 = vmatprep.subr.mxu0 0.0
    %3352 = vmatpush1.xpose.msra.mxu0 0.0
    %3353 = vmatprep.subr.mxu0 0.0
    %3354 = vmatpush1.xpose.msra.mxu0 0.0
    %3355 = vmatprep.subr.mxu0 0.0
    %3356 = vmatpush1.xpose.msra.mxu0 0.0
    %3357 = vmatprep.subr.mxu0 0.0
    %3358 = vmatpush1.xpose.msra.mxu0 0.0
    %3359 = vmatprep.subr.mxu0 0.0
    %3360 = vmatpush1.xpose.msra.mxu0 0.0
    %3361 = vmatprep.subr.mxu0 0.0
    %3362 = vmatpush1.xpose.msra.mxu0 0.0
    %3363 = vmatprep.subr.mxu0 0.0
    %3364 = vmatpush1.xpose.msra.mxu0 0.0
    %3365 = vmatprep.subr.mxu0 0.0
    %3366 = vmatpush1.xpose.msra.mxu0 0.0
    %3367 = vmatprep.subr.mxu0 0.0
    %3368 = vmatpush1.xpose.msra.mxu0 0.0
    %3369 = vmatprep.subr.mxu0 0.0
    %3370 = vmatpush1.xpose.msra.mxu0 0.0
    %3371 = vmatprep.subr.mxu0 0.0
    %3372 = vmatpush1.xpose.msra.mxu0 0.0
    %3373 = vmatprep.subr.mxu0 0.0
    %3374 = vmatpush1.xpose.msra.mxu0 0.0
    %3375 = vmatprep.subr.mxu0 0.0
    %3376 = vmatpush1.xpose.msra.mxu0 0.0
    %3377 = vmatprep.subr.mxu0 0.0
    %3378 = vmatpush1.xpose.msra.mxu0 0.0
    %3379 = vmatprep.subr.mxu0 0.0
    %3380 = vmatpush1.xpose.msra.mxu0 0.0
    %3381 = vmatprep.subr.mxu0 0.0
    %3382 = vmatpush1.xpose.msra.mxu0 0.0
    %3383 = vmatprep.subr.mxu0 0.0
    %3384 = vmatpush1.xpose.msra.mxu0 0.0
    %3385 = vmatprep.subr.mxu0 0.0
    %3386 = vmatpush1.xpose.msra.mxu0 0.0
    %3387 = vmatprep.subr.mxu0 0.0
    %3388 = vmatpush1.xpose.msra.mxu0 0.0
    %3389 = vmatprep.subr.mxu0 0.0
    %3390 = vmatpush1.xpose.msra.mxu0 0.0
    %3391 = vmatprep.subr.mxu0 0.0
    %3392 = vmatpush1.xpose.msra.mxu0 0.0
    %3393 = vmatprep.subr.mxu0 0.0
    %3394 = vmatpush1.xpose.msra.mxu0 0.0
    %3395 = vmatprep.subr.mxu0 0.0
    %3396 = vmatpush1.xpose.msra.mxu0 0.0
    %3397 = vmatprep.subr.mxu0 0.0
    %3398 = vmatpush1.xpose.msra.mxu0 0.0
    %3399 = vmatprep.mubr.f32.mxu0 0.0
    %3400 = vmatmul.mubr.f32.gmra.mrb[0].mxu0 %v3322
    %v3401 = vpop.f32.mrb[0].mxu0
    %v3402 = vadd.f32 0.0, %v3401
    %v3403 = vpop.f32.mrb[0].mxu0
    %3404 = vmatprep.mubr.f32.mxu0 0.0
    %3405 = vmatmul.mubr.f32.gmra.mrb[0].mxu0 %v3325
    %v3406 = vpop.f32.mrb[0].mxu0
    %v3407 = vadd.f32 0.0, %v3406
    %v3408 = vpop.f32.mrb[0].mxu0
    %3409 = vdwg.mxu0
    %v3410 = vadd.f32 %v2962, %v3402
    %v3411 = vadd.f32 %v2967, %v3407
    %3412 = vrot.lane.b32.xlu0 %v1979, 104
    %v3413 = vpop.permute.xlu0 %3412
    %3414 = vrot.lane.b32.xlu0 %v1980, 104
    %v3415 = vpop.permute.xlu0 %3414
    %3416 = vrot.lane.b32.xlu0 %v1971, 72
    %v3417 = vpop.permute.xlu0 %3416
    %3418 = vrot.lane.b32.xlu0 %v1976, 72
    %v3419 = vpop.permute.xlu0 %3418
    %3420 = vrot.lane.b32.xlu0 %v2086, 72
    %v3421 = vpop.permute.xlu0 %3420
    %3422 = vrot.lane.b32.xlu0 %v2088, 72
    %v3423 = vpop.permute.xlu0 %3422
    %3424 = vrot.lane.b32.xlu0 %v2090, 72
    %v3425 = vpop.permute.xlu0 %3424
    %3426 = vrot.lane.b32.xlu0 %v2092, 72
    %v3427 = vpop.permute.xlu0 %3426
    %v3428 = vsel %vm305, %v3413, 0
    %v3430 = vsel %vm305, %v3415, 0
    %v3432 = vsel %vm305, %v3417, 0
    %v3434 = vsel %vm305, %v3419, 0
    %v3436 = vsel %vm305, %v3421, 0
    %v3438 = vsel %vm305, %v3423, 0
    %v3440 = vsel %vm305, %v3425, 0
    %v3442 = vsel %vm305, %v3427, 0
    %3444 = vmatprep.subr.mxu0 0.0
    %3445 = vmatpush1.xpose.msra.mxu0 %v3432
    %3446 = vmatprep.subr.mxu0 0.0
    %3447 = vmatpush1.xpose.msra.mxu0 %v3434
    %3448 = vmatprep.subr.mxu0 0.0
    %3449 = vmatpush1.xpose.msra.mxu0 %v3436
    %3450 = vmatprep.subr.mxu0 0.0
    %3451 = vmatpush1.xpose.msra.mxu0 %v3438
    %3452 = vmatprep.subr.mxu0 0.0
    %3453 = vmatpush1.xpose.msra.mxu0 %v3440
    %3454 = vmatprep.subr.mxu0 0.0
    %3455 = vmatpush1.xpose.msra.mxu0 %v3442
    %3456 = vmatprep.subr.mxu0 0.0
    %3457 = vmatpush1.xpose.msra.mxu0 0.0
    %3458 = vmatprep.subr.mxu0 0.0
    %3459 = vmatpush1.xpose.msra.mxu0 0.0
    %3460 = vmatprep.subr.mxu0 0.0
    %3461 = vmatpush1.xpose.msra.mxu0 0.0
    %3462 = vmatprep.subr.mxu0 0.0
    %3463 = vmatpush1.xpose.msra.mxu0 0.0
    %3464 = vmatprep.subr.mxu0 0.0
    %3465 = vmatpush1.xpose.msra.mxu0 0.0
    %3466 = vmatprep.subr.mxu0 0.0
    %3467 = vmatpush1.xpose.msra.mxu0 0.0
    %3468 = vmatprep.subr.mxu0 0.0
    %3469 = vmatpush1.xpose.msra.mxu0 0.0
    %3470 = vmatprep.subr.mxu0 0.0
    %3471 = vmatpush1.xpose.msra.mxu0 0.0
    %3472 = vmatprep.subr.mxu0 0.0
    %3473 = vmatpush1.xpose.msra.mxu0 0.0
    %3474 = vmatprep.subr.mxu0 0.0
    %3475 = vmatpush1.xpose.msra.mxu0 0.0
    %3476 = vmatprep.subr.mxu0 0.0
    %3477 = vmatpush1.xpose.msra.mxu0 0.0
    %3478 = vmatprep.subr.mxu0 0.0
    %3479 = vmatpush1.xpose.msra.mxu0 0.0
    %3480 = vmatprep.subr.mxu0 0.0
    %3481 = vmatpush1.xpose.msra.mxu0 0.0
    %3482 = vmatprep.subr.mxu0 0.0
    %3483 = vmatpush1.xpose.msra.mxu0 0.0
    %3484 = vmatprep.subr.mxu0 0.0
    %3485 = vmatpush1.xpose.msra.mxu0 0.0
    %3486 = vmatprep.subr.mxu0 0.0
    %3487 = vmatpush1.xpose.msra.mxu0 0.0
    %3488 = vmatprep.subr.mxu0 0.0
    %3489 = vmatpush1.xpose.msra.mxu0 0.0
    %3490 = vmatprep.subr.mxu0 0.0
    %3491 = vmatpush1.xpose.msra.mxu0 0.0
    %3492 = vmatprep.subr.mxu0 0.0
    %3493 = vmatpush1.xpose.msra.mxu0 0.0
    %3494 = vmatprep.subr.mxu0 0.0
    %3495 = vmatpush1.xpose.msra.mxu0 0.0
    %3496 = vmatprep.subr.mxu0 0.0
    %3497 = vmatpush1.xpose.msra.mxu0 0.0
    %3498 = vmatprep.subr.mxu0 0.0
    %3499 = vmatpush1.xpose.msra.mxu0 0.0
    %3500 = vmatprep.subr.mxu0 0.0
    %3501 = vmatpush1.xpose.msra.mxu0 0.0
    %3502 = vmatprep.subr.mxu0 0.0
    %3503 = vmatpush1.xpose.msra.mxu0 0.0
    %3504 = vmatprep.subr.mxu0 0.0
    %3505 = vmatpush1.xpose.msra.mxu0 0.0
    %3506 = vmatprep.subr.mxu0 0.0
    %3507 = vmatpush1.xpose.msra.mxu0 0.0
    %3508 = vmatprep.mubr.f32.mxu0 0.0
    %3509 = vmatmul.mubr.f32.gmra.mrb[0].mxu0 %v3428
    %v3510 = vpop.f32.mrb[0].mxu0
    %v3511 = vadd.f32 0.0, %v3510
    %v3512 = vpop.f32.mrb[0].mxu0
    %3513 = vmatprep.mubr.f32.mxu0 0.0
    %3514 = vmatmul.mubr.f32.gmra.mrb[0].mxu0 %v3430
    %v3515 = vpop.f32.mrb[0].mxu0
    %v3516 = vadd.f32 0.0, %v3515
    %v3517 = vpop.f32.mrb[0].mxu0
    %3518 = vdwg.mxu0
    %v3519 = vsel %vm289, %v3511, -1e+30
    %v3520 = vsel %vm290, %v3516, -1e+30
    %v3521 = vsel %vm2202, %v3519, -inf
    %3522 = vmax.xlane.f32.xlu0 %v3521
    %v3523 = vpop.xlane.xlu0 %3522
    %v3524 = vsel %vm2202, %v3520, -inf
    %3525 = vmax.xlane.f32.xlu0 %v3524
    %v3526 = vpop.xlane.xlu0 %3525
    %v3527 = vsub.f32 %v3519, %v3523
    %v3528 = vsub.f32 %v3520, %v3526
    %v3529 = vmul.f32 %v3527, 1.442695
    %v3530 = vpow.pop %v3529
    %v3531 = vmul.f32 %v3528, 1.442695
    %v3532 = vpow.pop %v3531
    %v3533 = vsel %vm2202, %v3530, 0.0
    %3534 = vadd.xlane.f32.xlu0 %v3533
    %v3535 = vpop.xlane.xlu0 %3534
    %v3536 = vsel %vm2202, %v3532, 0.0
    %3537 = vadd.xlane.f32.xlu0 %v3536
    %v3538 = vpop.xlane.xlu0 %3537
    %v3539 = vrcp.pop %v3535
    %v3540 = vrcp.pop %v3538
    %v3541 = vmul.f32 %v3530, %v3539
    %v3542 = vmul.f32 %v3532, %v3540
    %3545 = vrot.lane.b32.xlu0 %v3511, 112
    %v3546 = vpop.permute.xlu0 %3545
    %3547 = vrot.lane.b32.xlu0 %v3516, 112
    %v3548 = vpop.permute.xlu0 %3547
    %v3551 = vsel %vm289, %v3546, -1e+30
    %v3552 = vsel %vm290, %v3548, -1e+30
    %v3553 = vsel %vm84, %v3551, -inf
    %3554 = vmax.xlane.f32.xlu0 %v3553
    %v3555 = vpop.xlane.xlu0 %3554
    %v3556 = vsel %vm84, %v3552, -inf
    %3557 = vmax.xlane.f32.xlu0 %v3556
    %v3558 = vpop.xlane.xlu0 %3557
    %v3559 = vsub.f32 %v3551, %v3555
    %v3560 = vsub.f32 %v3552, %v3558
    %v3561 = vmul.f32 %v3559, 1.442695
    %v3562 = vpow.pop %v3561
    %v3563 = vmul.f32 %v3560, 1.442695
    %v3564 = vpow.pop %v3563
    %v3565 = vsel %vm84, %v3562, 0.0
    %3566 = vadd.xlane.f32.xlu0 %v3565
    %v3567 = vpop.xlane.xlu0 %3566
    %v3568 = vsel %vm84, %v3564, 0.0
    %3569 = vadd.xlane.f32.xlu0 %v3568
    %v3570 = vpop.xlane.xlu0 %3569
    %v3571 = vrcp.pop %v3567
    %v3572 = vrcp.pop %v3570
    %v3573 = vmul.f32 %v3562, %v3571
    %v3574 = vmul.f32 %v3564, %v3572
    %3575 = vrot.lane.b32.xlu0 %v2063, 72
    %v3576 = vpop.permute.xlu0 %3575
    %3577 = vrot.lane.b32.xlu0 %v2068, 72
    %v3578 = vpop.permute.xlu0 %3577
    %3579 = vrot.lane.b32.xlu0 %v2073, 72
    %v3580 = vpop.permute.xlu0 %3579
    %3581 = vrot.lane.b32.xlu0 %v2078, 72
    %v3582 = vpop.permute.xlu0 %3581
    %v3588 = vsel %vm84, %v3573, 0
    %v3591 = vsel %vm84, %v3574, 0
    %3593 = vmatprep.subr.mxu0 0.0
    %3594 = vmatpush1.msra.mxu0 %v3576
    %3595 = vmatprep.subr.mxu0 0.0
    %3596 = vmatpush1.msra.mxu0 %v3578
    %3597 = vmatprep.subr.mxu0 0.0
    %3598 = vmatpush1.msra.mxu0 %v3580
    %3599 = vmatprep.subr.mxu0 0.0
    %3600 = vmatpush1.msra.mxu0 %v3582
    %3601 = vmatprep.subr.mxu0 0.0
    %3602 = vmatpush1.msra.mxu0 0.0
    %3603 = vmatprep.subr.mxu0 0.0
    %3604 = vmatpush1.msra.mxu0 0.0
    %3605 = vmatprep.subr.mxu0 0.0
    %3606 = vmatpush1.msra.mxu0 0.0
    %3607 = vmatprep.subr.mxu0 0.0
    %3608 = vmatpush1.msra.mxu0 0.0
    %3609 = vmatprep.subr.mxu0 0.0
    %3610 = vmatpush1.msra.mxu0 0.0
    %3611 = vmatprep.subr.mxu0 0.0
    %3612 = vmatpush1.msra.mxu0 0.0
    %3613 = vmatprep.subr.mxu0 0.0
    %3614 = vmatpush1.msra.mxu0 0.0
    %3615 = vmatprep.subr.mxu0 0.0
    %3616 = vmatpush1.msra.mxu0 0.0
    %3617 = vmatprep.subr.mxu0 0.0
    %3618 = vmatpush1.msra.mxu0 0.0
    %3619 = vmatprep.subr.mxu0 0.0
    %3620 = vmatpush1.msra.mxu0 0.0
    %3621 = vmatprep.subr.mxu0 0.0
    %3622 = vmatpush1.msra.mxu0 0.0
    %3623 = vmatprep.subr.mxu0 0.0
    %3624 = vmatpush1.msra.mxu0 0.0
    %3625 = vmatprep.subr.mxu0 0.0
    %3626 = vmatpush1.msra.mxu0 0.0
    %3627 = vmatprep.subr.mxu0 0.0
    %3628 = vmatpush1.msra.mxu0 0.0
    %3629 = vmatprep.subr.mxu0 0.0
    %3630 = vmatpush1.msra.mxu0 0.0
    %3631 = vmatprep.subr.mxu0 0.0
    %3632 = vmatpush1.msra.mxu0 0.0
    %3633 = vmatprep.subr.mxu0 0.0
    %3634 = vmatpush1.msra.mxu0 0.0
    %3635 = vmatprep.subr.mxu0 0.0
    %3636 = vmatpush1.msra.mxu0 0.0
    %3637 = vmatprep.subr.mxu0 0.0
    %3638 = vmatpush1.msra.mxu0 0.0
    %3639 = vmatprep.subr.mxu0 0.0
    %3640 = vmatpush1.msra.mxu0 0.0
    %3641 = vmatprep.subr.mxu0 0.0
    %3642 = vmatpush1.msra.mxu0 0.0
    %3643 = vmatprep.subr.mxu0 0.0
    %3644 = vmatpush1.msra.mxu0 0.0
    %3645 = vmatprep.subr.mxu0 0.0
    %3646 = vmatpush1.msra.mxu0 0.0
    %3647 = vmatprep.subr.mxu0 0.0
    %3648 = vmatpush1.msra.mxu0 0.0
    %3649 = vmatprep.subr.mxu0 0.0
    %3650 = vmatpush1.msra.mxu0 0.0
    %3651 = vmatprep.subr.mxu0 0.0
    %3652 = vmatpush1.msra.mxu0 0.0
    %3653 = vmatprep.subr.mxu0 0.0
    %3654 = vmatpush1.msra.mxu0 0.0
    %3655 = vmatprep.subr.mxu0 0.0
    %3656 = vmatpush1.msra.mxu0 0.0
    %3657 = vmatprep.mubr.f32.mxu0 0.0
    %3658 = vmatmul.mubr.f32.gmra.mrb[0].mxu0 %v3588
    %v3659 = vpop.f32.mrb[0].mxu0
    %v3660 = vadd.f32 0.0, %v3659
    %v3661 = vpop.f32.mrb[0].mxu0
    %3662 = vmatprep.mubr.f32.mxu0 0.0
    %3663 = vmatmul.mubr.f32.gmra.mrb[0].mxu0 %v3591
    %v3664 = vpop.f32.mrb[0].mxu0
    %v3665 = vadd.f32 0.0, %v3664
    %v3666 = vpop.f32.mrb[0].mxu0
    %3667 = vdwg.mxu0
    %3668 = vrot.lane.b32.xlu0 %v1971, 40
    %v3669 = vpop.permute.xlu0 %3668
    %3670 = vrot.lane.b32.xlu0 %v1976, 40
    %v3671 = vpop.permute.xlu0 %3670
    %v3675 = vsel %vm2202, %v3541, 0
    %v3678 = vsel %vm2202, %v3542, 0
    %3680 = vmatprep.subr.mxu0 0.0
    %3681 = vmatpush1.msra.mxu0 %v3669
    %3682 = vmatprep.subr.mxu0 0.0
    %3683 = vmatpush1.msra.mxu0 %v3671
    %3684 = vmatprep.subr.mxu0 0.0
    %3685 = vmatpush1.msra.mxu0 0.0
    %3686 = vmatprep.subr.mxu0 0.0
    %3687 = vmatpush1.msra.mxu0 0.0
    %3688 = vmatprep.subr.mxu0 0.0
    %3689 = vmatpush1.msra.mxu0 0.0
    %3690 = vmatprep.subr.mxu0 0.0
    %3691 = vmatpush1.msra.mxu0 0.0
    %3692 = vmatprep.subr.mxu0 0.0
    %3693 = vmatpush1.msra.mxu0 0.0
    %3694 = vmatprep.subr.mxu0 0.0
    %3695 = vmatpush1.msra.mxu0 0.0
    %3696 = vmatprep.subr.mxu0 0.0
    %3697 = vmatpush1.msra.mxu0 0.0
    %3698 = vmatprep.subr.mxu0 0.0
    %3699 = vmatpush1.msra.mxu0 0.0
    %3700 = vmatprep.subr.mxu0 0.0
    %3701 = vmatpush1.msra.mxu0 0.0
    %3702 = vmatprep.subr.mxu0 0.0
    %3703 = vmatpush1.msra.mxu0 0.0
    %3704 = vmatprep.subr.mxu0 0.0
    %3705 = vmatpush1.msra.mxu0 0.0
    %3706 = vmatprep.subr.mxu0 0.0
    %3707 = vmatpush1.msra.mxu0 0.0
    %3708 = vmatprep.subr.mxu0 0.0
    %3709 = vmatpush1.msra.mxu0 0.0
    %3710 = vmatprep.subr.mxu0 0.0
    %3711 = vmatpush1.msra.mxu0 0.0
    %3712 = vmatprep.subr.mxu0 0.0
    %3713 = vmatpush1.msra.mxu0 0.0
    %3714 = vmatprep.subr.mxu0 0.0
    %3715 = vmatpush1.msra.mxu0 0.0
    %3716 = vmatprep.subr.mxu0 0.0
    %3717 = vmatpush1.msra.mxu0 0.0
    %3718 = vmatprep.subr.mxu0 0.0
    %3719 = vmatpush1.msra.mxu0 0.0
    %3720 = vmatprep.subr.mxu0 0.0
    %3721 = vmatpush1.msra.mxu0 0.0
    %3722 = vmatprep.subr.mxu0 0.0
    %3723 = vmatpush1.msra.mxu0 0.0
    %3724 = vmatprep.subr.mxu0 0.0
    %3725 = vmatpush1.msra.mxu0 0.0
    %3726 = vmatprep.subr.mxu0 0.0
    %3727 = vmatpush1.msra.mxu0 0.0
    %3728 = vmatprep.subr.mxu0 0.0
    %3729 = vmatpush1.msra.mxu0 0.0
    %3730 = vmatprep.subr.mxu0 0.0
    %3731 = vmatpush1.msra.mxu0 0.0
    %3732 = vmatprep.subr.mxu0 0.0
    %3733 = vmatpush1.msra.mxu0 0.0
    %3734 = vmatprep.subr.mxu0 0.0
    %3735 = vmatpush1.msra.mxu0 0.0
    %3736 = vmatprep.subr.mxu0 0.0
    %3737 = vmatpush1.msra.mxu0 0.0
    %3738 = vmatprep.subr.mxu0 0.0
    %3739 = vmatpush1.msra.mxu0 0.0
    %3740 = vmatprep.subr.mxu0 0.0
    %3741 = vmatpush1.msra.mxu0 0.0
    %3742 = vmatprep.subr.mxu0 0.0
    %3743 = vmatpush1.msra.mxu0 0.0
    %3744 = vmatprep.mubr.f32.mxu0 0.0
    %3745 = vmatmul.mubr.f32.gmra.mrb[0].mxu0 %v3675
    %v3746 = vpop.f32.mrb[0].mxu0
    %v3747 = vadd.f32 %v3660, %v3746
    %v3748 = vpop.f32.mrb[0].mxu0
    %3749 = vmatprep.mubr.f32.mxu0 0.0
    %3750 = vmatmul.mubr.f32.gmra.mrb[0].mxu0 %v3678
    %v3751 = vpop.f32.mrb[0].mxu0
    %v3752 = vadd.f32 %v3665, %v3751
    %v3753 = vpop.f32.mrb[0].mxu0
    %3754 = vdwg.mxu0
    %3755 = vrot.lane.b32.xlu0 %v73, 104
    %v3756 = vpop.permute.xlu0 %3755
    %3757 = vrot.lane.b32.xlu0 %v74, 104
    %v3758 = vpop.permute.xlu0 %3757
    %3759 = vrot.lane.b32.xlu0 %v75, 104
    %v3760 = vpop.permute.xlu0 %3759
    %3761 = vrot.lane.b32.xlu0 %v76, 104
    %v3762 = vpop.permute.xlu0 %3761
    %v3764 = vsel %vm305, %v3747, 0
    %v3767 = vsel %vm305, %v3752, 0
    %v3769 = vsel %vm305, %v3756, 0
    %v3771 = vsel %vm305, %v3758, 0
    %v3773 = vsel %vm305, %v3760, 0
    %v3775 = vsel %vm305, %v3762, 0
    %3777 = vmatprep.subr.mxu0 0.0
    %3778 = vmatpush1.xpose.msra.mxu0 %v3769
    %3779 = vmatprep.subr.mxu0 0.0
    %3780 = vmatpush1.xpose.msra.mxu0 %v3771
    %3781 = vmatprep.subr.mxu0 0.0
    %3782 = vmatpush1.xpose.msra.mxu0 %v3773
    %3783 = vmatprep.subr.mxu0 0.0
    %3784 = vmatpush1.xpose.msra.mxu0 %v3775
    %3785 = vmatprep.subr.mxu0 0.0
    %3786 = vmatpush1.xpose.msra.mxu0 0.0
    %3787 = vmatprep.subr.mxu0 0.0
    %3788 = vmatpush1.xpose.msra.mxu0 0.0
    %3789 = vmatprep.subr.mxu0 0.0
    %3790 = vmatpush1.xpose.msra.mxu0 0.0
    %3791 = vmatprep.subr.mxu0 0.0
    %3792 = vmatpush1.xpose.msra.mxu0 0.0
    %3793 = vmatprep.subr.mxu0 0.0
    %3794 = vmatpush1.xpose.msra.mxu0 0.0
    %3795 = vmatprep.subr.mxu0 0.0
    %3796 = vmatpush1.xpose.msra.mxu0 0.0
    %3797 = vmatprep.subr.mxu0 0.0
    %3798 = vmatpush1.xpose.msra.mxu0 0.0
    %3799 = vmatprep.subr.mxu0 0.0
    %3800 = vmatpush1.xpose.msra.mxu0 0.0
    %3801 = vmatprep.subr.mxu0 0.0
    %3802 = vmatpush1.xpose.msra.mxu0 0.0
    %3803 = vmatprep.subr.mxu0 0.0
    %3804 = vmatpush1.xpose.msra.mxu0 0.0
    %3805 = vmatprep.subr.mxu0 0.0
    %3806 = vmatpush1.xpose.msra.mxu0 0.0
    %3807 = vmatprep.subr.mxu0 0.0
    %3808 = vmatpush1.xpose.msra.mxu0 0.0
    %3809 = vmatprep.subr.mxu0 0.0
    %3810 = vmatpush1.xpose.msra.mxu0 0.0
    %3811 = vmatprep.subr.mxu0 0.0
    %3812 = vmatpush1.xpose.msra.mxu0 0.0
    %3813 = vmatprep.subr.mxu0 0.0
    %3814 = vmatpush1.xpose.msra.mxu0 0.0
    %3815 = vmatprep.subr.mxu0 0.0
    %3816 = vmatpush1.xpose.msra.mxu0 0.0
    %3817 = vmatprep.subr.mxu0 0.0
    %3818 = vmatpush1.xpose.msra.mxu0 0.0
    %3819 = vmatprep.subr.mxu0 0.0
    %3820 = vmatpush1.xpose.msra.mxu0 0.0
    %3821 = vmatprep.subr.mxu0 0.0
    %3822 = vmatpush1.xpose.msra.mxu0 0.0
    %3823 = vmatprep.subr.mxu0 0.0
    %3824 = vmatpush1.xpose.msra.mxu0 0.0
    %3825 = vmatprep.subr.mxu0 0.0
    %3826 = vmatpush1.xpose.msra.mxu0 0.0
    %3827 = vmatprep.subr.mxu0 0.0
    %3828 = vmatpush1.xpose.msra.mxu0 0.0
    %3829 = vmatprep.subr.mxu0 0.0
    %3830 = vmatpush1.xpose.msra.mxu0 0.0
    %3831 = vmatprep.subr.mxu0 0.0
    %3832 = vmatpush1.xpose.msra.mxu0 0.0
    %3833 = vmatprep.subr.mxu0 0.0
    %3834 = vmatpush1.xpose.msra.mxu0 0.0
    %3835 = vmatprep.subr.mxu0 0.0
    %3836 = vmatpush1.xpose.msra.mxu0 0.0
    %3837 = vmatprep.subr.mxu0 0.0
    %3838 = vmatpush1.xpose.msra.mxu0 0.0
    %3839 = vmatprep.subr.mxu0 0.0
    %3840 = vmatpush1.xpose.msra.mxu0 0.0
    %3841 = vmatprep.mubr.f32.mxu0 0.0
    %3842 = vmatmul.mubr.f32.gmra.mrb[0].mxu0 %v3764
    %v3843 = vpop.f32.mrb[0].mxu0
    %v3844 = vadd.f32 0.0, %v3843
    %v3845 = vpop.f32.mrb[0].mxu0
    %3846 = vmatprep.mubr.f32.mxu0 0.0
    %3847 = vmatmul.mubr.f32.gmra.mrb[0].mxu0 %v3767
    %v3848 = vpop.f32.mrb[0].mxu0
    %v3849 = vadd.f32 0.0, %v3848
    %v3850 = vpop.f32.mrb[0].mxu0
    %3851 = vdwg.mxu0
    %v3852 = vadd.f32 %v3410, %v3844
    %v3853 = vadd.f32 %v3411, %v3849
    %v3854 = vmul.f32 %v77, 2.0
    %v3856 = vlaneseq
    %v3857 = vshrl.u32 %v3856, 7
    %v3858 = vsub.s32 0, %v3857
    %v3859 = vrot.slane %v3854, %v3858
    %v3861 = vadd.f32 %v3852, %v3859
    %v3862 = vadd.f32 %v3853, %v3859
    %3863 = vst.msk [vmem:[#allocation2] sm:$0xff] %vm84, %v3861
    %3864 = vst.msk [vmem:[#allocation2 + $0x8] sm:$0xff] %vm84, %v3862
    // Predicated region
    $region42: #{simple_mmca_forward.1} parent=1 // pred_check
      _
    $region43: #{simple_mmca_forward.1} parent=1 // pred_check_branch
      %3866 = sbr.rel (0) target = $region45
    $region44: #{simple_mmca_forward.1} parent=1 // pred_region
      %s3868 = ssub.s32 256, 256
      %3869 = vsyncadd [#allocation3], %s3868
      %s3870 = sshll.u32 [#allocation2], 4
      %s3871 = int_to_ptr.vmem [resolvable:$true] %s3870
      %3876 = dma.vmem_to_hbm [thread:$0]  %s3871, 256, %s10, [#allocation3], 128, 128, 8
    $region45: #{simple_mmca_forward.1} parent=1 // pred_fallthru
      _
    // Predicated region
    $region46: #{simple_mmca_forward.1} parent=1 // pred_check
      _
    $region47: #{simple_mmca_forward.1} parent=1 // pred_check_branch
      %3878 = sbr.rel (0) target = $region49
    $region48: #{simple_mmca_forward.1} parent=1 // pred_region
      %3879 = dma.done [#allocation3], 256
    $region49: #{simple_mmca_forward.1} parent=1 // pred_fallthru
      _
    %3880 = vsyncpa [#allocation3], 1

</llo_original>
